<compile_context>
chip_gen: v7x
topology: tpu7x:2x2x1
jax: 0.10.0
libtpu: 0.0.40
codegen_flags: <defaults>
</compile_context>

<pallas_src>
import math

import jax
import jax.numpy as jnp
from jax import lax
from jax.experimental import pallas as pl
from jax.experimental.pallas import tpu as pltpu

# ------------------------- small synthetic config ---------------------------
B = 2            # batch
T = 16           # mel frames
BT = B * T
N_MELS = 32      # input_channels
HIDDEN = 64      # hidden_dims
N_LAYERS = 2     # conformer layers
N_HEADS = 4      # attention heads
HEAD_DIM = HIDDEN // N_HEADS
OUT_DIMS = 128   # pitch bins (real model uses 360 -> pad to 384 there)
CONV_K = 31      # conformer depthwise kernel size
EXPANSION = 2
INNER = HIDDEN * EXPANSION
N_GROUPS = 4     # GroupNorm groups
IN_LANES = 128   # im2col width 3*N_MELS=96, zero-padded to a lane-dense 128
F0_MIN = 32.70
F0_MAX = 1975.5
EPS = 1e-5
LEAKY = 0.01     # LeakyReLU default slope


# ------------------------------ kernel helpers ------------------------------
def _ln(x, g, b):
    mu = jnp.mean(x, axis=-1, keepdims=True)
    var = jnp.mean((x - mu) * (x - mu), axis=-1, keepdims=True)
    return (x - mu) * lax.rsqrt(var + EPS) * g + b


def _mm(a, b):
    """bf16 MXU matmul with f32 accumulation (weights already bf16)."""
    return jnp.dot(a.astype(jnp.bfloat16), b.astype(jnp.bfloat16),
                   preferred_element_type=jnp.float32)


# ------------------------------- fused kernel -------------------------------
def make_fused_kernel(threshold, local_argmax):
    ln2_over_1200 = math.log(2.0) / 1200.0
    attn_scale = 1.0 / math.sqrt(HEAD_DIM)
    last = N_LAYERS - 1

    def kernel(mel_ref, w1_ref, b1_ref, gn_g_ref, gn_b_ref, gn_A_ref,
               w2_ref, b2_ref, sm3_ref,
               a_ln_g_ref, a_ln_b_ref, wqkv_ref, wo_ref, a_bo_ref,
               c_ln_g_ref, c_ln_b_ref, c_w1_ref, c_b1_ref, c_wm_ref,
               c_bdw_ref, c_w2_ref, c_b2_ref,
               h_ln_g_ref, h_ln_b_ref, h_w_ref, h_b_ref, ci_ref,
               f0_ref, x_vmem):
        l = pl.program_id(1)   # layer index (serial axis); batch is grid axis 0

        # ----------------- input stack (first layer step of this batch) -----------------
        @pl.when(l == 0)
        def _input_stack():
            # Conv1d(k=3, pad=1) #1: host im2col (lane-padded to 128) -> one matmul
            h = _mm(mel_ref[...], w1_ref[...]) + b1_ref[...]            # (T, H) f32
            # GroupNorm(4): per-group stats = in-kernel row sum + (H,H) group-avg matmul
            s1 = jnp.sum(h, axis=0, keepdims=True)                      # (1, H)
            s2 = jnp.sum(h * h, axis=0, keepdims=True)
            mean = jnp.dot(s1, gn_A_ref[...], preferred_element_type=jnp.float32)
            ex2 = jnp.dot(s2, gn_A_ref[...], preferred_element_type=jnp.float32)
            var = jnp.maximum(ex2 - mean * mean, 0.0)
            hn = (h - mean) * lax.rsqrt(var + EPS) * gn_g_ref[...] + gn_b_ref[...]
            hn = jnp.where(hn >= 0.0, hn, LEAKY * hn)                   # LeakyReLU
            # Conv1d(k=3, pad=1) #2: 3 shifted matmuls; edge masks precomputed host-side
            acc = jnp.zeros((T, HIDDEN), jnp.float32)
            for k in range(3):
                d = k - 1
                if d == 0:
                    r = hn
                else:
                    r = pltpu.roll(hn, shift=(-d) % T, axis=0) * sm3_ref[k]
                acc = acc + _mm(r, w2_ref[k])
            x_vmem[...] = acc + b2_ref[...]

        # ------------------------------ conformer layer l ------------------------------
        x = x_vmem[...]                                                 # (T, H) f32

        # MHSA (pre-LN, residual): fused QKV, per-head scores, concat heads, one Wo matmul
        xn = _ln(x, a_ln_g_ref[0], a_ln_b_ref[0])
        qkv = jnp.dot(xn.astype(jnp.bfloat16), wqkv_ref[0],
                      preferred_element_type=jnp.float32)               # (T, 3H)
        qkv_bf = qkv.astype(jnp.bfloat16)                               # single hoisted cast
        ctx = []
        for h in range(N_HEADS):
            q = qkv_bf[:, h * HEAD_DIM:(h + 1) * HEAD_DIM]
            k = qkv_bf[:, HIDDEN + h * HEAD_DIM:HIDDEN + (h + 1) * HEAD_DIM]
            v = qkv_bf[:, 2 * HIDDEN + h * HEAD_DIM:2 * HIDDEN + (h + 1) * HEAD_DIM]
            s = lax.dot_general(q, k, (((1,), (1,)), ((), ())),
                                preferred_element_type=jnp.float32) * attn_scale
            s = s - jnp.max(s, axis=-1, keepdims=True)
            p = jnp.exp(s)
            p = p * pl.reciprocal(jnp.sum(p, axis=-1, keepdims=True), approx=True)
            ctx.append(jnp.dot(p.astype(jnp.bfloat16), v,
                               preferred_element_type=jnp.float32))     # (T, dh)
        ctx_all = jnp.concatenate(ctx, axis=-1).astype(jnp.bfloat16)    # (T, H), one cast
        x = (x + jnp.dot(ctx_all, wo_ref[0], preferred_element_type=jnp.float32)
             + a_bo_ref[0])

        # Conformer conv module (pre-LN, residual)
        xn = _ln(x, c_ln_g_ref[0], c_ln_b_ref[0])
        y = jnp.dot(xn.astype(jnp.bfloat16), c_w1_ref[0],
                    preferred_element_type=jnp.float32) + c_b1_ref[0]   # (T, 2*INNER)
        u = y[:, :INNER] * jax.nn.sigmoid(y[:, INNER:])                 # GLU (128-aligned)
        acc = jnp.zeros((T, INNER), jnp.float32)
        for k in range(CONV_K):                                         # depthwise k=31
            d = k - CONV_K // 2
            r = u if d == 0 else pltpu.roll(u, shift=(-d) % T, axis=0)
            acc = acc + r * c_wm_ref[0, k]       # boundary mask folded into tap weight
        acc = acc + c_bdw_ref[0]
        sw = acc * jax.nn.sigmoid(acc)                                  # SiLU
        x = (x + jnp.dot(sw.astype(jnp.bfloat16), c_w2_ref[0],
                         preferred_element_type=jnp.float32) + c_b2_ref[0])
        x_vmem[...] = x

        # --------------- head + cents decoder (last layer step of this batch) -------------
        @pl.when(l == last)
        def _head():
            xh = _ln(x, h_ln_g_ref[...], h_ln_b_ref[...])
            yv = jax.nn.sigmoid(_mm(xh, h_w_ref[...]) + h_b_ref[...])   # latent (T, D)
            ci = ci_ref[...]                                            # (1, D) cent table
            conf = jnp.max(yv, axis=-1, keepdims=True)
            if local_argmax:
                col = lax.broadcasted_iota(jnp.int32, yv.shape, 1)
                cand = jnp.where(yv == conf, col, OUT_DIMS)
                m = jnp.min(cand, axis=-1, keepdims=True)               # first argmax idx
                # 9-bin window [m-4, m+4]; clipped-index duplicates -> edge weights
                w = jnp.logical_and(col >= m - 4, col <= m + 4).astype(jnp.float32)
                w = (w
                     + (col == 0).astype(jnp.float32)
                     * jnp.maximum(4 - m, 0).astype(jnp.float32)
                     + (col == OUT_DIMS - 1).astype(jnp.float32)
                     * jnp.maximum(m - (OUT_DIMS - 5), 0).astype(jnp.float32))
            else:                                                       # plain "argmax" decoder
                w = jnp.ones_like(yv)
            num = jnp.sum(ci * w * yv, axis=-1, keepdims=True)
            den = jnp.sum(w * yv, axis=-1, keepdims=True)
            cents = num / den                                           # exact divide (head)
            rtn = jnp.where(conf > threshold, cents, -jnp.inf)          # mask conf<=thr
            f0 = 10.0 * jnp.exp(rtn * ln2_over_1200)                    # 10 * 2**(cent/1200)
            f0_ref[...] = jnp.broadcast_to(f0, (T, OUT_DIMS))           # lane-dense store

    return kernel


# --------------------------- parameter initialization ------------------------
def _init_params(key):
    keys = iter(jax.random.split(key, 64))
    bf = jnp.bfloat16
    gsz = HIDDEN // N_GROUPS

    def nrm(shape, scale, dtype=jnp.float32):
        return (scale * jax.random.normal(next(keys), shape)).astype(dtype)

    # time-boundary validity masks: row t valid for shift d iff 0 <= t+d < T
    t = jnp.arange(T)

    def shift_mask(taps):
        d = jnp.asarray(taps)[:, None]                              # (K, 1)
        ok = jnp.logical_and(t[None, :] + d >= 0, t[None, :] + d < T)
        return ok.astype(jnp.float32)[:, :, None]                   # (K, T, 1)

    # depthwise conv weights with the boundary mask folded in host-side
    wdw = nrm((N_LAYERS, CONV_K, INNER), CONV_K ** -0.5)
    dw_mask = shift_mask(list(range(-(CONV_K // 2), CONV_K // 2 + 1)))   # (CONV_K, T, 1)
    c_wm = dw_mask[None, :, :, :] * wdw[:, :, None, :]              # (L, CONV_K, T, INNER)

    # input conv #1 in im2col layout, lane-padded 96 -> 128
    w1 = nrm((3 * N_MELS, HIDDEN), (3 * N_MELS) ** -0.5)
    w1 = jnp.concatenate(
        [w1, jnp.zeros((IN_LANES - 3 * N_MELS, HIDDEN))], axis=0).astype(bf)

    p = {
        "in_w1": w1,
        "in_b1": nrm((1, HIDDEN), 0.01),
        "gn_g": jnp.ones((1, HIDDEN), jnp.float32),
        "gn_b": jnp.zeros((1, HIDDEN), jnp.float32),
        # group-average operator (includes 1/(T*gsz)); O(H^2), independent of T
        "gn_A": ((jnp.arange(HIDDEN)[:, None] // gsz
                  == jnp.arange(HIDDEN)[None, :] // gsz).astype(jnp.float32)
                 / float(T * gsz)),
        "in_w2": nrm((3, HIDDEN, HIDDEN), (3 * HIDDEN) ** -0.5, bf),
        "in_b2": nrm((1, HIDDEN), 0.01),
        "sm3": shift_mask([-1, 0, 1]),                               # (3, T, 1)
        # conformer layers stacked on a leading N_LAYERS axis
        "a_ln_g": jnp.ones((N_LAYERS, 1, HIDDEN), jnp.float32),
        "a_ln_b": jnp.zeros((N_LAYERS, 1, HIDDEN), jnp.float32),
        "a_wqkv": nrm((N_LAYERS, HIDDEN, 3 * HIDDEN), HIDDEN ** -0.5, bf),  # fused QKV
        "a_wo": nrm((N_LAYERS, HIDDEN, HIDDEN), HIDDEN ** -0.5, bf),
        "a_bo": nrm((N_LAYERS, 1, HIDDEN), 0.01),
        "c_ln_g": jnp.ones((N_LAYERS, 1, HIDDEN), jnp.float32),
        "c_ln_b": jnp.zeros((N_LAYERS, 1, HIDDEN), jnp.float32),
        "c_w1": nrm((N_LAYERS, HIDDEN, 2 * INNER), HIDDEN ** -0.5, bf),
        "c_b1": nrm((N_LAYERS, 1, 2 * INNER), 0.01),
        "c_wm": c_wm,
        "c_bdw": nrm((N_LAYERS, 1, INNER), 0.01),
        "c_w2": nrm((N_LAYERS, INNER, HIDDEN), INNER ** -0.5, bf),
        "c_b2": nrm((N_LAYERS, 1, HIDDEN), 0.01),
        # head (weight_norm folded to plain linear)
        "h_ln_g": jnp.ones((1, HIDDEN), jnp.float32),
        "h_ln_b": jnp.zeros((1, HIDDEN), jnp.float32),
        "h_w": nrm((HIDDEN, OUT_DIMS), HIDDEN ** -0.5, bf),
        "h_b": nrm((1, OUT_DIMS), 0.01),
    }
    cent_min = 1200.0 * math.log2(F0_MIN / 10.0)
    cent_max = 1200.0 * math.log2(F0_MAX / 10.0)
    p["cent_table"] = jnp.linspace(cent_min, cent_max, OUT_DIMS,
                                   dtype=jnp.float32).reshape(1, OUT_DIMS)
    return p


# ----------------------------------- model -----------------------------------
class InferCFNaiveMelPE:
    """JAX/Pallas reimplementation of the PyTorch InferCFNaiveMelPE forward."""

    def __init__(self, params):
        self.p = params

    def __call__(self, mel, decoder_mode="local_argmax", threshold=0.006):
        p = self.p

        # Host-side prep: im2col of mel over time (zero padded per batch), lane-pad to 128
        zpad = jnp.zeros((B, 1, N_MELS), mel.dtype)
        mp = jnp.concatenate([zpad, mel, zpad], axis=1)                  # (B, T+2, M)
        mel_i2c = jnp.concatenate([mp[:, 0:T], mp[:, 1:T + 1], mp[:, 2:T + 2]],
                                  axis=-1).reshape(BT, 3 * N_MELS)
        mel_i2c = jnp.pad(mel_i2c,
                          ((0, 0), (0, IN_LANES - 3 * N_MELS))).astype(jnp.float32)

        consts = [mel_i2c, p["in_w1"], p["in_b1"], p["gn_g"], p["gn_b"], p["gn_A"],
                  p["in_w2"], p["in_b2"], p["sm3"]]
        layered = [p["a_ln_g"], p["a_ln_b"], p["a_wqkv"], p["a_wo"], p["a_bo"],
                   p["c_ln_g"], p["c_ln_b"], p["c_w1"], p["c_b1"], p["c_wm"],
                   p["c_bdw"], p["c_w2"], p["c_b2"]]
        head_params = [p["h_ln_g"], p["h_ln_b"], p["h_w"], p["h_b"], p["cent_table"]]

        def const_spec(a):
            nd = a.ndim
            return pl.BlockSpec(a.shape, lambda b, l, nd=nd: (0,) * nd)

        def layer_spec(a):
            nd = a.ndim
            return pl.BlockSpec((1,) + a.shape[1:],
                                lambda b, l, nd=nd: (l,) + (0,) * (nd - 1))

        mel_spec = pl.BlockSpec((T, IN_LANES), lambda b, l: (b, 0))

        in_specs = ([mel_spec] + [const_spec(a) for a in consts[1:]]
                    + [layer_spec(a) for a in layered]
                    + [const_spec(a) for a in head_params])

        kernel = make_fused_kernel(float(threshold), decoder_mode == "local_argmax")

        f0 = pl.pallas_call(
            kernel,
            out_shape=jax.ShapeDtypeStruct((BT, OUT_DIMS), jnp.float32),
            grid_spec=pltpu.PrefetchScalarGridSpec(
                num_scalar_prefetch=0,
                grid=(B, N_LAYERS),
                in_specs=in_specs,
                out_specs=pl.BlockSpec((T, OUT_DIMS), lambda b, l: (b, 0)),
                scratch_shapes=[pltpu.VMEM((T, HIDDEN), jnp.float32)],
            ),
            compiler_params=pltpu.CompilerParams(
                dimension_semantics=("parallel", "arbitrary")),
        )(*consts, *layered, *head_params)

        # column 0 of the lane-dense block holds f0 (Hz); 0 where conf <= threshold
        return f0[:, 0:1].reshape(B, T, 1)


if __name__ == "__main__":
    key = jax.random.PRNGKey(0)
    pkey, xkey = jax.random.split(key)
    params = _init_params(pkey)
    mel = jax.random.normal(xkey, (B, T, N_MELS), dtype=jnp.float32)

    model = InferCFNaiveMelPE(params)
    f0 = model(mel, decoder_mode="local_argmax", threshold=0.006)
    f0 = jax.block_until_ready(f0)
    assert f0.shape == (B, T, 1), f0.shape
    print("KERNEL_OK")
</pallas_src>

<mosaic_0001>
module attributes {stable_mosaic.version = 11 : i64} {
  func.func @kernel(%arg0: i32, %arg1: i32, %arg2: memref<16x128xf32, #tpu.memory_space<vmem>>, %arg3: memref<128x64xbf16, #tpu.memory_space<vmem>>, %arg4: memref<1x64xf32, #tpu.memory_space<vmem>>, %arg5: memref<1x64xf32, #tpu.memory_space<vmem>>, %arg6: memref<1x64xf32, #tpu.memory_space<vmem>>, %arg7: memref<64x64xf32, #tpu.memory_space<vmem>>, %arg8: memref<3x64x64xbf16, #tpu.memory_space<vmem>>, %arg9: memref<1x64xf32, #tpu.memory_space<vmem>>, %arg10: memref<3x16x1xf32, #tpu.memory_space<vmem>>, %arg11: memref<1x1x64xf32, #tpu.memory_space<vmem>>, %arg12: memref<1x1x64xf32, #tpu.memory_space<vmem>>, %arg13: memref<1x64x192xbf16, #tpu.memory_space<vmem>>, %arg14: memref<1x64x64xbf16, #tpu.memory_space<vmem>>, %arg15: memref<1x1x64xf32, #tpu.memory_space<vmem>>, %arg16: memref<1x1x64xf32, #tpu.memory_space<vmem>>, %arg17: memref<1x1x64xf32, #tpu.memory_space<vmem>>, %arg18: memref<1x64x256xbf16, #tpu.memory_space<vmem>>, %arg19: memref<1x1x256xf32, #tpu.memory_space<vmem>>, %arg20: memref<1x31x16x128xf32, #tpu.memory_space<vmem>>, %arg21: memref<1x1x128xf32, #tpu.memory_space<vmem>>, %arg22: memref<1x128x64xbf16, #tpu.memory_space<vmem>>, %arg23: memref<1x1x64xf32, #tpu.memory_space<vmem>>, %arg24: memref<1x64xf32, #tpu.memory_space<vmem>>, %arg25: memref<1x64xf32, #tpu.memory_space<vmem>>, %arg26: memref<64x128xbf16, #tpu.memory_space<vmem>>, %arg27: memref<1x128xf32, #tpu.memory_space<vmem>>, %arg28: memref<1x128xf32, #tpu.memory_space<vmem>>, %arg29: memref<16x128xf32, #tpu.memory_space<vmem>>, %arg30: memref<16x64xf32, #tpu.memory_space<vmem>>) attributes {dimension_semantics = [#tpu.dimension_semantics<parallel>, #tpu.dimension_semantics<arbitrary>], iteration_bounds = array<i64: 2, 2>, scalar_prefetch = 0 : i64, scratch_operands = 1 : i64, tpu.core_type = #tpu.core_type<tc>, window_params = [{transform_indices = @transform_0, window_bounds = array<i64: 16, 128>}, {pipeline_mode = #tpu.pipeline_mode<synchronous>, transform_indices = @transform_1, window_bounds = array<i64: 128, 64>}, {pipeline_mode = #tpu.pipeline_mode<synchronous>, transform_indices = @transform_2, window_bounds = array<i64: 1, 64>}, {pipeline_mode = #tpu.pipeline_mode<synchronous>, transform_indices = @transform_3, window_bounds = array<i64: 1, 64>}, {pipeline_mode = #tpu.pipeline_mode<synchronous>, transform_indices = @transform_4, window_bounds = array<i64: 1, 64>}, {pipeline_mode = #tpu.pipeline_mode<synchronous>, transform_indices = @transform_5, window_bounds = array<i64: 64, 64>}, {pipeline_mode = #tpu.pipeline_mode<synchronous>, transform_indices = @transform_6, window_bounds = array<i64: 3, 64, 64>}, {pipeline_mode = #tpu.pipeline_mode<synchronous>, transform_indices = @transform_7, window_bounds = array<i64: 1, 64>}, {pipeline_mode = #tpu.pipeline_mode<synchronous>, transform_indices = @transform_8, window_bounds = array<i64: 3, 16, 1>}, {transform_indices = @transform_9, window_bounds = array<i64: 1, 1, 64>}, {transform_indices = @transform_10, window_bounds = array<i64: 1, 1, 64>}, {transform_indices = @transform_11, window_bounds = array<i64: 1, 64, 192>}, {transform_indices = @transform_12, window_bounds = array<i64: 1, 64, 64>}, {transform_indices = @transform_13, window_bounds = array<i64: 1, 1, 64>}, {transform_indices = @transform_14, window_bounds = array<i64: 1, 1, 64>}, {transform_indices = @transform_15, window_bounds = array<i64: 1, 1, 64>}, {transform_indices = @transform_16, window_bounds = array<i64: 1, 64, 256>}, {transform_indices = @transform_17, window_bounds = array<i64: 1, 1, 256>}, {transform_indices = @transform_18, window_bounds = array<i64: 1, 31, 16, 128>}, {transform_indices = @transform_19, window_bounds = array<i64: 1, 1, 128>}, {transform_indices = @transform_20, window_bounds = array<i64: 1, 128, 64>}, {transform_indices = @transform_21, window_bounds = array<i64: 1, 1, 64>}, {pipeline_mode = #tpu.pipeline_mode<synchronous>, transform_indices = @transform_22, window_bounds = array<i64: 1, 64>}, {pipeline_mode = #tpu.pipeline_mode<synchronous>, transform_indices = @transform_23, window_bounds = array<i64: 1, 64>}, {pipeline_mode = #tpu.pipeline_mode<synchronous>, transform_indices = @transform_24, window_bounds = array<i64: 64, 128>}, {pipeline_mode = #tpu.pipeline_mode<synchronous>, transform_indices = @transform_25, window_bounds = array<i64: 1, 128>}, {pipeline_mode = #tpu.pipeline_mode<synchronous>, transform_indices = @transform_26, window_bounds = array<i64: 1, 128>}, {transform_indices = @transform_27, window_bounds = array<i64: 16, 128>}]} {
    %c0_i32 = arith.constant 0 : i32
    %0 = arith.cmpi eq, %arg1, %c0_i32 : i32
    %1 = arith.extui %0 : i1 to i32
    %c0_i32_0 = arith.constant 0 : i32
    %2 = arith.cmpi ne, %1, %c0_i32_0 : i32
    scf.if %2 {
      %c0_187 = arith.constant 0 : index
      %c0_188 = arith.constant 0 : index
      %341 = vector.load %arg2[%c0_187, %c0_188] : memref<16x128xf32, #tpu.memory_space<vmem>>, vector<16x128xf32>
      %c0_189 = arith.constant 0 : index
      %c0_190 = arith.constant 0 : index
      %342 = vector.load %arg3[%c0_189, %c0_190] : memref<128x64xbf16, #tpu.memory_space<vmem>>, vector<128x64xbf16>
      %343 = arith.truncf %341 : vector<16x128xf32> to vector<16x128xbf16>
      %cst_191 = arith.constant dense<0.000000e+00> : vector<16x64xf32>
      %344 = tpu.matmul %343, %342, %cst_191 {dimension_numbers = #tpu.dot_dimension_numbers<[1], [0], [0], [1], [0, 0, 1, 1], [], []>} : vector<16x128xbf16>, vector<128x64xbf16>, vector<16x64xf32> -> vector<16x64xf32>
      %c0_192 = arith.constant 0 : index
      %c0_193 = arith.constant 0 : index
      %345 = vector.load %arg4[%c0_192, %c0_193] : memref<1x64xf32, #tpu.memory_space<vmem>>, vector<1x64xf32>
      %346 = vector.broadcast %345 : vector<1x64xf32> to vector<16x64xf32>
      %347 = arith.addf %344, %346 : vector<16x64xf32>
      %cst_194 = arith.constant dense<0.000000e+00> : vector<64xf32>
      %348 = vector.multi_reduction <add>, %347, %cst_194 [0] : vector<16x64xf32> to vector<64xf32>
      %349 = vector.shape_cast %348 : vector<64xf32> to vector<1x64xf32>
      %350 = arith.mulf %347, %347 : vector<16x64xf32>
      %cst_195 = arith.constant dense<0.000000e+00> : vector<64xf32>
      %351 = vector.multi_reduction <add>, %350, %cst_195 [0] : vector<16x64xf32> to vector<64xf32>
      %352 = vector.shape_cast %351 : vector<64xf32> to vector<1x64xf32>
      %c0_196 = arith.constant 0 : index
      %c0_197 = arith.constant 0 : index
      %353 = vector.load %arg7[%c0_196, %c0_197] : memref<64x64xf32, #tpu.memory_space<vmem>>, vector<64x64xf32>
      %cst_198 = arith.constant dense<0.000000e+00> : vector<1x64xf32>
      %354 = tpu.matmul %349, %353, %cst_198 {dimension_numbers = #tpu.dot_dimension_numbers<[1], [0], [0], [1], [0, 0, 1, 1], [], []>} : vector<1x64xf32>, vector<64x64xf32>, vector<1x64xf32> -> vector<1x64xf32>
      %c0_199 = arith.constant 0 : index
      %c0_200 = arith.constant 0 : index
      %355 = vector.load %arg7[%c0_199, %c0_200] : memref<64x64xf32, #tpu.memory_space<vmem>>, vector<64x64xf32>
      %cst_201 = arith.constant dense<0.000000e+00> : vector<1x64xf32>
      %356 = tpu.matmul %352, %355, %cst_201 {dimension_numbers = #tpu.dot_dimension_numbers<[1], [0], [0], [1], [0, 0, 1, 1], [], []>} : vector<1x64xf32>, vector<64x64xf32>, vector<1x64xf32> -> vector<1x64xf32>
      %357 = arith.mulf %354, %354 : vector<1x64xf32>
      %358 = arith.subf %356, %357 : vector<1x64xf32>
      %cst_202 = arith.constant 0.000000e+00 : f32
      %359 = vector.broadcast %cst_202 : f32 to vector<1x64xf32>
      %360 = arith.maximumf %358, %359 : vector<1x64xf32>
      %361 = vector.broadcast %354 : vector<1x64xf32> to vector<16x64xf32>
      %362 = arith.subf %347, %361 : vector<16x64xf32>
      %cst_203 = arith.constant 9.99999974E-6 : f32
      %363 = vector.broadcast %cst_203 : f32 to vector<1x64xf32>
      %364 = arith.addf %360, %363 : vector<1x64xf32>
      %365 = math.rsqrt %364 : vector<1x64xf32>
      %366 = vector.broadcast %365 : vector<1x64xf32> to vector<16x64xf32>
      %367 = arith.mulf %362, %366 : vector<16x64xf32>
      %c0_204 = arith.constant 0 : index
      %c0_205 = arith.constant 0 : index
      %368 = vector.load %arg5[%c0_204, %c0_205] : memref<1x64xf32, #tpu.memory_space<vmem>>, vector<1x64xf32>
      %369 = vector.broadcast %368 : vector<1x64xf32> to vector<16x64xf32>
      %370 = arith.mulf %367, %369 : vector<16x64xf32>
      %c0_206 = arith.constant 0 : index
      %c0_207 = arith.constant 0 : index
      %371 = vector.load %arg6[%c0_206, %c0_207] : memref<1x64xf32, #tpu.memory_space<vmem>>, vector<1x64xf32>
      %372 = vector.broadcast %371 : vector<1x64xf32> to vector<16x64xf32>
      %373 = arith.addf %370, %372 : vector<16x64xf32>
      %cst_208 = arith.constant 0.000000e+00 : f32
      %374 = vector.broadcast %cst_208 : f32 to vector<16x64xf32>
      %375 = arith.cmpf oge, %373, %374 : vector<16x64xf32>
      %cst_209 = arith.constant 0.00999999977 : f32
      %376 = vector.broadcast %cst_209 : f32 to vector<16x64xf32>
      %377 = arith.mulf %376, %373 : vector<16x64xf32>
      %378 = arith.select %375, %373, %377 : vector<16x64xi1>, vector<16x64xf32>
      %cst_210 = arith.constant 0.000000e+00 : f32
      %379 = vector.broadcast %cst_210 : f32 to vector<16x64xf32>
      %c1_i32_211 = arith.constant 1 : i32
      %380 = tpu.dynamic_rotate %378 by %c1_i32_211 dim 0 : vector<16x64xf32>, i32 -> vector<16x64xf32>
      %c0_212 = arith.constant 0 : index
      %c0_213 = arith.constant 0 : index
      %c0_214 = arith.constant 0 : index
      %381 = vector.load %arg10[%c0_212, %c0_213, %c0_214] : memref<3x16x1xf32, #tpu.memory_space<vmem>>, vector<1x16x1xf32>
      %382 = vector.shape_cast %381 : vector<1x16x1xf32> to vector<16x1xf32>
      %383 = vector.broadcast %382 : vector<16x1xf32> to vector<16x64xf32>
      %384 = arith.mulf %380, %383 : vector<16x64xf32>
      %c0_215 = arith.constant 0 : index
      %c0_216 = arith.constant 0 : index
      %c0_217 = arith.constant 0 : index
      %385 = vector.load %arg8[%c0_215, %c0_216, %c0_217] : memref<3x64x64xbf16, #tpu.memory_space<vmem>>, vector<1x64x64xbf16>
      %386 = vector.shape_cast %385 : vector<1x64x64xbf16> to vector<64x64xbf16>
      %387 = arith.truncf %384 : vector<16x64xf32> to vector<16x64xbf16>
      %cst_218 = arith.constant dense<0.000000e+00> : vector<16x64xf32>
      %388 = tpu.matmul %387, %386, %cst_218 {dimension_numbers = #tpu.dot_dimension_numbers<[1], [0], [0], [1], [0, 0, 1, 1], [], []>} : vector<16x64xbf16>, vector<64x64xbf16>, vector<16x64xf32> -> vector<16x64xf32>
      %389 = arith.addf %379, %388 : vector<16x64xf32>
      %c1_219 = arith.constant 1 : index
      %c0_220 = arith.constant 0 : index
      %c0_221 = arith.constant 0 : index
      %390 = vector.load %arg8[%c1_219, %c0_220, %c0_221] : memref<3x64x64xbf16, #tpu.memory_space<vmem>>, vector<1x64x64xbf16>
      %391 = vector.shape_cast %390 : vector<1x64x64xbf16> to vector<64x64xbf16>
      %392 = arith.truncf %378 : vector<16x64xf32> to vector<16x64xbf16>
      %cst_222 = arith.constant dense<0.000000e+00> : vector<16x64xf32>
      %393 = tpu.matmul %392, %391, %cst_222 {dimension_numbers = #tpu.dot_dimension_numbers<[1], [0], [0], [1], [0, 0, 1, 1], [], []>} : vector<16x64xbf16>, vector<64x64xbf16>, vector<16x64xf32> -> vector<16x64xf32>
      %394 = arith.addf %389, %393 : vector<16x64xf32>
      %c15_i32_223 = arith.constant 15 : i32
      %395 = tpu.dynamic_rotate %378 by %c15_i32_223 dim 0 : vector<16x64xf32>, i32 -> vector<16x64xf32>
      %c2_224 = arith.constant 2 : index
      %c0_225 = arith.constant 0 : index
      %c0_226 = arith.constant 0 : index
      %396 = vector.load %arg10[%c2_224, %c0_225, %c0_226] : memref<3x16x1xf32, #tpu.memory_space<vmem>>, vector<1x16x1xf32>
      %397 = vector.shape_cast %396 : vector<1x16x1xf32> to vector<16x1xf32>
      %398 = vector.broadcast %397 : vector<16x1xf32> to vector<16x64xf32>
      %399 = arith.mulf %395, %398 : vector<16x64xf32>
      %c2_227 = arith.constant 2 : index
      %c0_228 = arith.constant 0 : index
      %c0_229 = arith.constant 0 : index
      %400 = vector.load %arg8[%c2_227, %c0_228, %c0_229] : memref<3x64x64xbf16, #tpu.memory_space<vmem>>, vector<1x64x64xbf16>
      %401 = vector.shape_cast %400 : vector<1x64x64xbf16> to vector<64x64xbf16>
      %402 = arith.truncf %399 : vector<16x64xf32> to vector<16x64xbf16>
      %cst_230 = arith.constant dense<0.000000e+00> : vector<16x64xf32>
      %403 = tpu.matmul %402, %401, %cst_230 {dimension_numbers = #tpu.dot_dimension_numbers<[1], [0], [0], [1], [0, 0, 1, 1], [], []>} : vector<16x64xbf16>, vector<64x64xbf16>, vector<16x64xf32> -> vector<16x64xf32>
      %404 = arith.addf %394, %403 : vector<16x64xf32>
      %c0_231 = arith.constant 0 : index
      %c0_232 = arith.constant 0 : index
      %405 = vector.load %arg9[%c0_231, %c0_232] : memref<1x64xf32, #tpu.memory_space<vmem>>, vector<1x64xf32>
      %406 = vector.broadcast %405 : vector<1x64xf32> to vector<16x64xf32>
      %407 = arith.addf %404, %406 : vector<16x64xf32>
      %c0_233 = arith.constant 0 : index
      %c0_234 = arith.constant 0 : index
      %408 = vector.load %arg30[%c0_233, %c0_234] : memref<16x64xf32, #tpu.memory_space<vmem>>, vector<16x64xf32>
      tpu.vector_store %arg30[%c0_233, %c0_234], %407 {strides = array<i32>} : memref<16x64xf32, #tpu.memory_space<vmem>>, vector<16x64xf32>,
    } else {
    }
    %c0 = arith.constant 0 : index
    %c0_1 = arith.constant 0 : index
    %3 = vector.load %arg30[%c0, %c0_1] : memref<16x64xf32, #tpu.memory_space<vmem>>, vector<16x64xf32>
    %c0_2 = arith.constant 0 : index
    %c0_3 = arith.constant 0 : index
    %c0_4 = arith.constant 0 : index
    %4 = vector.load %arg11[%c0_2, %c0_3, %c0_4] : memref<1x1x64xf32, #tpu.memory_space<vmem>>, vector<1x1x64xf32>
    %5 = vector.shape_cast %4 : vector<1x1x64xf32> to vector<1x64xf32>
    %c0_5 = arith.constant 0 : index
    %c0_6 = arith.constant 0 : index
    %c0_7 = arith.constant 0 : index
    %6 = vector.load %arg12[%c0_5, %c0_6, %c0_7] : memref<1x1x64xf32, #tpu.memory_space<vmem>>, vector<1x1x64xf32>
    %7 = vector.shape_cast %6 : vector<1x1x64xf32> to vector<1x64xf32>
    %cst = arith.constant dense<0.000000e+00> : vector<16xf32>
    %8 = vector.multi_reduction <add>, %3, %cst [1] : vector<16x64xf32> to vector<16xf32>
    %9 = vector.shape_cast %8 : vector<16xf32> to vector<16x1xf32>
    %cst_8 = arith.constant 6.400000e+01 : f32
    %10 = vector.broadcast %cst_8 : f32 to vector<16x1xf32>
    %11 = arith.divf %9, %10 : vector<16x1xf32>
    %12 = vector.broadcast %11 : vector<16x1xf32> to vector<16x64xf32>
    %13 = arith.subf %3, %12 : vector<16x64xf32>
    %14 = vector.broadcast %11 : vector<16x1xf32> to vector<16x64xf32>
    %15 = arith.subf %3, %14 : vector<16x64xf32>
    %16 = arith.mulf %13, %15 : vector<16x64xf32>
    %cst_9 = arith.constant dense<0.000000e+00> : vector<16xf32>
    %17 = vector.multi_reduction <add>, %16, %cst_9 [1] : vector<16x64xf32> to vector<16xf32>
    %18 = vector.shape_cast %17 : vector<16xf32> to vector<16x1xf32>
    %cst_10 = arith.constant 6.400000e+01 : f32
    %19 = vector.broadcast %cst_10 : f32 to vector<16x1xf32>
    %20 = arith.divf %18, %19 : vector<16x1xf32>
    %21 = vector.broadcast %11 : vector<16x1xf32> to vector<16x64xf32>
    %22 = arith.subf %3, %21 : vector<16x64xf32>
    %cst_11 = arith.constant 9.99999974E-6 : f32
    %23 = vector.broadcast %cst_11 : f32 to vector<16x1xf32>
    %24 = arith.addf %20, %23 : vector<16x1xf32>
    %25 = math.rsqrt %24 : vector<16x1xf32>
    %26 = vector.broadcast %25 : vector<16x1xf32> to vector<16x64xf32>
    %27 = arith.mulf %22, %26 : vector<16x64xf32>
    %28 = vector.broadcast %5 : vector<1x64xf32> to vector<16x64xf32>
    %29 = arith.mulf %27, %28 : vector<16x64xf32>
    %30 = vector.broadcast %7 : vector<1x64xf32> to vector<16x64xf32>
    %31 = arith.addf %29, %30 : vector<16x64xf32>
    %32 = arith.truncf %31 : vector<16x64xf32> to vector<16x64xbf16>
    %c0_12 = arith.constant 0 : index
    %c0_13 = arith.constant 0 : index
    %c0_14 = arith.constant 0 : index
    %33 = vector.load %arg13[%c0_12, %c0_13, %c0_14] : memref<1x64x192xbf16, #tpu.memory_space<vmem>>, vector<1x64x192xbf16>
    %34 = vector.shape_cast %33 : vector<1x64x192xbf16> to vector<64x192xbf16>
    %cst_15 = arith.constant dense<0.000000e+00> : vector<16x192xf32>
    %35 = tpu.matmul %32, %34, %cst_15 {dimension_numbers = #tpu.dot_dimension_numbers<[1], [0], [0], [1], [0, 0, 1, 1], [], []>} : vector<16x64xbf16>, vector<64x192xbf16>, vector<16x192xf32> -> vector<16x192xf32>
    %36 = arith.truncf %35 : vector<16x192xf32> to vector<16x192xbf16>
    %37 = vector.extract_strided_slice %36 {offsets = [0, 0], sizes = [16, 16], strides = [1, 1]} : vector<16x192xbf16> to vector<16x16xbf16>
    %38 = vector.extract_strided_slice %36 {offsets = [0, 64], sizes = [16, 16], strides = [1, 1]} : vector<16x192xbf16> to vector<16x16xbf16>
    %39 = vector.extract_strided_slice %36 {offsets = [0, 128], sizes = [16, 16], strides = [1, 1]} : vector<16x192xbf16> to vector<16x16xbf16>
    %cst_16 = arith.constant dense<0.000000e+00> : vector<16x16xf32>
    %40 = tpu.matmul %37, %38, %cst_16 {dimension_numbers = #tpu.dot_dimension_numbers<[1], [1], [0], [0], [0, 0, 1, 0], [], []>} : vector<16x16xbf16>, vector<16x16xbf16>, vector<16x16xf32> -> vector<16x16xf32>
    %cst_17 = arith.constant 2.500000e-01 : f32
    %41 = vector.broadcast %cst_17 : f32 to vector<16x16xf32>
    %42 = arith.mulf %40, %41 : vector<16x16xf32>
    %cst_18 = arith.constant dense<0xFF800000> : vector<16xf32>
    %43 = vector.multi_reduction <maximumf>, %42, %cst_18 [1] : vector<16x16xf32> to vector<16xf32>
    %44 = vector.shape_cast %43 : vector<16xf32> to vector<16x1xf32>
    %45 = vector.broadcast %44 : vector<16x1xf32> to vector<16x16xf32>
    %46 = arith.subf %42, %45 : vector<16x16xf32>
    %47 = math.exp %46 : vector<16x16xf32>
    %cst_19 = arith.constant dense<0.000000e+00> : vector<16xf32>
    %48 = vector.multi_reduction <add>, %47, %cst_19 [1] : vector<16x16xf32> to vector<16xf32>
    %49 = vector.shape_cast %48 : vector<16xf32> to vector<16x1xf32>
    %50 = tpu.reciprocal %49 {approx = true} : vector<16x1xf32> -> vector<16x1xf32>
    %51 = vector.broadcast %50 : vector<16x1xf32> to vector<16x16xf32>
    %52 = arith.mulf %47, %51 : vector<16x16xf32>
    %53 = arith.truncf %52 : vector<16x16xf32> to vector<16x16xbf16>
    %cst_20 = arith.constant dense<0.000000e+00> : vector<16x16xf32>
    %54 = tpu.matmul %53, %39, %cst_20 {dimension_numbers = #tpu.dot_dimension_numbers<[1], [0], [0], [1], [0, 0, 1, 1], [], []>} : vector<16x16xbf16>, vector<16x16xbf16>, vector<16x16xf32> -> vector<16x16xf32>
    %55 = vector.extract_strided_slice %36 {offsets = [0, 16], sizes = [16, 16], strides = [1, 1]} : vector<16x192xbf16> to vector<16x16xbf16>
    %56 = vector.extract_strided_slice %36 {offsets = [0, 80], sizes = [16, 16], strides = [1, 1]} : vector<16x192xbf16> to vector<16x16xbf16>
    %57 = vector.extract_strided_slice %36 {offsets = [0, 144], sizes = [16, 16], strides = [1, 1]} : vector<16x192xbf16> to vector<16x16xbf16>
    %cst_21 = arith.constant dense<0.000000e+00> : vector<16x16xf32>
    %58 = tpu.matmul %55, %56, %cst_21 {dimension_numbers = #tpu.dot_dimension_numbers<[1], [1], [0], [0], [0, 0, 1, 0], [], []>} : vector<16x16xbf16>, vector<16x16xbf16>, vector<16x16xf32> -> vector<16x16xf32>
    %cst_22 = arith.constant 2.500000e-01 : f32
    %59 = vector.broadcast %cst_22 : f32 to vector<16x16xf32>
    %60 = arith.mulf %58, %59 : vector<16x16xf32>
    %cst_23 = arith.constant dense<0xFF800000> : vector<16xf32>
    %61 = vector.multi_reduction <maximumf>, %60, %cst_23 [1] : vector<16x16xf32> to vector<16xf32>
    %62 = vector.shape_cast %61 : vector<16xf32> to vector<16x1xf32>
    %63 = vector.broadcast %62 : vector<16x1xf32> to vector<16x16xf32>
    %64 = arith.subf %60, %63 : vector<16x16xf32>
    %65 = math.exp %64 : vector<16x16xf32>
    %cst_24 = arith.constant dense<0.000000e+00> : vector<16xf32>
    %66 = vector.multi_reduction <add>, %65, %cst_24 [1] : vector<16x16xf32> to vector<16xf32>
    %67 = vector.shape_cast %66 : vector<16xf32> to vector<16x1xf32>
    %68 = tpu.reciprocal %67 {approx = true} : vector<16x1xf32> -> vector<16x1xf32>
    %69 = vector.broadcast %68 : vector<16x1xf32> to vector<16x16xf32>
    %70 = arith.mulf %65, %69 : vector<16x16xf32>
    %71 = arith.truncf %70 : vector<16x16xf32> to vector<16x16xbf16>
    %cst_25 = arith.constant dense<0.000000e+00> : vector<16x16xf32>
    %72 = tpu.matmul %71, %57, %cst_25 {dimension_numbers = #tpu.dot_dimension_numbers<[1], [0], [0], [1], [0, 0, 1, 1], [], []>} : vector<16x16xbf16>, vector<16x16xbf16>, vector<16x16xf32> -> vector<16x16xf32>
    %73 = vector.extract_strided_slice %36 {offsets = [0, 32], sizes = [16, 16], strides = [1, 1]} : vector<16x192xbf16> to vector<16x16xbf16>
    %74 = vector.extract_strided_slice %36 {offsets = [0, 96], sizes = [16, 16], strides = [1, 1]} : vector<16x192xbf16> to vector<16x16xbf16>
    %75 = vector.extract_strided_slice %36 {offsets = [0, 160], sizes = [16, 16], strides = [1, 1]} : vector<16x192xbf16> to vector<16x16xbf16>
    %cst_26 = arith.constant dense<0.000000e+00> : vector<16x16xf32>
    %76 = tpu.matmul %73, %74, %cst_26 {dimension_numbers = #tpu.dot_dimension_numbers<[1], [1], [0], [0], [0, 0, 1, 0], [], []>} : vector<16x16xbf16>, vector<16x16xbf16>, vector<16x16xf32> -> vector<16x16xf32>
    %cst_27 = arith.constant 2.500000e-01 : f32
    %77 = vector.broadcast %cst_27 : f32 to vector<16x16xf32>
    %78 = arith.mulf %76, %77 : vector<16x16xf32>
    %cst_28 = arith.constant dense<0xFF800000> : vector<16xf32>
    %79 = vector.multi_reduction <maximumf>, %78, %cst_28 [1] : vector<16x16xf32> to vector<16xf32>
    %80 = vector.shape_cast %79 : vector<16xf32> to vector<16x1xf32>
    %81 = vector.broadcast %80 : vector<16x1xf32> to vector<16x16xf32>
    %82 = arith.subf %78, %81 : vector<16x16xf32>
    %83 = math.exp %82 : vector<16x16xf32>
    %cst_29 = arith.constant dense<0.000000e+00> : vector<16xf32>
    %84 = vector.multi_reduction <add>, %83, %cst_29 [1] : vector<16x16xf32> to vector<16xf32>
    %85 = vector.shape_cast %84 : vector<16xf32> to vector<16x1xf32>
    %86 = tpu.reciprocal %85 {approx = true} : vector<16x1xf32> -> vector<16x1xf32>
    %87 = vector.broadcast %86 : vector<16x1xf32> to vector<16x16xf32>
    %88 = arith.mulf %83, %87 : vector<16x16xf32>
    %89 = arith.truncf %88 : vector<16x16xf32> to vector<16x16xbf16>
    %cst_30 = arith.constant dense<0.000000e+00> : vector<16x16xf32>
    %90 = tpu.matmul %89, %75, %cst_30 {dimension_numbers = #tpu.dot_dimension_numbers<[1], [0], [0], [1], [0, 0, 1, 1], [], []>} : vector<16x16xbf16>, vector<16x16xbf16>, vector<16x16xf32> -> vector<16x16xf32>
    %91 = vector.extract_strided_slice %36 {offsets = [0, 48], sizes = [16, 16], strides = [1, 1]} : vector<16x192xbf16> to vector<16x16xbf16>
    %92 = vector.extract_strided_slice %36 {offsets = [0, 112], sizes = [16, 16], strides = [1, 1]} : vector<16x192xbf16> to vector<16x16xbf16>
    %93 = vector.extract_strided_slice %36 {offsets = [0, 176], sizes = [16, 16], strides = [1, 1]} : vector<16x192xbf16> to vector<16x16xbf16>
    %cst_31 = arith.constant dense<0.000000e+00> : vector<16x16xf32>
    %94 = tpu.matmul %91, %92, %cst_31 {dimension_numbers = #tpu.dot_dimension_numbers<[1], [1], [0], [0], [0, 0, 1, 0], [], []>} : vector<16x16xbf16>, vector<16x16xbf16>, vector<16x16xf32> -> vector<16x16xf32>
    %cst_32 = arith.constant 2.500000e-01 : f32
    %95 = vector.broadcast %cst_32 : f32 to vector<16x16xf32>
    %96 = arith.mulf %94, %95 : vector<16x16xf32>
    %cst_33 = arith.constant dense<0xFF800000> : vector<16xf32>
    %97 = vector.multi_reduction <maximumf>, %96, %cst_33 [1] : vector<16x16xf32> to vector<16xf32>
    %98 = vector.shape_cast %97 : vector<16xf32> to vector<16x1xf32>
    %99 = vector.broadcast %98 : vector<16x1xf32> to vector<16x16xf32>
    %100 = arith.subf %96, %99 : vector<16x16xf32>
    %101 = math.exp %100 : vector<16x16xf32>
    %cst_34 = arith.constant dense<0.000000e+00> : vector<16xf32>
    %102 = vector.multi_reduction <add>, %101, %cst_34 [1] : vector<16x16xf32> to vector<16xf32>
    %103 = vector.shape_cast %102 : vector<16xf32> to vector<16x1xf32>
    %104 = tpu.reciprocal %103 {approx = true} : vector<16x1xf32> -> vector<16x1xf32>
    %105 = vector.broadcast %104 : vector<16x1xf32> to vector<16x16xf32>
    %106 = arith.mulf %101, %105 : vector<16x16xf32>
    %107 = arith.truncf %106 : vector<16x16xf32> to vector<16x16xbf16>
    %cst_35 = arith.constant dense<0.000000e+00> : vector<16x16xf32>
    %108 = tpu.matmul %107, %93, %cst_35 {dimension_numbers = #tpu.dot_dimension_numbers<[1], [0], [0], [1], [0, 0, 1, 1], [], []>} : vector<16x16xbf16>, vector<16x16xbf16>, vector<16x16xf32> -> vector<16x16xf32>
    %109 = tpu.concatenate %54, %72, %90, %108 in 1 : vector<16x16xf32>, vector<16x16xf32>, vector<16x16xf32>, vector<16x16xf32> -> vector<16x64xf32>
    %110 = arith.truncf %109 : vector<16x64xf32> to vector<16x64xbf16>
    %c0_36 = arith.constant 0 : index
    %c0_37 = arith.constant 0 : index
    %c0_38 = arith.constant 0 : index
    %111 = vector.load %arg14[%c0_36, %c0_37, %c0_38] : memref<1x64x64xbf16, #tpu.memory_space<vmem>>, vector<1x64x64xbf16>
    %112 = vector.shape_cast %111 : vector<1x64x64xbf16> to vector<64x64xbf16>
    %cst_39 = arith.constant dense<0.000000e+00> : vector<16x64xf32>
    %113 = tpu.matmul %110, %112, %cst_39 {dimension_numbers = #tpu.dot_dimension_numbers<[1], [0], [0], [1], [0, 0, 1, 1], [], []>} : vector<16x64xbf16>, vector<64x64xbf16>, vector<16x64xf32> -> vector<16x64xf32>
    %114 = arith.addf %3, %113 : vector<16x64xf32>
    %c0_40 = arith.constant 0 : index
    %c0_41 = arith.constant 0 : index
    %c0_42 = arith.constant 0 : index
    %115 = vector.load %arg15[%c0_40, %c0_41, %c0_42] : memref<1x1x64xf32, #tpu.memory_space<vmem>>, vector<1x1x64xf32>
    %116 = vector.shape_cast %115 : vector<1x1x64xf32> to vector<1x64xf32>
    %117 = vector.broadcast %116 : vector<1x64xf32> to vector<16x64xf32>
    %118 = arith.addf %114, %117 : vector<16x64xf32>
    %c0_43 = arith.constant 0 : index
    %c0_44 = arith.constant 0 : index
    %c0_45 = arith.constant 0 : index
    %119 = vector.load %arg16[%c0_43, %c0_44, %c0_45] : memref<1x1x64xf32, #tpu.memory_space<vmem>>, vector<1x1x64xf32>
    %120 = vector.shape_cast %119 : vector<1x1x64xf32> to vector<1x64xf32>
    %c0_46 = arith.constant 0 : index
    %c0_47 = arith.constant 0 : index
    %c0_48 = arith.constant 0 : index
    %121 = vector.load %arg17[%c0_46, %c0_47, %c0_48] : memref<1x1x64xf32, #tpu.memory_space<vmem>>, vector<1x1x64xf32>
    %122 = vector.shape_cast %121 : vector<1x1x64xf32> to vector<1x64xf32>
    %cst_49 = arith.constant dense<0.000000e+00> : vector<16xf32>
    %123 = vector.multi_reduction <add>, %118, %cst_49 [1] : vector<16x64xf32> to vector<16xf32>
    %124 = vector.shape_cast %123 : vector<16xf32> to vector<16x1xf32>
    %cst_50 = arith.constant 6.400000e+01 : f32
    %125 = vector.broadcast %cst_50 : f32 to vector<16x1xf32>
    %126 = arith.divf %124, %125 : vector<16x1xf32>
    %127 = vector.broadcast %126 : vector<16x1xf32> to vector<16x64xf32>
    %128 = arith.subf %118, %127 : vector<16x64xf32>
    %129 = vector.broadcast %126 : vector<16x1xf32> to vector<16x64xf32>
    %130 = arith.subf %118, %129 : vector<16x64xf32>
    %131 = arith.mulf %128, %130 : vector<16x64xf32>
    %cst_51 = arith.constant dense<0.000000e+00> : vector<16xf32>
    %132 = vector.multi_reduction <add>, %131, %cst_51 [1] : vector<16x64xf32> to vector<16xf32>
    %133 = vector.shape_cast %132 : vector<16xf32> to vector<16x1xf32>
    %cst_52 = arith.constant 6.400000e+01 : f32
    %134 = vector.broadcast %cst_52 : f32 to vector<16x1xf32>
    %135 = arith.divf %133, %134 : vector<16x1xf32>
    %136 = vector.broadcast %126 : vector<16x1xf32> to vector<16x64xf32>
    %137 = arith.subf %118, %136 : vector<16x64xf32>
    %cst_53 = arith.constant 9.99999974E-6 : f32
    %138 = vector.broadcast %cst_53 : f32 to vector<16x1xf32>
    %139 = arith.addf %135, %138 : vector<16x1xf32>
    %140 = math.rsqrt %139 : vector<16x1xf32>
    %141 = vector.broadcast %140 : vector<16x1xf32> to vector<16x64xf32>
    %142 = arith.mulf %137, %141 : vector<16x64xf32>
    %143 = vector.broadcast %120 : vector<1x64xf32> to vector<16x64xf32>
    %144 = arith.mulf %142, %143 : vector<16x64xf32>
    %145 = vector.broadcast %122 : vector<1x64xf32> to vector<16x64xf32>
    %146 = arith.addf %144, %145 : vector<16x64xf32>
    %147 = arith.truncf %146 : vector<16x64xf32> to vector<16x64xbf16>
    %c0_54 = arith.constant 0 : index
    %c0_55 = arith.constant 0 : index
    %c0_56 = arith.constant 0 : index
    %148 = vector.load %arg18[%c0_54, %c0_55, %c0_56] : memref<1x64x256xbf16, #tpu.memory_space<vmem>>, vector<1x64x256xbf16>
    %149 = vector.shape_cast %148 : vector<1x64x256xbf16> to vector<64x256xbf16>
    %cst_57 = arith.constant dense<0.000000e+00> : vector<16x256xf32>
    %150 = tpu.matmul %147, %149, %cst_57 {dimension_numbers = #tpu.dot_dimension_numbers<[1], [0], [0], [1], [0, 0, 1, 1], [], []>} : vector<16x64xbf16>, vector<64x256xbf16>, vector<16x256xf32> -> vector<16x256xf32>
    %c0_58 = arith.constant 0 : index
    %c0_59 = arith.constant 0 : index
    %c0_60 = arith.constant 0 : index
    %151 = vector.load %arg19[%c0_58, %c0_59, %c0_60] : memref<1x1x256xf32, #tpu.memory_space<vmem>>, vector<1x1x256xf32>
    %152 = vector.shape_cast %151 : vector<1x1x256xf32> to vector<1x256xf32>
    %153 = vector.broadcast %152 : vector<1x256xf32> to vector<16x256xf32>
    %154 = arith.addf %150, %153 : vector<16x256xf32>
    %155 = vector.extract_strided_slice %154 {offsets = [0, 0], sizes = [16, 128], strides = [1, 1]} : vector<16x256xf32> to vector<16x128xf32>
    %156 = vector.extract_strided_slice %154 {offsets = [0, 128], sizes = [16, 128], strides = [1, 1]} : vector<16x256xf32> to vector<16x128xf32>
    %157 = arith.negf %156 : vector<16x128xf32>
    %158 = math.exp %157 : vector<16x128xf32>
    %cst_61 = arith.constant 1.000000e+00 : f32
    %159 = vector.broadcast %cst_61 : f32 to vector<16x128xf32>
    %160 = arith.addf %159, %158 : vector<16x128xf32>
    %161 = arith.divf %159, %160 : vector<16x128xf32>
    %162 = arith.mulf %155, %161 : vector<16x128xf32>
    %cst_62 = arith.constant 0.000000e+00 : f32
    %163 = vector.broadcast %cst_62 : f32 to vector<16x128xf32>
    %c15_i32 = arith.constant 15 : i32
    %164 = tpu.dynamic_rotate %162 by %c15_i32 dim 0 : vector<16x128xf32>, i32 -> vector<16x128xf32>
    %c0_63 = arith.constant 0 : index
    %c0_64 = arith.constant 0 : index
    %c0_65 = arith.constant 0 : index
    %c0_66 = arith.constant 0 : index
    %165 = vector.load %arg20[%c0_63, %c0_64, %c0_65, %c0_66] : memref<1x31x16x128xf32, #tpu.memory_space<vmem>>, vector<1x1x16x128xf32>
    %166 = vector.shape_cast %165 : vector<1x1x16x128xf32> to vector<16x128xf32>
    %167 = arith.mulf %164, %166 : vector<16x128xf32>
    %168 = arith.addf %163, %167 : vector<16x128xf32>
    %c14_i32 = arith.constant 14 : i32
    %169 = tpu.dynamic_rotate %162 by %c14_i32 dim 0 : vector<16x128xf32>, i32 -> vector<16x128xf32>
    %c0_67 = arith.constant 0 : index
    %c1 = arith.constant 1 : index
    %c0_68 = arith.constant 0 : index
    %c0_69 = arith.constant 0 : index
    %170 = vector.load %arg20[%c0_67, %c1, %c0_68, %c0_69] : memref<1x31x16x128xf32, #tpu.memory_space<vmem>>, vector<1x1x16x128xf32>
    %171 = vector.shape_cast %170 : vector<1x1x16x128xf32> to vector<16x128xf32>
    %172 = arith.mulf %169, %171 : vector<16x128xf32>
    %173 = arith.addf %168, %172 : vector<16x128xf32>
    %c13_i32 = arith.constant 13 : i32
    %174 = tpu.dynamic_rotate %162 by %c13_i32 dim 0 : vector<16x128xf32>, i32 -> vector<16x128xf32>
    %c0_70 = arith.constant 0 : index
    %c2 = arith.constant 2 : index
    %c0_71 = arith.constant 0 : index
    %c0_72 = arith.constant 0 : index
    %175 = vector.load %arg20[%c0_70, %c2, %c0_71, %c0_72] : memref<1x31x16x128xf32, #tpu.memory_space<vmem>>, vector<1x1x16x128xf32>
    %176 = vector.shape_cast %175 : vector<1x1x16x128xf32> to vector<16x128xf32>
    %177 = arith.mulf %174, %176 : vector<16x128xf32>
    %178 = arith.addf %173, %177 : vector<16x128xf32>
    %c12_i32 = arith.constant 12 : i32
    %179 = tpu.dynamic_rotate %162 by %c12_i32 dim 0 : vector<16x128xf32>, i32 -> vector<16x128xf32>
    %c0_73 = arith.constant 0 : index
    %c3 = arith.constant 3 : index
    %c0_74 = arith.constant 0 : index
    %c0_75 = arith.constant 0 : index
    %180 = vector.load %arg20[%c0_73, %c3, %c0_74, %c0_75] : memref<1x31x16x128xf32, #tpu.memory_space<vmem>>, vector<1x1x16x128xf32>
    %181 = vector.shape_cast %180 : vector<1x1x16x128xf32> to vector<16x128xf32>
    %182 = arith.mulf %179, %181 : vector<16x128xf32>
    %183 = arith.addf %178, %182 : vector<16x128xf32>
    %c11_i32 = arith.constant 11 : i32
    %184 = tpu.dynamic_rotate %162 by %c11_i32 dim 0 : vector<16x128xf32>, i32 -> vector<16x128xf32>
    %c0_76 = arith.constant 0 : index
    %c4 = arith.constant 4 : index
    %c0_77 = arith.constant 0 : index
    %c0_78 = arith.constant 0 : index
    %185 = vector.load %arg20[%c0_76, %c4, %c0_77, %c0_78] : memref<1x31x16x128xf32, #tpu.memory_space<vmem>>, vector<1x1x16x128xf32>
    %186 = vector.shape_cast %185 : vector<1x1x16x128xf32> to vector<16x128xf32>
    %187 = arith.mulf %184, %186 : vector<16x128xf32>
    %188 = arith.addf %183, %187 : vector<16x128xf32>
    %c10_i32 = arith.constant 10 : i32
    %189 = tpu.dynamic_rotate %162 by %c10_i32 dim 0 : vector<16x128xf32>, i32 -> vector<16x128xf32>
    %c0_79 = arith.constant 0 : index
    %c5 = arith.constant 5 : index
    %c0_80 = arith.constant 0 : index
    %c0_81 = arith.constant 0 : index
    %190 = vector.load %arg20[%c0_79, %c5, %c0_80, %c0_81] : memref<1x31x16x128xf32, #tpu.memory_space<vmem>>, vector<1x1x16x128xf32>
    %191 = vector.shape_cast %190 : vector<1x1x16x128xf32> to vector<16x128xf32>
    %192 = arith.mulf %189, %191 : vector<16x128xf32>
    %193 = arith.addf %188, %192 : vector<16x128xf32>
    %c9_i32 = arith.constant 9 : i32
    %194 = tpu.dynamic_rotate %162 by %c9_i32 dim 0 : vector<16x128xf32>, i32 -> vector<16x128xf32>
    %c0_82 = arith.constant 0 : index
    %c6 = arith.constant 6 : index
    %c0_83 = arith.constant 0 : index
    %c0_84 = arith.constant 0 : index
    %195 = vector.load %arg20[%c0_82, %c6, %c0_83, %c0_84] : memref<1x31x16x128xf32, #tpu.memory_space<vmem>>, vector<1x1x16x128xf32>
    %196 = vector.shape_cast %195 : vector<1x1x16x128xf32> to vector<16x128xf32>
    %197 = arith.mulf %194, %196 : vector<16x128xf32>
    %198 = arith.addf %193, %197 : vector<16x128xf32>
    %c8_i32 = arith.constant 8 : i32
    %199 = tpu.dynamic_rotate %162 by %c8_i32 dim 0 : vector<16x128xf32>, i32 -> vector<16x128xf32>
    %c0_85 = arith.constant 0 : index
    %c7 = arith.constant 7 : index
    %c0_86 = arith.constant 0 : index
    %c0_87 = arith.constant 0 : index
    %200 = vector.load %arg20[%c0_85, %c7, %c0_86, %c0_87] : memref<1x31x16x128xf32, #tpu.memory_space<vmem>>, vector<1x1x16x128xf32>
    %201 = vector.shape_cast %200 : vector<1x1x16x128xf32> to vector<16x128xf32>
    %202 = arith.mulf %199, %201 : vector<16x128xf32>
    %203 = arith.addf %198, %202 : vector<16x128xf32>
    %c7_i32 = arith.constant 7 : i32
    %204 = tpu.dynamic_rotate %162 by %c7_i32 dim 0 : vector<16x128xf32>, i32 -> vector<16x128xf32>
    %c0_88 = arith.constant 0 : index
    %c8 = arith.constant 8 : index
    %c0_89 = arith.constant 0 : index
    %c0_90 = arith.constant 0 : index
    %205 = vector.load %arg20[%c0_88, %c8, %c0_89, %c0_90] : memref<1x31x16x128xf32, #tpu.memory_space<vmem>>, vector<1x1x16x128xf32>
    %206 = vector.shape_cast %205 : vector<1x1x16x128xf32> to vector<16x128xf32>
    %207 = arith.mulf %204, %206 : vector<16x128xf32>
    %208 = arith.addf %203, %207 : vector<16x128xf32>
    %c6_i32 = arith.constant 6 : i32
    %209 = tpu.dynamic_rotate %162 by %c6_i32 dim 0 : vector<16x128xf32>, i32 -> vector<16x128xf32>
    %c0_91 = arith.constant 0 : index
    %c9 = arith.constant 9 : index
    %c0_92 = arith.constant 0 : index
    %c0_93 = arith.constant 0 : index
    %210 = vector.load %arg20[%c0_91, %c9, %c0_92, %c0_93] : memref<1x31x16x128xf32, #tpu.memory_space<vmem>>, vector<1x1x16x128xf32>
    %211 = vector.shape_cast %210 : vector<1x1x16x128xf32> to vector<16x128xf32>
    %212 = arith.mulf %209, %211 : vector<16x128xf32>
    %213 = arith.addf %208, %212 : vector<16x128xf32>
    %c5_i32 = arith.constant 5 : i32
    %214 = tpu.dynamic_rotate %162 by %c5_i32 dim 0 : vector<16x128xf32>, i32 -> vector<16x128xf32>
    %c0_94 = arith.constant 0 : index
    %c10 = arith.constant 10 : index
    %c0_95 = arith.constant 0 : index
    %c0_96 = arith.constant 0 : index
    %215 = vector.load %arg20[%c0_94, %c10, %c0_95, %c0_96] : memref<1x31x16x128xf32, #tpu.memory_space<vmem>>, vector<1x1x16x128xf32>
    %216 = vector.shape_cast %215 : vector<1x1x16x128xf32> to vector<16x128xf32>
    %217 = arith.mulf %214, %216 : vector<16x128xf32>
    %218 = arith.addf %213, %217 : vector<16x128xf32>
    %c4_i32 = arith.constant 4 : i32
    %219 = tpu.dynamic_rotate %162 by %c4_i32 dim 0 : vector<16x128xf32>, i32 -> vector<16x128xf32>
    %c0_97 = arith.constant 0 : index
    %c11 = arith.constant 11 : index
    %c0_98 = arith.constant 0 : index
    %c0_99 = arith.constant 0 : index
    %220 = vector.load %arg20[%c0_97, %c11, %c0_98, %c0_99] : memref<1x31x16x128xf32, #tpu.memory_space<vmem>>, vector<1x1x16x128xf32>
    %221 = vector.shape_cast %220 : vector<1x1x16x128xf32> to vector<16x128xf32>
    %222 = arith.mulf %219, %221 : vector<16x128xf32>
    %223 = arith.addf %218, %222 : vector<16x128xf32>
    %c3_i32 = arith.constant 3 : i32
    %224 = tpu.dynamic_rotate %162 by %c3_i32 dim 0 : vector<16x128xf32>, i32 -> vector<16x128xf32>
    %c0_100 = arith.constant 0 : index
    %c12 = arith.constant 12 : index
    %c0_101 = arith.constant 0 : index
    %c0_102 = arith.constant 0 : index
    %225 = vector.load %arg20[%c0_100, %c12, %c0_101, %c0_102] : memref<1x31x16x128xf32, #tpu.memory_space<vmem>>, vector<1x1x16x128xf32>
    %226 = vector.shape_cast %225 : vector<1x1x16x128xf32> to vector<16x128xf32>
    %227 = arith.mulf %224, %226 : vector<16x128xf32>
    %228 = arith.addf %223, %227 : vector<16x128xf32>
    %c2_i32 = arith.constant 2 : i32
    %229 = tpu.dynamic_rotate %162 by %c2_i32 dim 0 : vector<16x128xf32>, i32 -> vector<16x128xf32>
    %c0_103 = arith.constant 0 : index
    %c13 = arith.constant 13 : index
    %c0_104 = arith.constant 0 : index
    %c0_105 = arith.constant 0 : index
    %230 = vector.load %arg20[%c0_103, %c13, %c0_104, %c0_105] : memref<1x31x16x128xf32, #tpu.memory_space<vmem>>, vector<1x1x16x128xf32>
    %231 = vector.shape_cast %230 : vector<1x1x16x128xf32> to vector<16x128xf32>
    %232 = arith.mulf %229, %231 : vector<16x128xf32>
    %233 = arith.addf %228, %232 : vector<16x128xf32>
    %c1_i32 = arith.constant 1 : i32
    %234 = tpu.dynamic_rotate %162 by %c1_i32 dim 0 : vector<16x128xf32>, i32 -> vector<16x128xf32>
    %c0_106 = arith.constant 0 : index
    %c14 = arith.constant 14 : index
    %c0_107 = arith.constant 0 : index
    %c0_108 = arith.constant 0 : index
    %235 = vector.load %arg20[%c0_106, %c14, %c0_107, %c0_108] : memref<1x31x16x128xf32, #tpu.memory_space<vmem>>, vector<1x1x16x128xf32>
    %236 = vector.shape_cast %235 : vector<1x1x16x128xf32> to vector<16x128xf32>
    %237 = arith.mulf %234, %236 : vector<16x128xf32>
    %238 = arith.addf %233, %237 : vector<16x128xf32>
    %c0_109 = arith.constant 0 : index
    %c15 = arith.constant 15 : index
    %c0_110 = arith.constant 0 : index
    %c0_111 = arith.constant 0 : index
    %239 = vector.load %arg20[%c0_109, %c15, %c0_110, %c0_111] : memref<1x31x16x128xf32, #tpu.memory_space<vmem>>, vector<1x1x16x128xf32>
    %240 = vector.shape_cast %239 : vector<1x1x16x128xf32> to vector<16x128xf32>
    %241 = arith.mulf %162, %240 : vector<16x128xf32>
    %242 = arith.addf %238, %241 : vector<16x128xf32>
    %c15_i32_112 = arith.constant 15 : i32
    %243 = tpu.dynamic_rotate %162 by %c15_i32_112 dim 0 : vector<16x128xf32>, i32 -> vector<16x128xf32>
    %c0_113 = arith.constant 0 : index
    %c16 = arith.constant 16 : index
    %c0_114 = arith.constant 0 : index
    %c0_115 = arith.constant 0 : index
    %244 = vector.load %arg20[%c0_113, %c16, %c0_114, %c0_115] : memref<1x31x16x128xf32, #tpu.memory_space<vmem>>, vector<1x1x16x128xf32>
    %245 = vector.shape_cast %244 : vector<1x1x16x128xf32> to vector<16x128xf32>
    %246 = arith.mulf %243, %245 : vector<16x128xf32>
    %247 = arith.addf %242, %246 : vector<16x128xf32>
    %c14_i32_116 = arith.constant 14 : i32
    %248 = tpu.dynamic_rotate %162 by %c14_i32_116 dim 0 : vector<16x128xf32>, i32 -> vector<16x128xf32>
    %c0_117 = arith.constant 0 : index
    %c17 = arith.constant 17 : index
    %c0_118 = arith.constant 0 : index
    %c0_119 = arith.constant 0 : index
    %249 = vector.load %arg20[%c0_117, %c17, %c0_118, %c0_119] : memref<1x31x16x128xf32, #tpu.memory_space<vmem>>, vector<1x1x16x128xf32>
    %250 = vector.shape_cast %249 : vector<1x1x16x128xf32> to vector<16x128xf32>
    %251 = arith.mulf %248, %250 : vector<16x128xf32>
    %252 = arith.addf %247, %251 : vector<16x128xf32>
    %c13_i32_120 = arith.constant 13 : i32
    %253 = tpu.dynamic_rotate %162 by %c13_i32_120 dim 0 : vector<16x128xf32>, i32 -> vector<16x128xf32>
    %c0_121 = arith.constant 0 : index
    %c18 = arith.constant 18 : index
    %c0_122 = arith.constant 0 : index
    %c0_123 = arith.constant 0 : index
    %254 = vector.load %arg20[%c0_121, %c18, %c0_122, %c0_123] : memref<1x31x16x128xf32, #tpu.memory_space<vmem>>, vector<1x1x16x128xf32>
    %255 = vector.shape_cast %254 : vector<1x1x16x128xf32> to vector<16x128xf32>
    %256 = arith.mulf %253, %255 : vector<16x128xf32>
    %257 = arith.addf %252, %256 : vector<16x128xf32>
    %c12_i32_124 = arith.constant 12 : i32
    %258 = tpu.dynamic_rotate %162 by %c12_i32_124 dim 0 : vector<16x128xf32>, i32 -> vector<16x128xf32>
    %c0_125 = arith.constant 0 : index
    %c19 = arith.constant 19 : index
    %c0_126 = arith.constant 0 : index
    %c0_127 = arith.constant 0 : index
    %259 = vector.load %arg20[%c0_125, %c19, %c0_126, %c0_127] : memref<1x31x16x128xf32, #tpu.memory_space<vmem>>, vector<1x1x16x128xf32>
    %260 = vector.shape_cast %259 : vector<1x1x16x128xf32> to vector<16x128xf32>
    %261 = arith.mulf %258, %260 : vector<16x128xf32>
    %262 = arith.addf %257, %261 : vector<16x128xf32>
    %c11_i32_128 = arith.constant 11 : i32
    %263 = tpu.dynamic_rotate %162 by %c11_i32_128 dim 0 : vector<16x128xf32>, i32 -> vector<16x128xf32>
    %c0_129 = arith.constant 0 : index
    %c20 = arith.constant 20 : index
    %c0_130 = arith.constant 0 : index
    %c0_131 = arith.constant 0 : index
    %264 = vector.load %arg20[%c0_129, %c20, %c0_130, %c0_131] : memref<1x31x16x128xf32, #tpu.memory_space<vmem>>, vector<1x1x16x128xf32>
    %265 = vector.shape_cast %264 : vector<1x1x16x128xf32> to vector<16x128xf32>
    %266 = arith.mulf %263, %265 : vector<16x128xf32>
    %267 = arith.addf %262, %266 : vector<16x128xf32>
    %c10_i32_132 = arith.constant 10 : i32
    %268 = tpu.dynamic_rotate %162 by %c10_i32_132 dim 0 : vector<16x128xf32>, i32 -> vector<16x128xf32>
    %c0_133 = arith.constant 0 : index
    %c21 = arith.constant 21 : index
    %c0_134 = arith.constant 0 : index
    %c0_135 = arith.constant 0 : index
    %269 = vector.load %arg20[%c0_133, %c21, %c0_134, %c0_135] : memref<1x31x16x128xf32, #tpu.memory_space<vmem>>, vector<1x1x16x128xf32>
    %270 = vector.shape_cast %269 : vector<1x1x16x128xf32> to vector<16x128xf32>
    %271 = arith.mulf %268, %270 : vector<16x128xf32>
    %272 = arith.addf %267, %271 : vector<16x128xf32>
    %c9_i32_136 = arith.constant 9 : i32
    %273 = tpu.dynamic_rotate %162 by %c9_i32_136 dim 0 : vector<16x128xf32>, i32 -> vector<16x128xf32>
    %c0_137 = arith.constant 0 : index
    %c22 = arith.constant 22 : index
    %c0_138 = arith.constant 0 : index
    %c0_139 = arith.constant 0 : index
    %274 = vector.load %arg20[%c0_137, %c22, %c0_138, %c0_139] : memref<1x31x16x128xf32, #tpu.memory_space<vmem>>, vector<1x1x16x128xf32>
    %275 = vector.shape_cast %274 : vector<1x1x16x128xf32> to vector<16x128xf32>
    %276 = arith.mulf %273, %275 : vector<16x128xf32>
    %277 = arith.addf %272, %276 : vector<16x128xf32>
    %c8_i32_140 = arith.constant 8 : i32
    %278 = tpu.dynamic_rotate %162 by %c8_i32_140 dim 0 : vector<16x128xf32>, i32 -> vector<16x128xf32>
    %c0_141 = arith.constant 0 : index
    %c23 = arith.constant 23 : index
    %c0_142 = arith.constant 0 : index
    %c0_143 = arith.constant 0 : index
    %279 = vector.load %arg20[%c0_141, %c23, %c0_142, %c0_143] : memref<1x31x16x128xf32, #tpu.memory_space<vmem>>, vector<1x1x16x128xf32>
    %280 = vector.shape_cast %279 : vector<1x1x16x128xf32> to vector<16x128xf32>
    %281 = arith.mulf %278, %280 : vector<16x128xf32>
    %282 = arith.addf %277, %281 : vector<16x128xf32>
    %c7_i32_144 = arith.constant 7 : i32
    %283 = tpu.dynamic_rotate %162 by %c7_i32_144 dim 0 : vector<16x128xf32>, i32 -> vector<16x128xf32>
    %c0_145 = arith.constant 0 : index
    %c24 = arith.constant 24 : index
    %c0_146 = arith.constant 0 : index
    %c0_147 = arith.constant 0 : index
    %284 = vector.load %arg20[%c0_145, %c24, %c0_146, %c0_147] : memref<1x31x16x128xf32, #tpu.memory_space<vmem>>, vector<1x1x16x128xf32>
    %285 = vector.shape_cast %284 : vector<1x1x16x128xf32> to vector<16x128xf32>
    %286 = arith.mulf %283, %285 : vector<16x128xf32>
    %287 = arith.addf %282, %286 : vector<16x128xf32>
    %c6_i32_148 = arith.constant 6 : i32
    %288 = tpu.dynamic_rotate %162 by %c6_i32_148 dim 0 : vector<16x128xf32>, i32 -> vector<16x128xf32>
    %c0_149 = arith.constant 0 : index
    %c25 = arith.constant 25 : index
    %c0_150 = arith.constant 0 : index
    %c0_151 = arith.constant 0 : index
    %289 = vector.load %arg20[%c0_149, %c25, %c0_150, %c0_151] : memref<1x31x16x128xf32, #tpu.memory_space<vmem>>, vector<1x1x16x128xf32>
    %290 = vector.shape_cast %289 : vector<1x1x16x128xf32> to vector<16x128xf32>
    %291 = arith.mulf %288, %290 : vector<16x128xf32>
    %292 = arith.addf %287, %291 : vector<16x128xf32>
    %c5_i32_152 = arith.constant 5 : i32
    %293 = tpu.dynamic_rotate %162 by %c5_i32_152 dim 0 : vector<16x128xf32>, i32 -> vector<16x128xf32>
    %c0_153 = arith.constant 0 : index
    %c26 = arith.constant 26 : index
    %c0_154 = arith.constant 0 : index
    %c0_155 = arith.constant 0 : index
    %294 = vector.load %arg20[%c0_153, %c26, %c0_154, %c0_155] : memref<1x31x16x128xf32, #tpu.memory_space<vmem>>, vector<1x1x16x128xf32>
    %295 = vector.shape_cast %294 : vector<1x1x16x128xf32> to vector<16x128xf32>
    %296 = arith.mulf %293, %295 : vector<16x128xf32>
    %297 = arith.addf %292, %296 : vector<16x128xf32>
    %c4_i32_156 = arith.constant 4 : i32
    %298 = tpu.dynamic_rotate %162 by %c4_i32_156 dim 0 : vector<16x128xf32>, i32 -> vector<16x128xf32>
    %c0_157 = arith.constant 0 : index
    %c27 = arith.constant 27 : index
    %c0_158 = arith.constant 0 : index
    %c0_159 = arith.constant 0 : index
    %299 = vector.load %arg20[%c0_157, %c27, %c0_158, %c0_159] : memref<1x31x16x128xf32, #tpu.memory_space<vmem>>, vector<1x1x16x128xf32>
    %300 = vector.shape_cast %299 : vector<1x1x16x128xf32> to vector<16x128xf32>
    %301 = arith.mulf %298, %300 : vector<16x128xf32>
    %302 = arith.addf %297, %301 : vector<16x128xf32>
    %c3_i32_160 = arith.constant 3 : i32
    %303 = tpu.dynamic_rotate %162 by %c3_i32_160 dim 0 : vector<16x128xf32>, i32 -> vector<16x128xf32>
    %c0_161 = arith.constant 0 : index
    %c28 = arith.constant 28 : index
    %c0_162 = arith.constant 0 : index
    %c0_163 = arith.constant 0 : index
    %304 = vector.load %arg20[%c0_161, %c28, %c0_162, %c0_163] : memref<1x31x16x128xf32, #tpu.memory_space<vmem>>, vector<1x1x16x128xf32>
    %305 = vector.shape_cast %304 : vector<1x1x16x128xf32> to vector<16x128xf32>
    %306 = arith.mulf %303, %305 : vector<16x128xf32>
    %307 = arith.addf %302, %306 : vector<16x128xf32>
    %c2_i32_164 = arith.constant 2 : i32
    %308 = tpu.dynamic_rotate %162 by %c2_i32_164 dim 0 : vector<16x128xf32>, i32 -> vector<16x128xf32>
    %c0_165 = arith.constant 0 : index
    %c29 = arith.constant 29 : index
    %c0_166 = arith.constant 0 : index
    %c0_167 = arith.constant 0 : index
    %309 = vector.load %arg20[%c0_165, %c29, %c0_166, %c0_167] : memref<1x31x16x128xf32, #tpu.memory_space<vmem>>, vector<1x1x16x128xf32>
    %310 = vector.shape_cast %309 : vector<1x1x16x128xf32> to vector<16x128xf32>
    %311 = arith.mulf %308, %310 : vector<16x128xf32>
    %312 = arith.addf %307, %311 : vector<16x128xf32>
    %c1_i32_168 = arith.constant 1 : i32
    %313 = tpu.dynamic_rotate %162 by %c1_i32_168 dim 0 : vector<16x128xf32>, i32 -> vector<16x128xf32>
    %c0_169 = arith.constant 0 : index
    %c30 = arith.constant 30 : index
    %c0_170 = arith.constant 0 : index
    %c0_171 = arith.constant 0 : index
    %314 = vector.load %arg20[%c0_169, %c30, %c0_170, %c0_171] : memref<1x31x16x128xf32, #tpu.memory_space<vmem>>, vector<1x1x16x128xf32>
    %315 = vector.shape_cast %314 : vector<1x1x16x128xf32> to vector<16x128xf32>
    %316 = arith.mulf %313, %315 : vector<16x128xf32>
    %317 = arith.addf %312, %316 : vector<16x128xf32>
    %c0_172 = arith.constant 0 : index
    %c0_173 = arith.constant 0 : index
    %c0_174 = arith.constant 0 : index
    %318 = vector.load %arg21[%c0_172, %c0_173, %c0_174] : memref<1x1x128xf32, #tpu.memory_space<vmem>>, vector<1x1x128xf32>
    %319 = vector.shape_cast %318 : vector<1x1x128xf32> to vector<1x128xf32>
    %320 = vector.broadcast %319 : vector<1x128xf32> to vector<16x128xf32>
    %321 = arith.addf %317, %320 : vector<16x128xf32>
    %322 = arith.negf %321 : vector<16x128xf32>
    %323 = math.exp %322 : vector<16x128xf32>
    %cst_175 = arith.constant 1.000000e+00 : f32
    %324 = vector.broadcast %cst_175 : f32 to vector<16x128xf32>
    %325 = arith.addf %324, %323 : vector<16x128xf32>
    %326 = arith.divf %324, %325 : vector<16x128xf32>
    %327 = arith.mulf %321, %326 : vector<16x128xf32>
    %328 = arith.truncf %327 : vector<16x128xf32> to vector<16x128xbf16>
    %c0_176 = arith.constant 0 : index
    %c0_177 = arith.constant 0 : index
    %c0_178 = arith.constant 0 : index
    %329 = vector.load %arg22[%c0_176, %c0_177, %c0_178] : memref<1x128x64xbf16, #tpu.memory_space<vmem>>, vector<1x128x64xbf16>
    %330 = vector.shape_cast %329 : vector<1x128x64xbf16> to vector<128x64xbf16>
    %cst_179 = arith.constant dense<0.000000e+00> : vector<16x64xf32>
    %331 = tpu.matmul %328, %330, %cst_179 {dimension_numbers = #tpu.dot_dimension_numbers<[1], [0], [0], [1], [0, 0, 1, 1], [], []>} : vector<16x128xbf16>, vector<128x64xbf16>, vector<16x64xf32> -> vector<16x64xf32>
    %332 = arith.addf %118, %331 : vector<16x64xf32>
    %c0_180 = arith.constant 0 : index
    %c0_181 = arith.constant 0 : index
    %c0_182 = arith.constant 0 : index
    %333 = vector.load %arg23[%c0_180, %c0_181, %c0_182] : memref<1x1x64xf32, #tpu.memory_space<vmem>>, vector<1x1x64xf32>
    %334 = vector.shape_cast %333 : vector<1x1x64xf32> to vector<1x64xf32>
    %335 = vector.broadcast %334 : vector<1x64xf32> to vector<16x64xf32>
    %336 = arith.addf %332, %335 : vector<16x64xf32>
    %c0_183 = arith.constant 0 : index
    %c0_184 = arith.constant 0 : index
    %337 = vector.load %arg30[%c0_183, %c0_184] : memref<16x64xf32, #tpu.memory_space<vmem>>, vector<16x64xf32>
    tpu.vector_store %arg30[%c0_183, %c0_184], %336 {strides = array<i32>} : memref<16x64xf32, #tpu.memory_space<vmem>>, vector<16x64xf32>,
    %c1_i32_185 = arith.constant 1 : i32
    %338 = arith.cmpi eq, %arg1, %c1_i32_185 : i32
    %339 = arith.extui %338 : i1 to i32
    %c0_i32_186 = arith.constant 0 : i32
    %340 = arith.cmpi ne, %339, %c0_i32_186 : i32
    scf.if %340 {
      %c0_187 = arith.constant 0 : index
      %c0_188 = arith.constant 0 : index
      %341 = vector.load %arg24[%c0_187, %c0_188] : memref<1x64xf32, #tpu.memory_space<vmem>>, vector<1x64xf32>
      %c0_189 = arith.constant 0 : index
      %c0_190 = arith.constant 0 : index
      %342 = vector.load %arg25[%c0_189, %c0_190] : memref<1x64xf32, #tpu.memory_space<vmem>>, vector<1x64xf32>
      %cst_191 = arith.constant dense<0.000000e+00> : vector<16xf32>
      %343 = vector.multi_reduction <add>, %336, %cst_191 [1] : vector<16x64xf32> to vector<16xf32>
      %344 = vector.shape_cast %343 : vector<16xf32> to vector<16x1xf32>
      %cst_192 = arith.constant 6.400000e+01 : f32
      %345 = vector.broadcast %cst_192 : f32 to vector<16x1xf32>
      %346 = arith.divf %344, %345 : vector<16x1xf32>
      %347 = vector.broadcast %346 : vector<16x1xf32> to vector<16x64xf32>
      %348 = arith.subf %336, %347 : vector<16x64xf32>
      %349 = vector.broadcast %346 : vector<16x1xf32> to vector<16x64xf32>
      %350 = arith.subf %336, %349 : vector<16x64xf32>
      %351 = arith.mulf %348, %350 : vector<16x64xf32>
      %cst_193 = arith.constant dense<0.000000e+00> : vector<16xf32>
      %352 = vector.multi_reduction <add>, %351, %cst_193 [1] : vector<16x64xf32> to vector<16xf32>
      %353 = vector.shape_cast %352 : vector<16xf32> to vector<16x1xf32>
      %cst_194 = arith.constant 6.400000e+01 : f32
      %354 = vector.broadcast %cst_194 : f32 to vector<16x1xf32>
      %355 = arith.divf %353, %354 : vector<16x1xf32>
      %356 = vector.broadcast %346 : vector<16x1xf32> to vector<16x64xf32>
      %357 = arith.subf %336, %356 : vector<16x64xf32>
      %cst_195 = arith.constant 9.99999974E-6 : f32
      %358 = vector.broadcast %cst_195 : f32 to vector<16x1xf32>
      %359 = arith.addf %355, %358 : vector<16x1xf32>
      %360 = math.rsqrt %359 : vector<16x1xf32>
      %361 = vector.broadcast %360 : vector<16x1xf32> to vector<16x64xf32>
      %362 = arith.mulf %357, %361 : vector<16x64xf32>
      %363 = vector.broadcast %341 : vector<1x64xf32> to vector<16x64xf32>
      %364 = arith.mulf %362, %363 : vector<16x64xf32>
      %365 = vector.broadcast %342 : vector<1x64xf32> to vector<16x64xf32>
      %366 = arith.addf %364, %365 : vector<16x64xf32>
      %c0_196 = arith.constant 0 : index
      %c0_197 = arith.constant 0 : index
      %367 = vector.load %arg26[%c0_196, %c0_197] : memref<64x128xbf16, #tpu.memory_space<vmem>>, vector<64x128xbf16>
      %368 = arith.truncf %366 : vector<16x64xf32> to vector<16x64xbf16>
      %cst_198 = arith.constant dense<0.000000e+00> : vector<16x128xf32>
      %369 = tpu.matmul %368, %367, %cst_198 {dimension_numbers = #tpu.dot_dimension_numbers<[1], [0], [0], [1], [0, 0, 1, 1], [], []>} : vector<16x64xbf16>, vector<64x128xbf16>, vector<16x128xf32> -> vector<16x128xf32>
      %c0_199 = arith.constant 0 : index
      %c0_200 = arith.constant 0 : index
      %370 = vector.load %arg27[%c0_199, %c0_200] : memref<1x128xf32, #tpu.memory_space<vmem>>, vector<1x128xf32>
      %371 = vector.broadcast %370 : vector<1x128xf32> to vector<16x128xf32>
      %372 = arith.addf %369, %371 : vector<16x128xf32>
      %373 = arith.negf %372 : vector<16x128xf32>
      %374 = math.exp %373 : vector<16x128xf32>
      %cst_201 = arith.constant 1.000000e+00 : f32
      %375 = vector.broadcast %cst_201 : f32 to vector<16x128xf32>
      %376 = arith.addf %375, %374 : vector<16x128xf32>
      %377 = arith.divf %375, %376 : vector<16x128xf32>
      %c0_202 = arith.constant 0 : index
      %c0_203 = arith.constant 0 : index
      %378 = vector.load %arg28[%c0_202, %c0_203] : memref<1x128xf32, #tpu.memory_space<vmem>>, vector<1x128xf32>
      %cst_204 = arith.constant dense<0xFF800000> : vector<16xf32>
      %379 = vector.multi_reduction <maximumf>, %377, %cst_204 [1] : vector<16x128xf32> to vector<16xf32>
      %380 = vector.shape_cast %379 : vector<16xf32> to vector<16x1xf32>
      %381 = tpu.iota {dimensions = array<i32: 1>} : vector<16x128xi32>
      %382 = vector.broadcast %380 : vector<16x1xf32> to vector<16x128xf32>
      %383 = arith.cmpf oeq, %377, %382 : vector<16x128xf32>
      %c128_i32 = arith.constant 128 : i32
      %384 = vector.broadcast %c128_i32 : i32 to vector<16x128xi32>
      %385 = arith.select %383, %381, %384 : vector<16x128xi1>, vector<16x128xi32>
      %cst_205 = arith.constant dense<2147483647> : vector<16xi32>
      %386 = vector.multi_reduction <minsi>, %385, %cst_205 [1] : vector<16x128xi32> to vector<16xi32>
      %387 = vector.shape_cast %386 : vector<16xi32> to vector<16x1xi32>
      %c4_i32_206 = arith.constant 4 : i32
      %388 = vector.broadcast %c4_i32_206 : i32 to vector<16x1xi32>
      %389 = arith.subi %387, %388 : vector<16x1xi32>
      %390 = vector.broadcast %389 : vector<16x1xi32> to vector<16x128xi32>
      %391 = arith.cmpi sge, %381, %390 : vector<16x128xi32>
      %c4_i32_207 = arith.constant 4 : i32
      %392 = vector.broadcast %c4_i32_207 : i32 to vector<16x1xi32>
      %393 = arith.addi %387, %392 : vector<16x1xi32>
      %394 = vector.broadcast %393 : vector<16x1xi32> to vector<16x128xi32>
      %395 = arith.cmpi sle, %381, %394 : vector<16x128xi32>
      %396 = arith.andi %391, %395 : vector<16x128xi1>
      %397 = arith.extui %396 : vector<16x128xi1> to vector<16x128xi32>
      %398 = arith.sitofp %397 : vector<16x128xi32> to vector<16x128xf32>
      %c0_i32_208 = arith.constant 0 : i32
      %399 = vector.broadcast %c0_i32_208 : i32 to vector<16x128xi32>
      %400 = arith.cmpi eq, %381, %399 : vector<16x128xi32>
      %401 = arith.extui %400 : vector<16x128xi1> to vector<16x128xi32>
      %402 = arith.sitofp %401 : vector<16x128xi32> to vector<16x128xf32>
      %c4_i32_209 = arith.constant 4 : i32
      %403 = vector.broadcast %c4_i32_209 : i32 to vector<16x1xi32>
      %404 = arith.subi %403, %387 : vector<16x1xi32>
      %c0_i32_210 = arith.constant 0 : i32
      %405 = vector.broadcast %c0_i32_210 : i32 to vector<16x1xi32>
      %406 = arith.maxsi %404, %405 : vector<16x1xi32>
      %407 = arith.sitofp %406 : vector<16x1xi32> to vector<16x1xf32>
      %408 = vector.broadcast %407 : vector<16x1xf32> to vector<16x128xf32>
      %409 = arith.mulf %402, %408 : vector<16x128xf32>
      %410 = arith.addf %398, %409 : vector<16x128xf32>
      %c127_i32 = arith.constant 127 : i32
      %411 = vector.broadcast %c127_i32 : i32 to vector<16x128xi32>
      %412 = arith.cmpi eq, %381, %411 : vector<16x128xi32>
      %413 = arith.extui %412 : vector<16x128xi1> to vector<16x128xi32>
      %414 = arith.sitofp %413 : vector<16x128xi32> to vector<16x128xf32>
      %c123_i32 = arith.constant 123 : i32
      %415 = vector.broadcast %c123_i32 : i32 to vector<16x1xi32>
      %416 = arith.subi %387, %415 : vector<16x1xi32>
      %c0_i32_211 = arith.constant 0 : i32
      %417 = vector.broadcast %c0_i32_211 : i32 to vector<16x1xi32>
      %418 = arith.maxsi %416, %417 : vector<16x1xi32>
      %419 = arith.sitofp %418 : vector<16x1xi32> to vector<16x1xf32>
      %420 = vector.broadcast %419 : vector<16x1xf32> to vector<16x128xf32>
      %421 = arith.mulf %414, %420 : vector<16x128xf32>
      %422 = arith.addf %410, %421 : vector<16x128xf32>
      %423 = vector.broadcast %378 : vector<1x128xf32> to vector<16x128xf32>
      %424 = arith.mulf %423, %422 : vector<16x128xf32>
      %425 = arith.mulf %424, %377 : vector<16x128xf32>
      %cst_212 = arith.constant dense<0.000000e+00> : vector<16xf32>
      %426 = vector.multi_reduction <add>, %425, %cst_212 [1] : vector<16x128xf32> to vector<16xf32>
      %427 = vector.shape_cast %426 : vector<16xf32> to vector<16x1xf32>
      %428 = arith.mulf %422, %377 : vector<16x128xf32>
      %cst_213 = arith.constant dense<0.000000e+00> : vector<16xf32>
      %429 = vector.multi_reduction <add>, %428, %cst_213 [1] : vector<16x128xf32> to vector<16xf32>
      %430 = vector.shape_cast %429 : vector<16xf32> to vector<16x1xf32>
      %431 = arith.divf %427, %430 : vector<16x1xf32>
      %cst_214 = arith.constant 6.000000e-03 : f32
      %432 = vector.broadcast %cst_214 : f32 to vector<16x1xf32>
      %433 = arith.cmpf ogt, %380, %432 : vector<16x1xf32>
      %cst_215 = arith.constant 0xFF800000 : f32
      %434 = vector.broadcast %cst_215 : f32 to vector<16x1xf32>
      %435 = arith.select %433, %431, %434 : vector<16x1xi1>, vector<16x1xf32>
      %cst_216 = arith.constant 5.77622675E-4 : f32
      %436 = vector.broadcast %cst_216 : f32 to vector<16x1xf32>
      %437 = arith.mulf %435, %436 : vector<16x1xf32>
      %438 = math.exp %437 : vector<16x1xf32>
      %cst_217 = arith.constant 1.000000e+01 : f32
      %439 = vector.broadcast %cst_217 : f32 to vector<16x1xf32>
      %440 = arith.mulf %439, %438 : vector<16x1xf32>
      %441 = vector.shape_cast %440 : vector<16x1xf32> to vector<16x1xf32>
      %442 = vector.broadcast %441 : vector<16x1xf32> to vector<16x128xf32>
      %c0_218 = arith.constant 0 : index
      %c0_219 = arith.constant 0 : index
      %443 = vector.load %arg29[%c0_218, %c0_219] : memref<16x128xf32, #tpu.memory_space<vmem>>, vector<16x128xf32>
      tpu.vector_store %arg29[%c0_218, %c0_219], %442 {strides = array<i32>} : memref<16x128xf32, #tpu.memory_space<vmem>>, vector<16x128xf32>,
    } else {
    }
    return
  }
  func.func @transform_0(%arg0: i32, %arg1: i32) -> (i32, i32) {
    %c0_i32 = arith.constant 0 : i32
    %c0_i32_0 = arith.constant 0 : i32
    return %arg0, %c0_i32 : i32, i32
  }
  func.func @transform_1(%arg0: i32, %arg1: i32) -> (i32, i32) {
    %c0_i32 = arith.constant 0 : i32
    %c0_i32_0 = arith.constant 0 : i32
    %c0_i32_1 = arith.constant 0 : i32
    return %c0_i32, %c0_i32_0 : i32, i32
  }
  func.func @transform_2(%arg0: i32, %arg1: i32) -> (i32, i32) {
    %c0_i32 = arith.constant 0 : i32
    %c0_i32_0 = arith.constant 0 : i32
    %c0_i32_1 = arith.constant 0 : i32
    return %c0_i32, %c0_i32_0 : i32, i32
  }
  func.func @transform_3(%arg0: i32, %arg1: i32) -> (i32, i32) {
    %c0_i32 = arith.constant 0 : i32
    %c0_i32_0 = arith.constant 0 : i32
    %c0_i32_1 = arith.constant 0 : i32
    return %c0_i32, %c0_i32_0 : i32, i32
  }
  func.func @transform_4(%arg0: i32, %arg1: i32) -> (i32, i32) {
    %c0_i32 = arith.constant 0 : i32
    %c0_i32_0 = arith.constant 0 : i32
    %c0_i32_1 = arith.constant 0 : i32
    return %c0_i32, %c0_i32_0 : i32, i32
  }
  func.func @transform_5(%arg0: i32, %arg1: i32) -> (i32, i32) {
    %c0_i32 = arith.constant 0 : i32
    %c0_i32_0 = arith.constant 0 : i32
    %c0_i32_1 = arith.constant 0 : i32
    return %c0_i32, %c0_i32_0 : i32, i32
  }
  func.func @transform_6(%arg0: i32, %arg1: i32) -> (i32, i32, i32) {
    %c0_i32 = arith.constant 0 : i32
    %c0_i32_0 = arith.constant 0 : i32
    %c0_i32_1 = arith.constant 0 : i32
    %c0_i32_2 = arith.constant 0 : i32
    return %c0_i32, %c0_i32_0, %c0_i32_1 : i32, i32, i32
  }
  func.func @transform_7(%arg0: i32, %arg1: i32) -> (i32, i32) {
    %c0_i32 = arith.constant 0 : i32
    %c0_i32_0 = arith.constant 0 : i32
    %c0_i32_1 = arith.constant 0 : i32
    return %c0_i32, %c0_i32_0 : i32, i32
  }
  func.func @transform_8(%arg0: i32, %arg1: i32) -> (i32, i32, i32) {
    %c0_i32 = arith.constant 0 : i32
    %c0_i32_0 = arith.constant 0 : i32
    %c0_i32_1 = arith.constant 0 : i32
    %c0_i32_2 = arith.constant 0 : i32
    return %c0_i32, %c0_i32_0, %c0_i32_1 : i32, i32, i32
  }
  func.func @transform_9(%arg0: i32, %arg1: i32) -> (i32, i32, i32) {
    %c0_i32 = arith.constant 0 : i32
    %c0_i32_0 = arith.constant 0 : i32
    %c0_i32_1 = arith.constant 0 : i32
    return %arg1, %c0_i32, %c0_i32_0 : i32, i32, i32
  }
  func.func @transform_10(%arg0: i32, %arg1: i32) -> (i32, i32, i32) {
    %c0_i32 = arith.constant 0 : i32
    %c0_i32_0 = arith.constant 0 : i32
    %c0_i32_1 = arith.constant 0 : i32
    return %arg1, %c0_i32, %c0_i32_0 : i32, i32, i32
  }
  func.func @transform_11(%arg0: i32, %arg1: i32) -> (i32, i32, i32) {
    %c0_i32 = arith.constant 0 : i32
    %c0_i32_0 = arith.constant 0 : i32
    %c0_i32_1 = arith.constant 0 : i32
    return %arg1, %c0_i32, %c0_i32_0 : i32, i32, i32
  }
  func.func @transform_12(%arg0: i32, %arg1: i32) -> (i32, i32, i32) {
    %c0_i32 = arith.constant 0 : i32
    %c0_i32_0 = arith.constant 0 : i32
    %c0_i32_1 = arith.constant 0 : i32
    return %arg1, %c0_i32, %c0_i32_0 : i32, i32, i32
  }
  func.func @transform_13(%arg0: i32, %arg1: i32) -> (i32, i32, i32) {
    %c0_i32 = arith.constant 0 : i32
    %c0_i32_0 = arith.constant 0 : i32
    %c0_i32_1 = arith.constant 0 : i32
    return %arg1, %c0_i32, %c0_i32_0 : i32, i32, i32
  }
  func.func @transform_14(%arg0: i32, %arg1: i32) -> (i32, i32, i32) {
    %c0_i32 = arith.constant 0 : i32
    %c0_i32_0 = arith.constant 0 : i32
    %c0_i32_1 = arith.constant 0 : i32
    return %arg1, %c0_i32, %c0_i32_0 : i32, i32, i32
  }
  func.func @transform_15(%arg0: i32, %arg1: i32) -> (i32, i32, i32) {
    %c0_i32 = arith.constant 0 : i32
    %c0_i32_0 = arith.constant 0 : i32
    %c0_i32_1 = arith.constant 0 : i32
    return %arg1, %c0_i32, %c0_i32_0 : i32, i32, i32
  }
  func.func @transform_16(%arg0: i32, %arg1: i32) -> (i32, i32, i32) {
    %c0_i32 = arith.constant 0 : i32
    %c0_i32_0 = arith.constant 0 : i32
    %c0_i32_1 = arith.constant 0 : i32
    return %arg1, %c0_i32, %c0_i32_0 : i32, i32, i32
  }
  func.func @transform_17(%arg0: i32, %arg1: i32) -> (i32, i32, i32) {
    %c0_i32 = arith.constant 0 : i32
    %c0_i32_0 = arith.constant 0 : i32
    %c0_i32_1 = arith.constant 0 : i32
    return %arg1, %c0_i32, %c0_i32_0 : i32, i32, i32
  }
  func.func @transform_18(%arg0: i32, %arg1: i32) -> (i32, i32, i32, i32) {
    %c0_i32 = arith.constant 0 : i32
    %c0_i32_0 = arith.constant 0 : i32
    %c0_i32_1 = arith.constant 0 : i32
    %c0_i32_2 = arith.constant 0 : i32
    return %arg1, %c0_i32, %c0_i32_0, %c0_i32_1 : i32, i32, i32, i32
  }
  func.func @transform_19(%arg0: i32, %arg1: i32) -> (i32, i32, i32) {
    %c0_i32 = arith.constant 0 : i32
    %c0_i32_0 = arith.constant 0 : i32
    %c0_i32_1 = arith.constant 0 : i32
    return %arg1, %c0_i32, %c0_i32_0 : i32, i32, i32
  }
  func.func @transform_20(%arg0: i32, %arg1: i32) -> (i32, i32, i32) {
    %c0_i32 = arith.constant 0 : i32
    %c0_i32_0 = arith.constant 0 : i32
    %c0_i32_1 = arith.constant 0 : i32
    return %arg1, %c0_i32, %c0_i32_0 : i32, i32, i32
  }
  func.func @transform_21(%arg0: i32, %arg1: i32) -> (i32, i32, i32) {
    %c0_i32 = arith.constant 0 : i32
    %c0_i32_0 = arith.constant 0 : i32
    %c0_i32_1 = arith.constant 0 : i32
    return %arg1, %c0_i32, %c0_i32_0 : i32, i32, i32
  }
  func.func @transform_22(%arg0: i32, %arg1: i32) -> (i32, i32) {
    %c0_i32 = arith.constant 0 : i32
    %c0_i32_0 = arith.constant 0 : i32
    %c0_i32_1 = arith.constant 0 : i32
    return %c0_i32, %c0_i32_0 : i32, i32
  }
  func.func @transform_23(%arg0: i32, %arg1: i32) -> (i32, i32) {
    %c0_i32 = arith.constant 0 : i32
    %c0_i32_0 = arith.constant 0 : i32
    %c0_i32_1 = arith.constant 0 : i32
    return %c0_i32, %c0_i32_0 : i32, i32
  }
  func.func @transform_24(%arg0: i32, %arg1: i32) -> (i32, i32) {
    %c0_i32 = arith.constant 0 : i32
    %c0_i32_0 = arith.constant 0 : i32
    %c0_i32_1 = arith.constant 0 : i32
    return %c0_i32, %c0_i32_0 : i32, i32
  }
  func.func @transform_25(%arg0: i32, %arg1: i32) -> (i32, i32) {
    %c0_i32 = arith.constant 0 : i32
    %c0_i32_0 = arith.constant 0 : i32
    %c0_i32_1 = arith.constant 0 : i32
    return %c0_i32, %c0_i32_0 : i32, i32
  }
  func.func @transform_26(%arg0: i32, %arg1: i32) -> (i32, i32) {
    %c0_i32 = arith.constant 0 : i32
    %c0_i32_0 = arith.constant 0 : i32
    %c0_i32_1 = arith.constant 0 : i32
    return %c0_i32, %c0_i32_0 : i32, i32
  }
  func.func @transform_27(%arg0: i32, %arg1: i32) -> (i32, i32) {
    %c0_i32 = arith.constant 0 : i32
    %c0_i32_0 = arith.constant 0 : i32
    return %arg0, %c0_i32 : i32, i32
  }
}

</mosaic_0001>

<llo_original>
// kernel: tpu_custom_call.1
$region0: #{tpu_custom_call.1}
  #allocation0 [shape = 'u32[]', space=smem, size = 0x4, offset = 0x4, fixed_abs, tag = 'smem constant byte address 0x4 - core index']
  #allocation1 [shape = 'u32[144,128]{1,0:T(1,128)}', space=vmem, size = 0x12000, scoped, tag = 'internal scratch']
  #allocation2 [shape = 'f32[16,64]{1,0:T(8,128)}', space=vmem, size = 0x2000, scoped, tag = 'scratch operand']
  %s0 = inlined_call_operand.hbm [shape: f32[32,128], index: 0, kind: input, shape index: {}]
  %s1 = inlined_call_operand.vmem [shape: bf16[128,64], index: 1, kind: input, shape index: {}]
  %s2 = inlined_call_operand.hbm [shape: f32[1,64], index: 2, kind: input, shape index: {}]
  %s3 = inlined_call_operand.hbm [shape: f32[1,64], index: 3, kind: input, shape index: {}]
  %s4 = inlined_call_operand.hbm [shape: f32[1,64], index: 4, kind: input, shape index: {}]
  %s5 = inlined_call_operand.hbm [shape: f32[64,64], index: 5, kind: input, shape index: {}]
  %s6 = inlined_call_operand.vmem [shape: bf16[3,64,64], index: 6, kind: input, shape index: {}]
  %s7 = inlined_call_operand.hbm [shape: f32[1,64], index: 7, kind: input, shape index: {}]
  %s8 = inlined_call_operand.vmem [shape: f32[3,16,1], index: 8, kind: input, shape index: {}]
  %s9 = inlined_call_operand.hbm [shape: f32[2,1,64], index: 9, kind: input, shape index: {}]
  %s10 = inlined_call_operand.hbm [shape: f32[2,1,64], index: 10, kind: input, shape index: {}]
  %s11 = inlined_call_operand.vmem [shape: bf16[2,64,192], index: 11, kind: input, shape index: {}]
  %s12 = inlined_call_operand.hbm [shape: bf16[2,64,64], index: 12, kind: input, shape index: {}]
  %s13 = inlined_call_operand.hbm [shape: f32[2,1,64], index: 13, kind: input, shape index: {}]
  %s14 = inlined_call_operand.vmem [shape: f32[2,1,64], index: 14, kind: input, shape index: {}]
  %s15 = inlined_call_operand.vmem [shape: f32[2,1,64], index: 15, kind: input, shape index: {}]
  %s16 = inlined_call_operand.vmem [shape: bf16[2,64,256], index: 16, kind: input, shape index: {}]
  %s17 = inlined_call_operand.vmem [shape: f32[2,1,256], index: 17, kind: input, shape index: {}]
  %s18 = inlined_call_operand.hbm [shape: f32[2,31,16,128], index: 18, kind: input, shape index: {}]
  %s19 = inlined_call_operand.vmem [shape: f32[2,1,128], index: 19, kind: input, shape index: {}]
  %s20 = inlined_call_operand.vmem [shape: bf16[2,128,64], index: 20, kind: input, shape index: {}]
  %s21 = inlined_call_operand.vmem [shape: f32[2,1,64], index: 21, kind: input, shape index: {}]
  %s22 = inlined_call_operand.vmem [shape: f32[1,64], index: 22, kind: input, shape index: {}]
  %s23 = inlined_call_operand.vmem [shape: f32[1,64], index: 23, kind: input, shape index: {}]
  %s24 = inlined_call_operand.vmem [shape: bf16[64,128], index: 24, kind: input, shape index: {}]
  %s25 = inlined_call_operand.vmem [shape: f32[1,128], index: 25, kind: input, shape index: {}]
  %s26 = inlined_call_operand.vmem [shape: f32[1,128], index: 26, kind: input, shape index: {}]
  %s27 = inlined_call_operand.hbm [shape: f32[32,128], index: 27, kind: output, shape index: {}]
  %s28 = sld [smem:[#allocation0]]
  $region193: #{tpu_custom_call.1} parent=0
    _
  %s30 = ssub.s32 1, %s28
  %s31 = scalar_select 0, %s30, %s28
  $region1: #{tpu_custom_call.1} parent=0
    #allocation3 [shape = 'u8[16384]{0}', space=vmem, size = 0x4000, scoped, tag = 'input window, operand 0']
    #allocation4 [shape = 's32[2]{0}', space=sflag, size = 0x8, scoped, tag = 'scoped memory for tpu_custom_call.1']
    #allocation5 [shape = 's32[2]{0}', space=sflag, size = 0x8, scoped, tag = 'scoped memory for tpu_custom_call.1']
    #allocation6 [shape = 'u8[512]{0}', space=vmem, size = 0x400, scoped, tag = 'input window, operand 2, single buffered']
    #allocation7 [shape = 's32[1]{0}', space=sflag, size = 0x4, scoped, tag = 'scoped memory for tpu_custom_call.1']
    #allocation8 [shape = 'u8[512]{0}', space=vmem, size = 0x400, scoped, tag = 'input window, operand 3, single buffered']
    #allocation9 [shape = 'u8[512]{0}', space=vmem, size = 0x400, scoped, tag = 'input window, operand 4, single buffered']
    #allocation10 [shape = 's32[1]{0}', space=sflag, size = 0x4, scoped, tag = 'scoped memory for tpu_custom_call.1']
    #allocation11 [shape = 'u8[32768]{0}', space=vmem, size = 0x8000, scoped, tag = 'input window, operand 5, single buffered']
    #allocation12 [shape = 'u8[512]{0}', space=vmem, size = 0x400, scoped, tag = 'input window, operand 7, single buffered']
    #allocation13 [shape = 's32[1]{0}', space=sflag, size = 0x4, scoped, tag = 'scoped memory for tpu_custom_call.1']
    #allocation14 [shape = 'u8[1024]{0}', space=vmem, size = 0x400, scoped, tag = 'input window, operand 9']
    #allocation15 [shape = 'u8[1024]{0}', space=vmem, size = 0x400, scoped, tag = 'input window, operand 10']
    #allocation16 [shape = 'u8[32768]{0}', space=vmem, size = 0x8000, scoped, tag = 'input window, operand 12']
    #allocation17 [shape = 'u8[1024]{0}', space=vmem, size = 0x400, scoped, tag = 'input window, operand 13']
    #allocation18 [shape = 'u8[507904]{0}', space=vmem, size = 0x7c000, scoped, tag = 'input window, operand 18']
    #allocation19 [shape = 'u8[16384]{0}', space=vmem, size = 0x4000, scoped, tag = 'output window, operand 0']
    %32 = vsyncpa [#allocation4], 0
    %s33 = scalar_lea.sflag [#allocation4], 1
    %34 = vsyncpa %s33, 0
    %35 = vsyncpa [#allocation7], 0
    %36 = vsyncpa [#allocation10], 0
    %37 = vsyncpa [#allocation13], 0
    %38 = vsyncpa [#allocation5], 0
    %s39 = scalar_lea.sflag [#allocation5], 1
    %40 = vsyncpa %s39, 0
    loop: start=0, step=1, limit=6
    $region2: #{tpu_custom_call.1} parent=1 // loop_pre_header
      _
    $region3: #{tpu_custom_call.1} parent=1 // loop_header
      %s42 = sphi 0, %s46
      %p43 = scmp.ge.s32.totalorder %s42, 6
      %s49 = sphi 0, %s61
      %s50 = sphi 0, %s57
      %s51 = sphi 0, %s49
      %s52 = sphi 0, %s50
      %s53 = sphi 0, %s51
      %s54 = sphi 0, %s52
      %s64 = sphi 0, %s66
      %s67 = sphi 0, %s64
      %s68 = sphi 0, %s67
      %s84 = sphi 0, %s68
      %s88 = sphi 0, %s88
      %s90 = sphi 0, %s88
      %s91 = sphi 0, %s90
      %s105 = sphi 0, %s91
      %s109 = sphi 0, %s109
      %s111 = sphi 0, %s109
      %s112 = sphi 0, %s111
      %s126 = sphi 0, %s112
      %s130 = sphi 0, %s130
      %s132 = sphi 0, %s130
      %s133 = sphi 0, %s132
      %s147 = sphi 0, %s133
      %s151 = sphi 0, %s151
      %s153 = sphi 0, %s151
      %s154 = sphi 0, %s153
      %s168 = sphi 0, %s154
      %s172 = sphi 0, %s172
      %s174 = sphi 0, %s172
      %s175 = sphi 0, %s174
      %s189 = sphi 0, %s175
      %s193 = sphi 0, %s193
      %s195 = sphi 0, %s193
      %s196 = sphi 0, %s195
      %s210 = sphi 0, %s196
      %s214 = sphi 0, %s214
      %s216 = sphi 0, %s214
      %s217 = sphi 0, %s216
      %s231 = sphi 0, %s217
      %s235 = sphi 0, %s235
      %s237 = sphi 0, %s235
      %s238 = sphi 0, %s237
      %s252 = sphi 0, %s238
      %s258 = sphi 0, %s260
      %s261 = sphi 0, %s258
      %s262 = sphi 0, %s261
      %s278 = sphi 0, %s262
      %s284 = sphi 0, %s286
      %s287 = sphi 0, %s284
      %s288 = sphi 0, %s287
      %s304 = sphi 0, %s288
      %s310 = sphi 0, %s312
      %s313 = sphi 0, %s310
      %s314 = sphi 0, %s313
      %s330 = sphi 0, %s314
      %s336 = sphi 0, %s338
      %s339 = sphi 0, %s336
      %s340 = sphi 0, %s339
      %s356 = sphi 0, %s340
      %s362 = sphi 0, %s364
      %s365 = sphi 0, %s362
      %s366 = sphi 0, %s365
      %s382 = sphi 0, %s366
      %s388 = sphi 0, %s390
      %s391 = sphi 0, %s388
      %s392 = sphi 0, %s391
      %s408 = sphi 0, %s392
      %s414 = sphi 0, %s416
      %s417 = sphi 0, %s414
      %s418 = sphi 0, %s417
      %s434 = sphi 0, %s418
      %s440 = sphi 0, %s442
      %s443 = sphi 0, %s440
      %s444 = sphi 0, %s443
      %s460 = sphi 0, %s444
      %s466 = sphi 0, %s468
      %s469 = sphi 0, %s466
      %s470 = sphi 0, %s469
      %s486 = sphi 0, %s470
      %s492 = sphi 0, %s494
      %s495 = sphi 0, %s492
      %s496 = sphi 0, %s495
      %s512 = sphi 0, %s496
      %s518 = sphi 0, %s520
      %s521 = sphi 0, %s518
      %s522 = sphi 0, %s521
      %s538 = sphi 0, %s522
      %s544 = sphi 0, %s546
      %s547 = sphi 0, %s544
      %s548 = sphi 0, %s547
      %s564 = sphi 0, %s548
      %s570 = sphi 0, %s572
      %s573 = sphi 0, %s570
      %s574 = sphi 0, %s573
      %s590 = sphi 0, %s574
      %s594 = sphi 0, %s594
      %s596 = sphi 0, %s594
      %s597 = sphi 0, %s596
      %s611 = sphi 0, %s597
      %s615 = sphi 0, %s615
      %s617 = sphi 0, %s615
      %s618 = sphi 0, %s617
      %s632 = sphi 0, %s618
      %s636 = sphi 0, %s636
      %s638 = sphi 0, %s636
      %s639 = sphi 0, %s638
      %s653 = sphi 0, %s639
      %s657 = sphi 0, %s657
      %s659 = sphi 0, %s657
      %s660 = sphi 0, %s659
      %s674 = sphi 0, %s660
      %s678 = sphi 0, %s678
      %s680 = sphi 0, %s678
      %s681 = sphi 0, %s680
      %s695 = sphi 0, %s681
      %s701 = sphi 0, %s703
      %s704 = sphi 0, %s701
      %s705 = sphi 0, %s704
      %s721 = sphi 0, %s705
    $region4: #{tpu_custom_call.1} parent=1 // loop_header_branch
      %45 = sbr.rel (%p43) target = $region8
    $region5: #{tpu_custom_call.1} parent=1 // loop_body
      %s47 = ssub.s32 %s42, 1
      %s48 = ssub.s32 %s42, 2
      %s55 = sadd.s32 1, %s50
      %p56 = scmp.ge.s32.totalorder %s55, 2
      %s57 = scalar_select %p56, 0, %s55
      %s58 = sadd.s32 1, %s49
      %s59 = scalar_select %p56, %s58, %s49
      %p60 = scmp.ge.s32.totalorder %s59, 2
      %s61 = scalar_select %p60, 0, %s59
      %s62 = ssub.s32 %s49, %s61
      %p63 = scmp.eq.s32.totalorder %s62, 0
      %s65 = sadd.s32 %s64, 1
      %s66 = scalar_select %p63, %s64, %s65
      %p69 = pneg %p63
      %p70 = scmp.eq.s32.totalorder %s42, 3
      %p71 = por %p69, %p70
      %p72 = scmp.ne.s32.totalorder %s64, %s67
      %p73 = scmp.eq.s32.totalorder %s42, 0
      %p74 = por %p72, %p73
      %p75 = scmp.ne.s32.totalorder %s64, %s67
      %p76 = scmp.eq.s32.totalorder %s47, 3
      %p77 = por %p75, %p76
      %p78 = scmp.ne.s32.totalorder %s67, %s68
      %p79 = scmp.eq.s32.totalorder %s47, 0
      %p80 = por %p78, %p79
      %p81 = scmp.ne.s32.totalorder %s67, %s68
      %p82 = scmp.eq.s32.totalorder %s48, 3
      %p83 = por %p81, %p82
      %p85 = scmp.ne.s32.totalorder %s68, %s84
      %p86 = scmp.eq.s32.totalorder %s48, 0
      %p87 = por %p85, %p86
      %s89 = sadd.s32 %s88, 1
      %p92 = scmp.eq.s32.totalorder %s42, 3
      %p93 = scmp.ne.s32.totalorder %s88, %s90
      %p94 = scmp.eq.s32.totalorder %s42, 0
      %p95 = por %p93, %p94
      %p96 = scmp.ne.s32.totalorder %s88, %s90
      %p97 = scmp.eq.s32.totalorder %s47, 3
      %p98 = por %p96, %p97
      %p99 = scmp.ne.s32.totalorder %s90, %s91
      %p100 = scmp.eq.s32.totalorder %s47, 0
      %p101 = por %p99, %p100
      %p102 = scmp.ne.s32.totalorder %s90, %s91
      %p103 = scmp.eq.s32.totalorder %s48, 3
      %p104 = por %p102, %p103
      %p106 = scmp.ne.s32.totalorder %s91, %s105
      %p107 = scmp.eq.s32.totalorder %s48, 0
      %p108 = por %p106, %p107
      %s110 = sadd.s32 %s109, 1
      %p113 = scmp.eq.s32.totalorder %s42, 3
      %p114 = scmp.ne.s32.totalorder %s109, %s111
      %p115 = scmp.eq.s32.totalorder %s42, 0
      %p116 = por %p114, %p115
      %p117 = scmp.ne.s32.totalorder %s109, %s111
      %p118 = scmp.eq.s32.totalorder %s47, 3
      %p119 = por %p117, %p118
      %p120 = scmp.ne.s32.totalorder %s111, %s112
      %p121 = scmp.eq.s32.totalorder %s47, 0
      %p122 = por %p120, %p121
      %p123 = scmp.ne.s32.totalorder %s111, %s112
      %p124 = scmp.eq.s32.totalorder %s48, 3
      %p125 = por %p123, %p124
      %p127 = scmp.ne.s32.totalorder %s112, %s126
      %p128 = scmp.eq.s32.totalorder %s48, 0
      %p129 = por %p127, %p128
      %s131 = sadd.s32 %s130, 1
      %p134 = scmp.eq.s32.totalorder %s42, 3
      %p135 = scmp.ne.s32.totalorder %s130, %s132
      %p136 = scmp.eq.s32.totalorder %s42, 0
      %p137 = por %p135, %p136
      %p138 = scmp.ne.s32.totalorder %s130, %s132
      %p139 = scmp.eq.s32.totalorder %s47, 3
      %p140 = por %p138, %p139
      %p141 = scmp.ne.s32.totalorder %s132, %s133
      %p142 = scmp.eq.s32.totalorder %s47, 0
      %p143 = por %p141, %p142
      %p144 = scmp.ne.s32.totalorder %s132, %s133
      %p145 = scmp.eq.s32.totalorder %s48, 3
      %p146 = por %p144, %p145
      %p148 = scmp.ne.s32.totalorder %s133, %s147
      %p149 = scmp.eq.s32.totalorder %s48, 0
      %p150 = por %p148, %p149
      %s152 = sadd.s32 %s151, 1
      %p155 = scmp.eq.s32.totalorder %s42, 3
      %p156 = scmp.ne.s32.totalorder %s151, %s153
      %p157 = scmp.eq.s32.totalorder %s42, 0
      %p158 = por %p156, %p157
      %p159 = scmp.ne.s32.totalorder %s151, %s153
      %p160 = scmp.eq.s32.totalorder %s47, 3
      %p161 = por %p159, %p160
      %p162 = scmp.ne.s32.totalorder %s153, %s154
      %p163 = scmp.eq.s32.totalorder %s47, 0
      %p164 = por %p162, %p163
      %p165 = scmp.ne.s32.totalorder %s153, %s154
      %p166 = scmp.eq.s32.totalorder %s48, 3
      %p167 = por %p165, %p166
      %p169 = scmp.ne.s32.totalorder %s154, %s168
      %p170 = scmp.eq.s32.totalorder %s48, 0
      %p171 = por %p169, %p170
      %s173 = sadd.s32 %s172, 1
      %p176 = scmp.eq.s32.totalorder %s42, 3
      %p177 = scmp.ne.s32.totalorder %s172, %s174
      %p178 = scmp.eq.s32.totalorder %s42, 0
      %p179 = por %p177, %p178
      %p180 = scmp.ne.s32.totalorder %s172, %s174
      %p181 = scmp.eq.s32.totalorder %s47, 3
      %p182 = por %p180, %p181
      %p183 = scmp.ne.s32.totalorder %s174, %s175
      %p184 = scmp.eq.s32.totalorder %s47, 0
      %p185 = por %p183, %p184
      %p186 = scmp.ne.s32.totalorder %s174, %s175
      %p187 = scmp.eq.s32.totalorder %s48, 3
      %p188 = por %p186, %p187
      %p190 = scmp.ne.s32.totalorder %s175, %s189
      %p191 = scmp.eq.s32.totalorder %s48, 0
      %p192 = por %p190, %p191
      %s194 = sadd.s32 %s193, 1
      %p197 = scmp.eq.s32.totalorder %s42, 3
      %p198 = scmp.ne.s32.totalorder %s193, %s195
      %p199 = scmp.eq.s32.totalorder %s42, 0
      %p200 = por %p198, %p199
      %p201 = scmp.ne.s32.totalorder %s193, %s195
      %p202 = scmp.eq.s32.totalorder %s47, 3
      %p203 = por %p201, %p202
      %p204 = scmp.ne.s32.totalorder %s195, %s196
      %p205 = scmp.eq.s32.totalorder %s47, 0
      %p206 = por %p204, %p205
      %p207 = scmp.ne.s32.totalorder %s195, %s196
      %p208 = scmp.eq.s32.totalorder %s48, 3
      %p209 = por %p207, %p208
      %p211 = scmp.ne.s32.totalorder %s196, %s210
      %p212 = scmp.eq.s32.totalorder %s48, 0
      %p213 = por %p211, %p212
      %s215 = sadd.s32 %s214, 1
      %p218 = scmp.eq.s32.totalorder %s42, 3
      %p219 = scmp.ne.s32.totalorder %s214, %s216
      %p220 = scmp.eq.s32.totalorder %s42, 0
      %p221 = por %p219, %p220
      %p222 = scmp.ne.s32.totalorder %s214, %s216
      %p223 = scmp.eq.s32.totalorder %s47, 3
      %p224 = por %p222, %p223
      %p225 = scmp.ne.s32.totalorder %s216, %s217
      %p226 = scmp.eq.s32.totalorder %s47, 0
      %p227 = por %p225, %p226
      %p228 = scmp.ne.s32.totalorder %s216, %s217
      %p229 = scmp.eq.s32.totalorder %s48, 3
      %p230 = por %p228, %p229
      %p232 = scmp.ne.s32.totalorder %s217, %s231
      %p233 = scmp.eq.s32.totalorder %s48, 0
      %p234 = por %p232, %p233
      %s236 = sadd.s32 %s235, 1
      %p239 = scmp.eq.s32.totalorder %s42, 3
      %p240 = scmp.ne.s32.totalorder %s235, %s237
      %p241 = scmp.eq.s32.totalorder %s42, 0
      %p242 = por %p240, %p241
      %p243 = scmp.ne.s32.totalorder %s235, %s237
      %p244 = scmp.eq.s32.totalorder %s47, 3
      %p245 = por %p243, %p244
      %p246 = scmp.ne.s32.totalorder %s237, %s238
      %p247 = scmp.eq.s32.totalorder %s47, 0
      %p248 = por %p246, %p247
      %p249 = scmp.ne.s32.totalorder %s237, %s238
      %p250 = scmp.eq.s32.totalorder %s48, 3
      %p251 = por %p249, %p250
      %p253 = scmp.ne.s32.totalorder %s238, %s252
      %p254 = scmp.eq.s32.totalorder %s48, 0
      %p255 = por %p253, %p254
      %s256 = ssub.s32 %s50, %s57
      %p257 = scmp.eq.s32.totalorder %s256, 0
      %s259 = sadd.s32 %s258, 1
      %s260 = scalar_select %p257, %s258, %s259
      %p263 = pneg %p257
      %p264 = scmp.eq.s32.totalorder %s42, 3
      %p265 = por %p263, %p264
      %p266 = scmp.ne.s32.totalorder %s258, %s261
      %p267 = scmp.eq.s32.totalorder %s42, 0
      %p268 = por %p266, %p267
      %p269 = scmp.ne.s32.totalorder %s258, %s261
      %p270 = scmp.eq.s32.totalorder %s47, 3
      %p271 = por %p269, %p270
      %p272 = scmp.ne.s32.totalorder %s261, %s262
      %p273 = scmp.eq.s32.totalorder %s47, 0
      %p274 = por %p272, %p273
      %p275 = scmp.ne.s32.totalorder %s261, %s262
      %p276 = scmp.eq.s32.totalorder %s48, 3
      %p277 = por %p275, %p276
      %p279 = scmp.ne.s32.totalorder %s262, %s278
      %p280 = scmp.eq.s32.totalorder %s48, 0
      %p281 = por %p279, %p280
      %s282 = ssub.s32 %s50, %s57
      %p283 = scmp.eq.s32.totalorder %s282, 0
      %s285 = sadd.s32 %s284, 1
      %s286 = scalar_select %p283, %s284, %s285
      %p289 = pneg %p283
      %p290 = scmp.eq.s32.totalorder %s42, 3
      %p291 = por %p289, %p290
      %p292 = scmp.ne.s32.totalorder %s284, %s287
      %p293 = scmp.eq.s32.totalorder %s42, 0
      %p294 = por %p292, %p293
      %p295 = scmp.ne.s32.totalorder %s284, %s287
      %p296 = scmp.eq.s32.totalorder %s47, 3
      %p297 = por %p295, %p296
      %p298 = scmp.ne.s32.totalorder %s287, %s288
      %p299 = scmp.eq.s32.totalorder %s47, 0
      %p300 = por %p298, %p299
      %p301 = scmp.ne.s32.totalorder %s287, %s288
      %p302 = scmp.eq.s32.totalorder %s48, 3
      %p303 = por %p301, %p302
      %p305 = scmp.ne.s32.totalorder %s288, %s304
      %p306 = scmp.eq.s32.totalorder %s48, 0
      %p307 = por %p305, %p306
      %s308 = ssub.s32 %s50, %s57
      %p309 = scmp.eq.s32.totalorder %s308, 0
      %s311 = sadd.s32 %s310, 1
      %s312 = scalar_select %p309, %s310, %s311
      %p315 = pneg %p309
      %p316 = scmp.eq.s32.totalorder %s42, 3
      %p317 = por %p315, %p316
      %p318 = scmp.ne.s32.totalorder %s310, %s313
      %p319 = scmp.eq.s32.totalorder %s42, 0
      %p320 = por %p318, %p319
      %p321 = scmp.ne.s32.totalorder %s310, %s313
      %p322 = scmp.eq.s32.totalorder %s47, 3
      %p323 = por %p321, %p322
      %p324 = scmp.ne.s32.totalorder %s313, %s314
      %p325 = scmp.eq.s32.totalorder %s47, 0
      %p326 = por %p324, %p325
      %p327 = scmp.ne.s32.totalorder %s313, %s314
      %p328 = scmp.eq.s32.totalorder %s48, 3
      %p329 = por %p327, %p328
      %p331 = scmp.ne.s32.totalorder %s314, %s330
      %p332 = scmp.eq.s32.totalorder %s48, 0
      %p333 = por %p331, %p332
      %s334 = ssub.s32 %s50, %s57
      %p335 = scmp.eq.s32.totalorder %s334, 0
      %s337 = sadd.s32 %s336, 1
      %s338 = scalar_select %p335, %s336, %s337
      %p341 = pneg %p335
      %p342 = scmp.eq.s32.totalorder %s42, 3
      %p343 = por %p341, %p342
      %p344 = scmp.ne.s32.totalorder %s336, %s339
      %p345 = scmp.eq.s32.totalorder %s42, 0
      %p346 = por %p344, %p345
      %p347 = scmp.ne.s32.totalorder %s336, %s339
      %p348 = scmp.eq.s32.totalorder %s47, 3
      %p349 = por %p347, %p348
      %p350 = scmp.ne.s32.totalorder %s339, %s340
      %p351 = scmp.eq.s32.totalorder %s47, 0
      %p352 = por %p350, %p351
      %p353 = scmp.ne.s32.totalorder %s339, %s340
      %p354 = scmp.eq.s32.totalorder %s48, 3
      %p355 = por %p353, %p354
      %p357 = scmp.ne.s32.totalorder %s340, %s356
      %p358 = scmp.eq.s32.totalorder %s48, 0
      %p359 = por %p357, %p358
      %s360 = ssub.s32 %s50, %s57
      %p361 = scmp.eq.s32.totalorder %s360, 0
      %s363 = sadd.s32 %s362, 1
      %s364 = scalar_select %p361, %s362, %s363
      %p367 = pneg %p361
      %p368 = scmp.eq.s32.totalorder %s42, 3
      %p369 = por %p367, %p368
      %p370 = scmp.ne.s32.totalorder %s362, %s365
      %p371 = scmp.eq.s32.totalorder %s42, 0
      %p372 = por %p370, %p371
      %p373 = scmp.ne.s32.totalorder %s362, %s365
      %p374 = scmp.eq.s32.totalorder %s47, 3
      %p375 = por %p373, %p374
      %p376 = scmp.ne.s32.totalorder %s365, %s366
      %p377 = scmp.eq.s32.totalorder %s47, 0
      %p378 = por %p376, %p377
      %p379 = scmp.ne.s32.totalorder %s365, %s366
      %p380 = scmp.eq.s32.totalorder %s48, 3
      %p381 = por %p379, %p380
      %p383 = scmp.ne.s32.totalorder %s366, %s382
      %p384 = scmp.eq.s32.totalorder %s48, 0
      %p385 = por %p383, %p384
      %s386 = ssub.s32 %s50, %s57
      %p387 = scmp.eq.s32.totalorder %s386, 0
      %s389 = sadd.s32 %s388, 1
      %s390 = scalar_select %p387, %s388, %s389
      %p393 = pneg %p387
      %p394 = scmp.eq.s32.totalorder %s42, 3
      %p395 = por %p393, %p394
      %p396 = scmp.ne.s32.totalorder %s388, %s391
      %p397 = scmp.eq.s32.totalorder %s42, 0
      %p398 = por %p396, %p397
      %p399 = scmp.ne.s32.totalorder %s388, %s391
      %p400 = scmp.eq.s32.totalorder %s47, 3
      %p401 = por %p399, %p400
      %p402 = scmp.ne.s32.totalorder %s391, %s392
      %p403 = scmp.eq.s32.totalorder %s47, 0
      %p404 = por %p402, %p403
      %p405 = scmp.ne.s32.totalorder %s391, %s392
      %p406 = scmp.eq.s32.totalorder %s48, 3
      %p407 = por %p405, %p406
      %p409 = scmp.ne.s32.totalorder %s392, %s408
      %p410 = scmp.eq.s32.totalorder %s48, 0
      %p411 = por %p409, %p410
      %s412 = ssub.s32 %s50, %s57
      %p413 = scmp.eq.s32.totalorder %s412, 0
      %s415 = sadd.s32 %s414, 1
      %s416 = scalar_select %p413, %s414, %s415
      %p419 = pneg %p413
      %p420 = scmp.eq.s32.totalorder %s42, 3
      %p421 = por %p419, %p420
      %p422 = scmp.ne.s32.totalorder %s414, %s417
      %p423 = scmp.eq.s32.totalorder %s42, 0
      %p424 = por %p422, %p423
      %p425 = scmp.ne.s32.totalorder %s414, %s417
      %p426 = scmp.eq.s32.totalorder %s47, 3
      %p427 = por %p425, %p426
      %p428 = scmp.ne.s32.totalorder %s417, %s418
      %p429 = scmp.eq.s32.totalorder %s47, 0
      %p430 = por %p428, %p429
      %p431 = scmp.ne.s32.totalorder %s417, %s418
      %p432 = scmp.eq.s32.totalorder %s48, 3
      %p433 = por %p431, %p432
      %p435 = scmp.ne.s32.totalorder %s418, %s434
      %p436 = scmp.eq.s32.totalorder %s48, 0
      %p437 = por %p435, %p436
      %s438 = ssub.s32 %s50, %s57
      %p439 = scmp.eq.s32.totalorder %s438, 0
      %s441 = sadd.s32 %s440, 1
      %s442 = scalar_select %p439, %s440, %s441
      %p445 = pneg %p439
      %p446 = scmp.eq.s32.totalorder %s42, 3
      %p447 = por %p445, %p446
      %p448 = scmp.ne.s32.totalorder %s440, %s443
      %p449 = scmp.eq.s32.totalorder %s42, 0
      %p450 = por %p448, %p449
      %p451 = scmp.ne.s32.totalorder %s440, %s443
      %p452 = scmp.eq.s32.totalorder %s47, 3
      %p453 = por %p451, %p452
      %p454 = scmp.ne.s32.totalorder %s443, %s444
      %p455 = scmp.eq.s32.totalorder %s47, 0
      %p456 = por %p454, %p455
      %p457 = scmp.ne.s32.totalorder %s443, %s444
      %p458 = scmp.eq.s32.totalorder %s48, 3
      %p459 = por %p457, %p458
      %p461 = scmp.ne.s32.totalorder %s444, %s460
      %p462 = scmp.eq.s32.totalorder %s48, 0
      %p463 = por %p461, %p462
      %s464 = ssub.s32 %s50, %s57
      %p465 = scmp.eq.s32.totalorder %s464, 0
      %s467 = sadd.s32 %s466, 1
      %s468 = scalar_select %p465, %s466, %s467
      %p471 = pneg %p465
      %p472 = scmp.eq.s32.totalorder %s42, 3
      %p473 = por %p471, %p472
      %p474 = scmp.ne.s32.totalorder %s466, %s469
      %p475 = scmp.eq.s32.totalorder %s42, 0
      %p476 = por %p474, %p475
      %p477 = scmp.ne.s32.totalorder %s466, %s469
      %p478 = scmp.eq.s32.totalorder %s47, 3
      %p479 = por %p477, %p478
      %p480 = scmp.ne.s32.totalorder %s469, %s470
      %p481 = scmp.eq.s32.totalorder %s47, 0
      %p482 = por %p480, %p481
      %p483 = scmp.ne.s32.totalorder %s469, %s470
      %p484 = scmp.eq.s32.totalorder %s48, 3
      %p485 = por %p483, %p484
      %p487 = scmp.ne.s32.totalorder %s470, %s486
      %p488 = scmp.eq.s32.totalorder %s48, 0
      %p489 = por %p487, %p488
      %s490 = ssub.s32 %s50, %s57
      %p491 = scmp.eq.s32.totalorder %s490, 0
      %s493 = sadd.s32 %s492, 1
      %s494 = scalar_select %p491, %s492, %s493
      %p497 = pneg %p491
      %p498 = scmp.eq.s32.totalorder %s42, 3
      %p499 = por %p497, %p498
      %p500 = scmp.ne.s32.totalorder %s492, %s495
      %p501 = scmp.eq.s32.totalorder %s42, 0
      %p502 = por %p500, %p501
      %p503 = scmp.ne.s32.totalorder %s492, %s495
      %p504 = scmp.eq.s32.totalorder %s47, 3
      %p505 = por %p503, %p504
      %p506 = scmp.ne.s32.totalorder %s495, %s496
      %p507 = scmp.eq.s32.totalorder %s47, 0
      %p508 = por %p506, %p507
      %p509 = scmp.ne.s32.totalorder %s495, %s496
      %p510 = scmp.eq.s32.totalorder %s48, 3
      %p511 = por %p509, %p510
      %p513 = scmp.ne.s32.totalorder %s496, %s512
      %p514 = scmp.eq.s32.totalorder %s48, 0
      %p515 = por %p513, %p514
      %s516 = ssub.s32 %s50, %s57
      %p517 = scmp.eq.s32.totalorder %s516, 0
      %s519 = sadd.s32 %s518, 1
      %s520 = scalar_select %p517, %s518, %s519
      %p523 = pneg %p517
      %p524 = scmp.eq.s32.totalorder %s42, 3
      %p525 = por %p523, %p524
      %p526 = scmp.ne.s32.totalorder %s518, %s521
      %p527 = scmp.eq.s32.totalorder %s42, 0
      %p528 = por %p526, %p527
      %p529 = scmp.ne.s32.totalorder %s518, %s521
      %p530 = scmp.eq.s32.totalorder %s47, 3
      %p531 = por %p529, %p530
      %p532 = scmp.ne.s32.totalorder %s521, %s522
      %p533 = scmp.eq.s32.totalorder %s47, 0
      %p534 = por %p532, %p533
      %p535 = scmp.ne.s32.totalorder %s521, %s522
      %p536 = scmp.eq.s32.totalorder %s48, 3
      %p537 = por %p535, %p536
      %p539 = scmp.ne.s32.totalorder %s522, %s538
      %p540 = scmp.eq.s32.totalorder %s48, 0
      %p541 = por %p539, %p540
      %s542 = ssub.s32 %s50, %s57
      %p543 = scmp.eq.s32.totalorder %s542, 0
      %s545 = sadd.s32 %s544, 1
      %s546 = scalar_select %p543, %s544, %s545
      %p549 = pneg %p543
      %p550 = scmp.eq.s32.totalorder %s42, 3
      %p551 = por %p549, %p550
      %p552 = scmp.ne.s32.totalorder %s544, %s547
      %p553 = scmp.eq.s32.totalorder %s42, 0
      %p554 = por %p552, %p553
      %p555 = scmp.ne.s32.totalorder %s544, %s547
      %p556 = scmp.eq.s32.totalorder %s47, 3
      %p557 = por %p555, %p556
      %p558 = scmp.ne.s32.totalorder %s547, %s548
      %p559 = scmp.eq.s32.totalorder %s47, 0
      %p560 = por %p558, %p559
      %p561 = scmp.ne.s32.totalorder %s547, %s548
      %p562 = scmp.eq.s32.totalorder %s48, 3
      %p563 = por %p561, %p562
      %p565 = scmp.ne.s32.totalorder %s548, %s564
      %p566 = scmp.eq.s32.totalorder %s48, 0
      %p567 = por %p565, %p566
      %s568 = ssub.s32 %s50, %s57
      %p569 = scmp.eq.s32.totalorder %s568, 0
      %s571 = sadd.s32 %s570, 1
      %s572 = scalar_select %p569, %s570, %s571
      %p575 = pneg %p569
      %p576 = scmp.eq.s32.totalorder %s42, 3
      %p577 = por %p575, %p576
      %p578 = scmp.ne.s32.totalorder %s570, %s573
      %p579 = scmp.eq.s32.totalorder %s42, 0
      %p580 = por %p578, %p579
      %p581 = scmp.ne.s32.totalorder %s570, %s573
      %p582 = scmp.eq.s32.totalorder %s47, 3
      %p583 = por %p581, %p582
      %p584 = scmp.ne.s32.totalorder %s573, %s574
      %p585 = scmp.eq.s32.totalorder %s47, 0
      %p586 = por %p584, %p585
      %p587 = scmp.ne.s32.totalorder %s573, %s574
      %p588 = scmp.eq.s32.totalorder %s48, 3
      %p589 = por %p587, %p588
      %p591 = scmp.ne.s32.totalorder %s574, %s590
      %p592 = scmp.eq.s32.totalorder %s48, 0
      %p593 = por %p591, %p592
      %s595 = sadd.s32 %s594, 1
      %p598 = scmp.eq.s32.totalorder %s42, 3
      %p599 = scmp.ne.s32.totalorder %s594, %s596
      %p600 = scmp.eq.s32.totalorder %s42, 0
      %p601 = por %p599, %p600
      %p602 = scmp.ne.s32.totalorder %s594, %s596
      %p603 = scmp.eq.s32.totalorder %s47, 3
      %p604 = por %p602, %p603
      %p605 = scmp.ne.s32.totalorder %s596, %s597
      %p606 = scmp.eq.s32.totalorder %s47, 0
      %p607 = por %p605, %p606
      %p608 = scmp.ne.s32.totalorder %s596, %s597
      %p609 = scmp.eq.s32.totalorder %s48, 3
      %p610 = por %p608, %p609
      %p612 = scmp.ne.s32.totalorder %s597, %s611
      %p613 = scmp.eq.s32.totalorder %s48, 0
      %p614 = por %p612, %p613
      %s616 = sadd.s32 %s615, 1
      %p619 = scmp.eq.s32.totalorder %s42, 3
      %p620 = scmp.ne.s32.totalorder %s615, %s617
      %p621 = scmp.eq.s32.totalorder %s42, 0
      %p622 = por %p620, %p621
      %p623 = scmp.ne.s32.totalorder %s615, %s617
      %p624 = scmp.eq.s32.totalorder %s47, 3
      %p625 = por %p623, %p624
      %p626 = scmp.ne.s32.totalorder %s617, %s618
      %p627 = scmp.eq.s32.totalorder %s47, 0
      %p628 = por %p626, %p627
      %p629 = scmp.ne.s32.totalorder %s617, %s618
      %p630 = scmp.eq.s32.totalorder %s48, 3
      %p631 = por %p629, %p630
      %p633 = scmp.ne.s32.totalorder %s618, %s632
      %p634 = scmp.eq.s32.totalorder %s48, 0
      %p635 = por %p633, %p634
      %s637 = sadd.s32 %s636, 1
      %p640 = scmp.eq.s32.totalorder %s42, 3
      %p641 = scmp.ne.s32.totalorder %s636, %s638
      %p642 = scmp.eq.s32.totalorder %s42, 0
      %p643 = por %p641, %p642
      %p644 = scmp.ne.s32.totalorder %s636, %s638
      %p645 = scmp.eq.s32.totalorder %s47, 3
      %p646 = por %p644, %p645
      %p647 = scmp.ne.s32.totalorder %s638, %s639
      %p648 = scmp.eq.s32.totalorder %s47, 0
      %p649 = por %p647, %p648
      %p650 = scmp.ne.s32.totalorder %s638, %s639
      %p651 = scmp.eq.s32.totalorder %s48, 3
      %p652 = por %p650, %p651
      %p654 = scmp.ne.s32.totalorder %s639, %s653
      %p655 = scmp.eq.s32.totalorder %s48, 0
      %p656 = por %p654, %p655
      %s658 = sadd.s32 %s657, 1
      %p661 = scmp.eq.s32.totalorder %s42, 3
      %p662 = scmp.ne.s32.totalorder %s657, %s659
      %p663 = scmp.eq.s32.totalorder %s42, 0
      %p664 = por %p662, %p663
      %p665 = scmp.ne.s32.totalorder %s657, %s659
      %p666 = scmp.eq.s32.totalorder %s47, 3
      %p667 = por %p665, %p666
      %p668 = scmp.ne.s32.totalorder %s659, %s660
      %p669 = scmp.eq.s32.totalorder %s47, 0
      %p670 = por %p668, %p669
      %p671 = scmp.ne.s32.totalorder %s659, %s660
      %p672 = scmp.eq.s32.totalorder %s48, 3
      %p673 = por %p671, %p672
      %p675 = scmp.ne.s32.totalorder %s660, %s674
      %p676 = scmp.eq.s32.totalorder %s48, 0
      %p677 = por %p675, %p676
      %s679 = sadd.s32 %s678, 1
      %p682 = scmp.eq.s32.totalorder %s42, 3
      %p683 = scmp.ne.s32.totalorder %s678, %s680
      %p684 = scmp.eq.s32.totalorder %s42, 0
      %p685 = por %p683, %p684
      %p686 = scmp.ne.s32.totalorder %s678, %s680
      %p687 = scmp.eq.s32.totalorder %s47, 3
      %p688 = por %p686, %p687
      %p689 = scmp.ne.s32.totalorder %s680, %s681
      %p690 = scmp.eq.s32.totalorder %s47, 0
      %p691 = por %p689, %p690
      %p692 = scmp.ne.s32.totalorder %s680, %s681
      %p693 = scmp.eq.s32.totalorder %s48, 3
      %p694 = por %p692, %p693
      %p696 = scmp.ne.s32.totalorder %s681, %s695
      %p697 = scmp.eq.s32.totalorder %s48, 0
      %p698 = por %p696, %p697
      %s699 = ssub.s32 %s49, %s61
      %p700 = scmp.eq.s32.totalorder %s699, 0
      %s702 = sadd.s32 %s701, 1
      %s703 = scalar_select %p700, %s701, %s702
      %p706 = pneg %p700
      %p707 = scmp.eq.s32.totalorder %s42, 3
      %p708 = por %p706, %p707
      %p709 = scmp.ne.s32.totalorder %s701, %s704
      %p710 = scmp.eq.s32.totalorder %s42, 0
      %p711 = por %p709, %p710
      %p712 = scmp.ne.s32.totalorder %s701, %s704
      %p713 = scmp.eq.s32.totalorder %s47, 3
      %p714 = por %p712, %p713
      %p715 = scmp.ne.s32.totalorder %s704, %s705
      %p716 = scmp.eq.s32.totalorder %s47, 0
      %p717 = por %p715, %p716
      %p718 = scmp.ne.s32.totalorder %s704, %s705
      %p719 = scmp.eq.s32.totalorder %s48, 3
      %p720 = por %p718, %p719
      %p722 = scmp.ne.s32.totalorder %s705, %s721
      %p723 = scmp.eq.s32.totalorder %s48, 0
      %p724 = por %p722, %p723
      %p725 = scmp.le.s32.totalorder 1, %s42
      %p726 = scmp.lt.s32.totalorder %s42, 5
      %p727 = pnand %p725, %p726
      %p728 = pneg %p727
      // Predicated region
      $region9: #{tpu_custom_call.1} parent=5 // pred_check
        _
      $region10: #{tpu_custom_call.1} parent=5 // pred_check_branch
        %730 = sbr.rel (%p727) target = $region12
      $region11: #{tpu_custom_call.1} parent=5 // pred_region
        %s731 = ssub.s32 %s42, 1
        // Predicated region
        $region13: #{tpu_custom_call.1} parent=11 // pred_check
          %p732 = pneg %p101
        $region14: #{tpu_custom_call.1} parent=11 // pred_check_branch
          %734 = sbr.rel (%p732) target = $region16
        $region15: #{tpu_custom_call.1} parent=11 // pred_region
          _
        $region16: #{tpu_custom_call.1} parent=11 // pred_fallthru
          _
        // Predicated region
        $region17: #{tpu_custom_call.1} parent=11 // pred_check
          %p735 = pneg %p122
        $region18: #{tpu_custom_call.1} parent=11 // pred_check_branch
          %737 = sbr.rel (%p735) target = $region20
        $region19: #{tpu_custom_call.1} parent=11 // pred_region
          %s739 = ssub.s32 16, 16
          %740 = vsyncadd [#allocation7], %s739
          %s742 = sshll.u32 [#allocation6], 4
          %s743 = int_to_ptr.vmem [resolvable:$true] %s742
          %745 = dma.hbm_to_vmem [thread:$0]  %s2, 16, %s743, [#allocation7]
        $region20: #{tpu_custom_call.1} parent=11 // pred_fallthru
          _
        // Predicated region
        $region21: #{tpu_custom_call.1} parent=11 // pred_check
          %p746 = pneg %p143
        $region22: #{tpu_custom_call.1} parent=11 // pred_check_branch
          %748 = sbr.rel (%p746) target = $region24
        $region23: #{tpu_custom_call.1} parent=11 // pred_region
          %s750 = ssub.s32 16, 16
          %751 = vsyncadd [#allocation7], %s750
          %s753 = sshll.u32 [#allocation8], 4
          %s754 = int_to_ptr.vmem [resolvable:$true] %s753
          %756 = dma.hbm_to_vmem [thread:$0]  %s3, 16, %s754, [#allocation7]
        $region24: #{tpu_custom_call.1} parent=11 // pred_fallthru
          _
        // Predicated region
        $region25: #{tpu_custom_call.1} parent=11 // pred_check
          %p757 = pneg %p164
        $region26: #{tpu_custom_call.1} parent=11 // pred_check_branch
          %759 = sbr.rel (%p757) target = $region28
        $region27: #{tpu_custom_call.1} parent=11 // pred_region
          %s761 = ssub.s32 16, 16
          %762 = vsyncadd [#allocation10], %s761
          %s764 = sshll.u32 [#allocation9], 4
          %s765 = int_to_ptr.vmem [resolvable:$true] %s764
          %767 = dma.hbm_to_vmem [thread:$0]  %s4, 16, %s765, [#allocation10]
        $region28: #{tpu_custom_call.1} parent=11 // pred_fallthru
          _
        // Predicated region
        $region29: #{tpu_custom_call.1} parent=11 // pred_check
          %p768 = pneg %p185
        $region30: #{tpu_custom_call.1} parent=11 // pred_check_branch
          %770 = sbr.rel (%p768) target = $region32
        $region31: #{tpu_custom_call.1} parent=11 // pred_region
          %s772 = ssub.s32 1024, 1024
          %773 = vsyncadd [#allocation10], %s772
          %s774 = sshll.u32 [#allocation11], 4
          %s775 = int_to_ptr.vmem [resolvable:$true] %s774
          %780 = dma.hbm_to_vmem [thread:$0]  %s5, 1024, %s775, [#allocation10], 128, 128, 8
        $region32: #{tpu_custom_call.1} parent=11 // pred_fallthru
          _
        // Predicated region
        $region33: #{tpu_custom_call.1} parent=11 // pred_check
          %p781 = pneg %p206
        $region34: #{tpu_custom_call.1} parent=11 // pred_check_branch
          %783 = sbr.rel (%p781) target = $region36
        $region35: #{tpu_custom_call.1} parent=11 // pred_region
          _
        $region36: #{tpu_custom_call.1} parent=11 // pred_fallthru
          _
        // Predicated region
        $region37: #{tpu_custom_call.1} parent=11 // pred_check
          %p784 = pneg %p227
        $region38: #{tpu_custom_call.1} parent=11 // pred_check_branch
          %786 = sbr.rel (%p784) target = $region40
        $region39: #{tpu_custom_call.1} parent=11 // pred_region
          %s788 = ssub.s32 16, 16
          %789 = vsyncadd [#allocation13], %s788
          %s791 = sshll.u32 [#allocation12], 4
          %s792 = int_to_ptr.vmem [resolvable:$true] %s791
          %794 = dma.hbm_to_vmem [thread:$0]  %s7, 16, %s792, [#allocation13]
        $region40: #{tpu_custom_call.1} parent=11 // pred_fallthru
          _
        // Predicated region
        $region41: #{tpu_custom_call.1} parent=11 // pred_check
          %p795 = pneg %p248
        $region42: #{tpu_custom_call.1} parent=11 // pred_check_branch
          %797 = sbr.rel (%p795) target = $region44
        $region43: #{tpu_custom_call.1} parent=11 // pred_region
          _
        $region44: #{tpu_custom_call.1} parent=11 // pred_fallthru
          _
        // Predicated region
        $region45: #{tpu_custom_call.1} parent=11 // pred_check
          %p798 = pneg %p607
        $region46: #{tpu_custom_call.1} parent=11 // pred_check_branch
          %800 = sbr.rel (%p798) target = $region48
        $region47: #{tpu_custom_call.1} parent=11 // pred_region
          _
        $region48: #{tpu_custom_call.1} parent=11 // pred_fallthru
          _
        // Predicated region
        $region49: #{tpu_custom_call.1} parent=11 // pred_check
          %p801 = pneg %p628
        $region50: #{tpu_custom_call.1} parent=11 // pred_check_branch
          %803 = sbr.rel (%p801) target = $region52
        $region51: #{tpu_custom_call.1} parent=11 // pred_region
          _
        $region52: #{tpu_custom_call.1} parent=11 // pred_fallthru
          _
        // Predicated region
        $region53: #{tpu_custom_call.1} parent=11 // pred_check
          %p804 = pneg %p649
        $region54: #{tpu_custom_call.1} parent=11 // pred_check_branch
          %806 = sbr.rel (%p804) target = $region56
        $region55: #{tpu_custom_call.1} parent=11 // pred_region
          _
        $region56: #{tpu_custom_call.1} parent=11 // pred_fallthru
          _
        // Predicated region
        $region57: #{tpu_custom_call.1} parent=11 // pred_check
          %p807 = pneg %p670
        $region58: #{tpu_custom_call.1} parent=11 // pred_check_branch
          %809 = sbr.rel (%p807) target = $region60
        $region59: #{tpu_custom_call.1} parent=11 // pred_region
          _
        $region60: #{tpu_custom_call.1} parent=11 // pred_fallthru
          _
        // Predicated region
        $region61: #{tpu_custom_call.1} parent=11 // pred_check
          %p810 = pneg %p691
        $region62: #{tpu_custom_call.1} parent=11 // pred_check_branch
          %812 = sbr.rel (%p810) target = $region64
        $region63: #{tpu_custom_call.1} parent=11 // pred_region
          _
        $region64: #{tpu_custom_call.1} parent=11 // pred_fallthru
          _
      $region12: #{tpu_custom_call.1} parent=5 // pred_fallthru
        _
      %p813 = scmp.lt.s32.totalorder %s42, 4
      // Predicated region
      $region65: #{tpu_custom_call.1} parent=5 // pred_check
        %p814 = pneg %p813
      $region66: #{tpu_custom_call.1} parent=5 // pred_check_branch
        %816 = sbr.rel (%p814) target = $region68
      $region67: #{tpu_custom_call.1} parent=5 // pred_region
        // Predicated region
        $region69: #{tpu_custom_call.1} parent=67 // pred_check
          %p817 = pneg %p74
        $region70: #{tpu_custom_call.1} parent=67 // pred_check_branch
          %819 = sbr.rel (%p817) target = $region72
        $region71: #{tpu_custom_call.1} parent=67 // pred_region
          %s820 = sand.u32 %s42, 1
          %s821 = scalar_lea.sflag [#allocation4], %s820
          %s822 = sand.u32 %s64, 1
          %s823 = smul.addr %s822, 16
          %s824 = scalar_lea.vmem [#allocation3], %s823
          %s825 = smul.u32 2, %s49
          %s827 = ssub.s32 256, 256
          %828 = vsyncadd %s821, %s827
          %s829 = smul.addr %s825, 128
          %s830 = scalar_lea.hbm %s0, %s829
          %s831 = sshll.u32 %s824, 4
          %s832 = int_to_ptr.vmem [resolvable:$true] %s831
          %837 = dma.hbm_to_vmem [thread:$0]  %s830, 256, %s832, %s821, 128, 128, 8
        $region72: #{tpu_custom_call.1} parent=67 // pred_fallthru
          _
        // Predicated region
        $region73: #{tpu_custom_call.1} parent=67 // pred_check
          %p838 = pneg %p268
        $region74: #{tpu_custom_call.1} parent=67 // pred_check_branch
          %840 = sbr.rel (%p838) target = $region76
        $region75: #{tpu_custom_call.1} parent=67 // pred_region
          %s841 = sand.u32 %s42, 1
          %s842 = scalar_lea.sflag [#allocation4], %s841
          %s843 = sand.u32 %s258, 1
          %s844 = scalar_lea.vmem [#allocation14], %s843
          %s846 = ssub.s32 16, 16
          %847 = vsyncadd %s842, %s846
          %s848 = smul.addr %s50, 16
          %s849 = scalar_lea.hbm %s9, %s848
          %s851 = sshll.u32 %s844, 4
          %s852 = int_to_ptr.vmem [resolvable:$true] %s851
          %854 = dma.hbm_to_vmem [thread:$0]  %s849, 16, %s852, %s842
        $region76: #{tpu_custom_call.1} parent=67 // pred_fallthru
          _
        // Predicated region
        $region77: #{tpu_custom_call.1} parent=67 // pred_check
          %p855 = pneg %p294
        $region78: #{tpu_custom_call.1} parent=67 // pred_check_branch
          %857 = sbr.rel (%p855) target = $region80
        $region79: #{tpu_custom_call.1} parent=67 // pred_region
          %s858 = sand.u32 %s42, 1
          %s859 = scalar_lea.sflag [#allocation4], %s858
          %s860 = sand.u32 %s284, 1
          %s861 = scalar_lea.vmem [#allocation15], %s860
          %s863 = ssub.s32 16, 16
          %864 = vsyncadd %s859, %s863
          %s865 = smul.addr %s50, 16
          %s866 = scalar_lea.hbm %s10, %s865
          %s868 = sshll.u32 %s861, 4
          %s869 = int_to_ptr.vmem [resolvable:$true] %s868
          %871 = dma.hbm_to_vmem [thread:$0]  %s866, 16, %s869, %s859
        $region80: #{tpu_custom_call.1} parent=67 // pred_fallthru
          _
        // Predicated region
        $region81: #{tpu_custom_call.1} parent=67 // pred_check
          %p872 = pneg %p320
        $region82: #{tpu_custom_call.1} parent=67 // pred_check_branch
          %874 = sbr.rel (%p872) target = $region84
        $region83: #{tpu_custom_call.1} parent=67 // pred_region
          %p875 = scmp.lt.s32.totalorder %s50, 1
          %s876 = scalar_select %p875, %s50, 1
          %s877 = smul.addr %s876, 16
          %s878 = smul.addr %s877, 4
          %s879 = scalar_lea.vmem %s11, %s878
        $region84: #{tpu_custom_call.1} parent=67 // pred_fallthru
          _
        // Predicated region
        $region85: #{tpu_custom_call.1} parent=67 // pred_check
          %p880 = pneg %p346
        $region86: #{tpu_custom_call.1} parent=67 // pred_check_branch
          %882 = sbr.rel (%p880) target = $region88
        $region87: #{tpu_custom_call.1} parent=67 // pred_region
          %s883 = sand.u32 %s42, 1
          %s884 = scalar_lea.sflag [#allocation4], %s883
          %s885 = sand.u32 %s336, 1
          %s886 = smul.addr %s885, 32
          %s887 = scalar_lea.vmem [#allocation16], %s886
          %s889 = ssub.s32 512, 512
          %890 = vsyncadd %s884, %s889
          %s891 = smul.addr %s50, 8
          %s892 = smul.addr %s891, 64
          %s893 = scalar_lea.hbm %s12, %s892
          %s894 = sshll.u32 %s887, 4
          %s895 = int_to_ptr.vmem [resolvable:$true] %s894
          %900 = dma.hbm_to_vmem [thread:$0]  %s893, 512, %s895, %s884, 64, 64, 4
        $region88: #{tpu_custom_call.1} parent=67 // pred_fallthru
          _
        // Predicated region
        $region89: #{tpu_custom_call.1} parent=67 // pred_check
          %p901 = pneg %p372
        $region90: #{tpu_custom_call.1} parent=67 // pred_check_branch
          %903 = sbr.rel (%p901) target = $region92
        $region91: #{tpu_custom_call.1} parent=67 // pred_region
          %s904 = sand.u32 %s42, 1
          %s905 = scalar_lea.sflag [#allocation4], %s904
          %s906 = sand.u32 %s362, 1
          %s907 = scalar_lea.vmem [#allocation17], %s906
          %s909 = ssub.s32 16, 16
          %910 = vsyncadd %s905, %s909
          %s911 = smul.addr %s50, 16
          %s912 = scalar_lea.hbm %s13, %s911
          %s914 = sshll.u32 %s907, 4
          %s915 = int_to_ptr.vmem [resolvable:$true] %s914
          %917 = dma.hbm_to_vmem [thread:$0]  %s912, 16, %s915, %s905
        $region92: #{tpu_custom_call.1} parent=67 // pred_fallthru
          _
        // Predicated region
        $region93: #{tpu_custom_call.1} parent=67 // pred_check
          %p918 = pneg %p398
        $region94: #{tpu_custom_call.1} parent=67 // pred_check_branch
          %920 = sbr.rel (%p918) target = $region96
        $region95: #{tpu_custom_call.1} parent=67 // pred_region
          %p921 = scmp.lt.s32.totalorder %s50, 1
          %s922 = scalar_select %p921, %s50, 1
          %s923 = scalar_lea.vmem %s14, %s922
        $region96: #{tpu_custom_call.1} parent=67 // pred_fallthru
          _
        // Predicated region
        $region97: #{tpu_custom_call.1} parent=67 // pred_check
          %p924 = pneg %p424
        $region98: #{tpu_custom_call.1} parent=67 // pred_check_branch
          %926 = sbr.rel (%p924) target = $region100
        $region99: #{tpu_custom_call.1} parent=67 // pred_region
          %p927 = scmp.lt.s32.totalorder %s50, 1
          %s928 = scalar_select %p927, %s50, 1
          %s929 = scalar_lea.vmem %s15, %s928
        $region100: #{tpu_custom_call.1} parent=67 // pred_fallthru
          _
        // Predicated region
        $region101: #{tpu_custom_call.1} parent=67 // pred_check
          %p930 = pneg %p450
        $region102: #{tpu_custom_call.1} parent=67 // pred_check_branch
          %932 = sbr.rel (%p930) target = $region104
        $region103: #{tpu_custom_call.1} parent=67 // pred_region
          %p933 = scmp.lt.s32.totalorder %s50, 1
          %s934 = scalar_select %p933, %s50, 1
          %s935 = smul.addr %s934, 16
          %s936 = smul.addr %s935, 4
          %s937 = scalar_lea.vmem %s16, %s936
        $region104: #{tpu_custom_call.1} parent=67 // pred_fallthru
          _
        // Predicated region
        $region105: #{tpu_custom_call.1} parent=67 // pred_check
          %p938 = pneg %p476
        $region106: #{tpu_custom_call.1} parent=67 // pred_check_branch
          %940 = sbr.rel (%p938) target = $region108
        $region107: #{tpu_custom_call.1} parent=67 // pred_region
          %p941 = scmp.lt.s32.totalorder %s50, 1
          %s942 = scalar_select %p941, %s50, 1
          %s943 = smul.addr %s942, 2
          %s944 = scalar_lea.vmem %s17, %s943
        $region108: #{tpu_custom_call.1} parent=67 // pred_fallthru
          _
        // Predicated region
        $region109: #{tpu_custom_call.1} parent=67 // pred_check
          %p945 = pneg %p502
        $region110: #{tpu_custom_call.1} parent=67 // pred_check_branch
          %947 = sbr.rel (%p945) target = $region112
        $region111: #{tpu_custom_call.1} parent=67 // pred_region
          %s948 = sand.u32 %s42, 1
          %s949 = scalar_lea.sflag [#allocation4], %s948
          %s950 = sand.u32 %s492, 1
          %s951 = smul.addr %s950, 496
          %s952 = scalar_lea.vmem [#allocation18], %s951
          %s954 = ssub.s32 7936, 7936
          %955 = vsyncadd %s949, %s954
          %s956 = smul.addr %s50, 62
          %s957 = smul.addr %s956, 128
          %s958 = scalar_lea.hbm %s18, %s957
          %s959 = sshll.u32 %s952, 4
          %s960 = int_to_ptr.vmem [resolvable:$true] %s959
          %965 = dma.hbm_to_vmem [thread:$0]  %s958, 7936, %s960, %s949, 128, 128, 8
        $region112: #{tpu_custom_call.1} parent=67 // pred_fallthru
          _
        // Predicated region
        $region113: #{tpu_custom_call.1} parent=67 // pred_check
          %p966 = pneg %p528
        $region114: #{tpu_custom_call.1} parent=67 // pred_check_branch
          %968 = sbr.rel (%p966) target = $region116
        $region115: #{tpu_custom_call.1} parent=67 // pred_region
          %p969 = scmp.lt.s32.totalorder %s50, 1
          %s970 = scalar_select %p969, %s50, 1
          %s971 = scalar_lea.vmem %s19, %s970
        $region116: #{tpu_custom_call.1} parent=67 // pred_fallthru
          _
        // Predicated region
        $region117: #{tpu_custom_call.1} parent=67 // pred_check
          %p972 = pneg %p554
        $region118: #{tpu_custom_call.1} parent=67 // pred_check_branch
          %974 = sbr.rel (%p972) target = $region120
        $region119: #{tpu_custom_call.1} parent=67 // pred_region
          %p975 = scmp.lt.s32.totalorder %s50, 1
          %s976 = scalar_select %p975, %s50, 1
          %s977 = smul.addr %s976, 16
          %s978 = smul.addr %s977, 4
          %s979 = scalar_lea.vmem %s20, %s978
        $region120: #{tpu_custom_call.1} parent=67 // pred_fallthru
          _
        // Predicated region
        $region121: #{tpu_custom_call.1} parent=67 // pred_check
          %p980 = pneg %p580
        $region122: #{tpu_custom_call.1} parent=67 // pred_check_branch
          %982 = sbr.rel (%p980) target = $region124
        $region123: #{tpu_custom_call.1} parent=67 // pred_region
          %p983 = scmp.lt.s32.totalorder %s50, 1
          %s984 = scalar_select %p983, %s50, 1
          %s985 = scalar_lea.vmem %s21, %s984
        $region124: #{tpu_custom_call.1} parent=67 // pred_fallthru
          _
      $region68: #{tpu_custom_call.1} parent=5 // pred_fallthru
        _
      %p986 = scmp.le.s32.totalorder 1, %s42
      %p987 = scmp.lt.s32.totalorder %s42, 5
      %p988 = pnand %p986, %p987
      %p989 = pneg %p988
      // Predicated region
      $region125: #{tpu_custom_call.1} parent=5 // pred_check
        _
      $region126: #{tpu_custom_call.1} parent=5 // pred_check_branch
        %991 = sbr.rel (%p988) target = $region128
      $region127: #{tpu_custom_call.1} parent=5 // pred_region
        %s992 = ssub.s32 %s42, 1
        %s993 = sand.u32 %s47, 1
        %s994 = scalar_lea.sflag [#allocation4], %s993
        %s995 = sand.u32 %s67, 1
        %s996 = smul.addr %s995, 16
        %s997 = scalar_lea.vmem [#allocation3], %s996
        // Predicated region
        $region129: #{tpu_custom_call.1} parent=127 // pred_check
          %p998 = pneg %p80
        $region130: #{tpu_custom_call.1} parent=127 // pred_check_branch
          %1000 = sbr.rel (%p998) target = $region132
        $region131: #{tpu_custom_call.1} parent=127 // pred_region
          %1001 = dma.done %s994, 256
        $region132: #{tpu_custom_call.1} parent=127 // pred_fallthru
          _
        // Predicated region
        $region133: #{tpu_custom_call.1} parent=127 // pred_check
          %p1002 = pneg %p122
        $region134: #{tpu_custom_call.1} parent=127 // pred_check_branch
          %1004 = sbr.rel (%p1002) target = $region136
        $region135: #{tpu_custom_call.1} parent=127 // pred_region
          %1005 = dma.done [#allocation7], 16
        $region136: #{tpu_custom_call.1} parent=127 // pred_fallthru
          _
        // Predicated region
        $region137: #{tpu_custom_call.1} parent=127 // pred_check
          %p1006 = pneg %p143
        $region138: #{tpu_custom_call.1} parent=127 // pred_check_branch
          %1008 = sbr.rel (%p1006) target = $region140
        $region139: #{tpu_custom_call.1} parent=127 // pred_region
          %1009 = dma.done [#allocation7], 16
        $region140: #{tpu_custom_call.1} parent=127 // pred_fallthru
          _
        // Predicated region
        $region141: #{tpu_custom_call.1} parent=127 // pred_check
          %p1010 = pneg %p164
        $region142: #{tpu_custom_call.1} parent=127 // pred_check_branch
          %1012 = sbr.rel (%p1010) target = $region144
        $region143: #{tpu_custom_call.1} parent=127 // pred_region
          %1013 = dma.done [#allocation10], 16
        $region144: #{tpu_custom_call.1} parent=127 // pred_fallthru
          _
        // Predicated region
        $region145: #{tpu_custom_call.1} parent=127 // pred_check
          %p1014 = pneg %p185
        $region146: #{tpu_custom_call.1} parent=127 // pred_check_branch
          %1016 = sbr.rel (%p1014) target = $region148
        $region147: #{tpu_custom_call.1} parent=127 // pred_region
          %1017 = dma.done [#allocation10], 1024
        $region148: #{tpu_custom_call.1} parent=127 // pred_fallthru
          _
        // Predicated region
        $region149: #{tpu_custom_call.1} parent=127 // pred_check
          %p1018 = pneg %p227
        $region150: #{tpu_custom_call.1} parent=127 // pred_check_branch
          %1020 = sbr.rel (%p1018) target = $region152
        $region151: #{tpu_custom_call.1} parent=127 // pred_region
          %1021 = dma.done [#allocation13], 16
        $region152: #{tpu_custom_call.1} parent=127 // pred_fallthru
          _
        %s1022 = sand.u32 %s47, 1
        %s1023 = scalar_lea.sflag [#allocation4], %s1022
        %s1024 = sand.u32 %s261, 1
        %s1025 = scalar_lea.vmem [#allocation14], %s1024
        // Predicated region
        $region153: #{tpu_custom_call.1} parent=127 // pred_check
          %p1026 = pneg %p274
        $region154: #{tpu_custom_call.1} parent=127 // pred_check_branch
          %1028 = sbr.rel (%p1026) target = $region156
        $region155: #{tpu_custom_call.1} parent=127 // pred_region
          %1029 = dma.done %s1023, 16
        $region156: #{tpu_custom_call.1} parent=127 // pred_fallthru
          _
        %s1030 = sand.u32 %s47, 1
        %s1031 = scalar_lea.sflag [#allocation4], %s1030
        %s1032 = sand.u32 %s287, 1
        %s1033 = scalar_lea.vmem [#allocation15], %s1032
        // Predicated region
        $region157: #{tpu_custom_call.1} parent=127 // pred_check
          %p1034 = pneg %p300
        $region158: #{tpu_custom_call.1} parent=127 // pred_check_branch
          %1036 = sbr.rel (%p1034) target = $region160
        $region159: #{tpu_custom_call.1} parent=127 // pred_region
          %1037 = dma.done %s1031, 16
        $region160: #{tpu_custom_call.1} parent=127 // pred_fallthru
          _
        %s1038 = sand.u32 %s47, 1
        %s1039 = scalar_lea.sflag [#allocation4], %s1038
        %s1040 = sand.u32 %s339, 1
        %s1041 = smul.addr %s1040, 32
        %s1042 = scalar_lea.vmem [#allocation16], %s1041
        // Predicated region
        $region161: #{tpu_custom_call.1} parent=127 // pred_check
          %p1043 = pneg %p352
        $region162: #{tpu_custom_call.1} parent=127 // pred_check_branch
          %1045 = sbr.rel (%p1043) target = $region164
        $region163: #{tpu_custom_call.1} parent=127 // pred_region
          %1046 = dma.done %s1039, 512
        $region164: #{tpu_custom_call.1} parent=127 // pred_fallthru
          _
        %s1047 = sand.u32 %s47, 1
        %s1048 = scalar_lea.sflag [#allocation4], %s1047
        %s1049 = sand.u32 %s365, 1
        %s1050 = scalar_lea.vmem [#allocation17], %s1049
        // Predicated region
        $region165: #{tpu_custom_call.1} parent=127 // pred_check
          %p1051 = pneg %p378
        $region166: #{tpu_custom_call.1} parent=127 // pred_check_branch
          %1053 = sbr.rel (%p1051) target = $region168
        $region167: #{tpu_custom_call.1} parent=127 // pred_region
          %1054 = dma.done %s1048, 16
        $region168: #{tpu_custom_call.1} parent=127 // pred_fallthru
          _
        %s1055 = sand.u32 %s47, 1
        %s1056 = scalar_lea.sflag [#allocation4], %s1055
        %s1057 = sand.u32 %s495, 1
        %s1058 = smul.addr %s1057, 496
        %s1059 = scalar_lea.vmem [#allocation18], %s1058
        // Predicated region
        $region169: #{tpu_custom_call.1} parent=127 // pred_check
          %p1060 = pneg %p508
        $region170: #{tpu_custom_call.1} parent=127 // pred_check_branch
          %1062 = sbr.rel (%p1060) target = $region172
        $region171: #{tpu_custom_call.1} parent=127 // pred_region
          %1063 = dma.done %s1056, 7936
        $region172: #{tpu_custom_call.1} parent=127 // pred_fallthru
          _
        %s1064 = sand.u32 %s47, 1
        %s1065 = scalar_lea.sflag [#allocation4], %s1064
        %s1066 = sand.u32 %s67, 1
        %s1067 = smul.addr %s1066, 16
        %s1068 = scalar_lea.vmem [#allocation3], %s1067
        %p1069 = pneg %p80
        %p1070 = pneg %p77
        %p1071 = pneg %p101
        %p1072 = pneg %p98
        %p1073 = pneg %p122
        %p1074 = pneg %p119
        %p1075 = pneg %p143
        %p1076 = pneg %p140
        %p1077 = pneg %p164
        %p1078 = pneg %p161
        %p1079 = pneg %p185
        %p1080 = pneg %p182
        %p1081 = pneg %p206
        %p1082 = pneg %p203
        %p1083 = pneg %p227
        %p1084 = pneg %p224
        %p1085 = pneg %p248
        %p1086 = pneg %p245
        %s1087 = sand.u32 %s47, 1
        %s1088 = scalar_lea.sflag [#allocation4], %s1087
        %s1089 = sand.u32 %s261, 1
        %s1090 = scalar_lea.vmem [#allocation14], %s1089
        %p1091 = pneg %p274
        %p1092 = pneg %p271
        %s1093 = sand.u32 %s47, 1
        %s1094 = scalar_lea.sflag [#allocation4], %s1093
        %s1095 = sand.u32 %s287, 1
        %s1096 = scalar_lea.vmem [#allocation15], %s1095
        %p1097 = pneg %p300
        %p1098 = pneg %p297
        %p1099 = scmp.lt.s32.totalorder %s52, 1
        %s1100 = scalar_select %p1099, %s52, 1
        %s1101 = smul.addr %s1100, 16
        %s1102 = smul.addr %s1101, 4
        %s1103 = scalar_lea.vmem %s11, %s1102
        %p1104 = pneg %p326
        %p1105 = pneg %p323
        %s1106 = sand.u32 %s47, 1
        %s1107 = scalar_lea.sflag [#allocation4], %s1106
        %s1108 = sand.u32 %s339, 1
        %s1109 = smul.addr %s1108, 32
        %s1110 = scalar_lea.vmem [#allocation16], %s1109
        %p1111 = pneg %p352
        %p1112 = pneg %p349
        %s1113 = sand.u32 %s47, 1
        %s1114 = scalar_lea.sflag [#allocation4], %s1113
        %s1115 = sand.u32 %s365, 1
        %s1116 = scalar_lea.vmem [#allocation17], %s1115
        %p1117 = pneg %p378
        %p1118 = pneg %p375
        %p1119 = scmp.lt.s32.totalorder %s52, 1
        %s1120 = scalar_select %p1119, %s52, 1
        %s1121 = scalar_lea.vmem %s14, %s1120
        %p1122 = pneg %p404
        %p1123 = pneg %p401
        %p1124 = scmp.lt.s32.totalorder %s52, 1
        %s1125 = scalar_select %p1124, %s52, 1
        %s1126 = scalar_lea.vmem %s15, %s1125
        %p1127 = pneg %p430
        %p1128 = pneg %p427
        %p1129 = scmp.lt.s32.totalorder %s52, 1
        %s1130 = scalar_select %p1129, %s52, 1
        %s1131 = smul.addr %s1130, 16
        %s1132 = smul.addr %s1131, 4
        %s1133 = scalar_lea.vmem %s16, %s1132
        %p1134 = pneg %p456
        %p1135 = pneg %p453
        %p1136 = scmp.lt.s32.totalorder %s52, 1
        %s1137 = scalar_select %p1136, %s52, 1
        %s1138 = smul.addr %s1137, 2
        %s1139 = scalar_lea.vmem %s17, %s1138
        %p1140 = pneg %p482
        %p1141 = pneg %p479
        %s1142 = sand.u32 %s47, 1
        %s1143 = scalar_lea.sflag [#allocation4], %s1142
        %s1144 = sand.u32 %s495, 1
        %s1145 = smul.addr %s1144, 496
        %s1146 = scalar_lea.vmem [#allocation18], %s1145
        %p1147 = pneg %p508
        %p1148 = pneg %p505
        %p1149 = scmp.lt.s32.totalorder %s52, 1
        %s1150 = scalar_select %p1149, %s52, 1
        %s1151 = scalar_lea.vmem %s19, %s1150
        %p1152 = pneg %p534
        %p1153 = pneg %p531
        %p1154 = scmp.lt.s32.totalorder %s52, 1
        %s1155 = scalar_select %p1154, %s52, 1
        %s1156 = smul.addr %s1155, 16
        %s1157 = smul.addr %s1156, 4
        %s1158 = scalar_lea.vmem %s20, %s1157
        %p1159 = pneg %p560
        %p1160 = pneg %p557
        %p1161 = scmp.lt.s32.totalorder %s52, 1
        %s1162 = scalar_select %p1161, %s52, 1
        %s1163 = scalar_lea.vmem %s21, %s1162
        %p1164 = pneg %p586
        %p1165 = pneg %p583
        %p1166 = pneg %p607
        %p1167 = pneg %p604
        %p1168 = pneg %p628
        %p1169 = pneg %p625
        %p1170 = pneg %p649
        %p1171 = pneg %p646
        %p1172 = pneg %p670
        %p1173 = pneg %p667
        %p1174 = pneg %p691
        %p1175 = pneg %p688
        %p1176 = pneg %p717
        %p1177 = pneg %p714
        %s1178 = sand.u32 %s704, 1
        %s1179 = scalar_lea.sflag [#allocation5], %s1178
        %s1180 = sand.u32 %s704, 1
        %s1181 = smul.addr %s1180, 16
        %s1182 = scalar_lea.vmem [#allocation19], %s1181
        %s1183 = smul.u32 2, %s51
        %p1184 = scmp.lt.s32.totalorder %s52, 1
        %s1185 = scalar_select %p1184, %s52, 1
        %s1186 = smul.addr %s1185, 16
        %s1187 = smul.addr %s1186, 4
        %s1188 = scalar_lea.vmem %s11, %s1187
        %p1189 = scmp.lt.s32.totalorder %s52, 1
        %s1190 = scalar_select %p1189, %s52, 1
        %s1191 = scalar_lea.vmem %s14, %s1190
        %p1192 = scmp.lt.s32.totalorder %s52, 1
        %s1193 = scalar_select %p1192, %s52, 1
        %s1194 = scalar_lea.vmem %s15, %s1193
        %p1195 = scmp.lt.s32.totalorder %s52, 1
        %s1196 = scalar_select %p1195, %s52, 1
        %s1197 = smul.addr %s1196, 16
        %s1198 = smul.addr %s1197, 4
        %s1199 = scalar_lea.vmem %s16, %s1198
        %p1200 = scmp.lt.s32.totalorder %s52, 1
        %s1201 = scalar_select %p1200, %s52, 1
        %s1202 = smul.addr %s1201, 2
        %s1203 = scalar_lea.vmem %s17, %s1202
        %p1204 = scmp.lt.s32.totalorder %s52, 1
        %s1205 = scalar_select %p1204, %s52, 1
        %s1206 = scalar_lea.vmem %s19, %s1205
        %p1207 = scmp.lt.s32.totalorder %s52, 1
        %s1208 = scalar_select %p1207, %s52, 1
        %s1209 = smul.addr %s1208, 16
        %s1210 = smul.addr %s1209, 4
        %s1211 = scalar_lea.vmem %s20, %s1210
        %p1212 = scmp.lt.s32.totalorder %s52, 1
        %s1213 = scalar_select %p1212, %s52, 1
        %s1214 = scalar_lea.vmem %s21, %s1213
        %s1215 = smul.u32 2, %s51
        %p1217 = scmp.eq.s32.totalorder %s52, 0
        // Predicated region
        $region173: #{tpu_custom_call.1} parent=127 // pred_check
          %p1218 = pneg %p1217
        $region174: #{tpu_custom_call.1} parent=127 // pred_check_branch
          %1220 = sbr.rel (%p1218) target = $region176
        $region175: #{tpu_custom_call.1} parent=127 // pred_region
          %v1221 = vld [vmem:[%s997] sm:$0xff]
          %v1222 = vld [vmem:[%s997 + $0x8] sm:$0xff]
          %v1223 = vld [vmem:[%s1] sm:$0xf]
          %v1224 = vld [vmem:[%s1 + $0x4] sm:$0xf]
          %v1225 = vld [vmem:[%s1 + $0x8] sm:$0xf]
          %v1226 = vld [vmem:[%s1 + $0xc] sm:$0xf]
          %v1227 = vld [vmem:[%s1 + $0x10] sm:$0xf]
          %v1228 = vld [vmem:[%s1 + $0x14] sm:$0xf]
          %v1229 = vld [vmem:[%s1 + $0x18] sm:$0xf]
          %v1230 = vld [vmem:[%s1 + $0x1c] sm:$0xf]
          %v1231 = vld [vmem:[%s1 + $0x20] sm:$0xf]
          %v1232 = vld [vmem:[%s1 + $0x24] sm:$0xf]
          %v1233 = vld [vmem:[%s1 + $0x28] sm:$0xf]
          %v1234 = vld [vmem:[%s1 + $0x2c] sm:$0xf]
          %v1235 = vld [vmem:[%s1 + $0x30] sm:$0xf]
          %v1236 = vld [vmem:[%s1 + $0x34] sm:$0xf]
          %v1237 = vld [vmem:[%s1 + $0x38] sm:$0xf]
          %v1238 = vld [vmem:[%s1 + $0x3c] sm:$0xf]
          %v1239 = vpack.c.bf16 %v1222, %v1221
          %v1240 = vld [vmem:[#allocation6] sm:$0x1]
          %v1242 = vlaneseq
          %v1243 = vshrl.u32 %v1242, 7
          %v1244 = vsub.s32 0, %v1243
          %v1245 = vrot.slane %v1240, %v1244
          %v1263 = vunpack.c.l.b16 %v1223
          %v1264 = vunpack.c.l.b16 %v1224
          %v1265 = vunpack.c.l.b16 %v1225
          %v1266 = vunpack.c.l.b16 %v1226
          %v1267 = vunpack.c.l.b16 %v1227
          %v1268 = vunpack.c.l.b16 %v1228
          %v1269 = vunpack.c.l.b16 %v1229
          %v1270 = vunpack.c.l.b16 %v1230
          %v1271 = vunpack.c.l.b16 %v1231
          %v1272 = vunpack.c.l.b16 %v1232
          %v1273 = vunpack.c.l.b16 %v1233
          %v1274 = vunpack.c.l.b16 %v1234
          %v1275 = vunpack.c.l.b16 %v1235
          %v1276 = vunpack.c.l.b16 %v1236
          %v1277 = vunpack.c.l.b16 %v1237
          %v1278 = vunpack.c.l.b16 %v1238
          %v1279 = vpack.c.b16 %v1264, %v1263
          %v1280 = vpack.c.b16 %v1266, %v1265
          %v1281 = vpack.c.b16 %v1268, %v1267
          %v1282 = vpack.c.b16 %v1270, %v1269
          %v1283 = vpack.c.b16 %v1272, %v1271
          %v1284 = vpack.c.b16 %v1274, %v1273
          %v1285 = vpack.c.b16 %v1276, %v1275
          %v1286 = vpack.c.b16 %v1278, %v1277
          %1295 = vmatprep.subr.bf16.mxu0 0
          %1296 = vmatpush1.bf16.msra.mxu0 %v1279
          %1297 = vmatprep.subr.bf16.mxu0 0
          %1298 = vmatpush1.bf16.msra.mxu0 %v1280
          %1299 = vmatprep.subr.bf16.mxu0 0
          %1300 = vmatpush1.bf16.msra.mxu0 %v1281
          %1301 = vmatprep.subr.bf16.mxu0 0
          %1302 = vmatpush1.bf16.msra.mxu0 %v1282
          %1303 = vmatprep.subr.bf16.mxu0 0
          %1304 = vmatpush1.bf16.msra.mxu0 %v1283
          %1305 = vmatprep.subr.bf16.mxu0 0
          %1306 = vmatpush1.bf16.msra.mxu0 %v1284
          %1307 = vmatprep.subr.bf16.mxu0 0
          %1308 = vmatpush1.bf16.msra.mxu0 %v1285
          %1309 = vmatprep.subr.bf16.mxu0 0
          %1310 = vmatpush1.bf16.msra.mxu0 %v1286
          %1311 = vmatprep.subr.bf16.mxu0 0
          %1312 = vmatpush1.bf16.msra.mxu0 0
          %1313 = vmatprep.subr.bf16.mxu0 0
          %1314 = vmatpush1.bf16.msra.mxu0 0
          %1315 = vmatprep.subr.bf16.mxu0 0
          %1316 = vmatpush1.bf16.msra.mxu0 0
          %1317 = vmatprep.subr.bf16.mxu0 0
          %1318 = vmatpush1.bf16.msra.mxu0 0
          %1319 = vmatprep.subr.bf16.mxu0 0
          %1320 = vmatpush1.bf16.msra.mxu0 0
          %1321 = vmatprep.subr.bf16.mxu0 0
          %1322 = vmatpush1.bf16.msra.mxu0 0
          %1323 = vmatprep.subr.bf16.mxu0 0
          %1324 = vmatpush1.bf16.msra.mxu0 0
          %1325 = vmatprep.subr.bf16.mxu0 0
          %1326 = vmatpush1.bf16.msra.mxu0 0
          %1327 = vmatprep.mubr.bf16.mxu0 0
          %1328 = vmatmul.mubr.bf16.gmra.mrb[0].mxu0 %v1239
          %v1329 = vpop.f32.mrb[0].mxu0
          %v1330 = vadd.f32 %v1245, %v1329
          %v1331 = vpop.f32.mrb[0].mxu0
          %v1332 = vpop.f32.mrb[0].mxu0
          %v1333 = vadd.f32 %v1245, %v1332
          %v1334 = vpop.f32.mrb[0].mxu0
          %1335 = vdwg.mxu0
          %vm1336 = vcmask 523264
          %v1337 = vsel %vm1336, %v1330, 0.0
          %v1338 = vsel %vm1336, %v1333, 0.0
          %v1339 = vadd.f32 %v1337, %v1338
          %v1340 = vrot.slane %v1339, 4
          %v1341 = vadd.f32 %v1339, %v1340
          %v1342 = vrot.slane %v1341, 2
          %v1343 = vadd.f32 %v1341, %v1342
          %v1344 = vrot.slane %v1343, 1
          %v1345 = vadd.f32 %v1343, %v1344
          %v1346 = vmul.f32 %v1330, %v1330
          %v1347 = vmul.f32 %v1333, %v1333
          %v1348 = vsel %vm1336, %v1346, 0.0
          %v1349 = vsel %vm1336, %v1347, 0.0
          %v1350 = vadd.f32 %v1348, %v1349
          %v1351 = vrot.slane %v1350, 4
          %v1352 = vadd.f32 %v1350, %v1351
          %v1353 = vrot.slane %v1352, 2
          %v1354 = vadd.f32 %v1352, %v1353
          %v1355 = vrot.slane %v1354, 1
          %v1356 = vadd.f32 %v1354, %v1355
          %v1357 = vld [vmem:[#allocation11] sm:$0xff]
          %v1358 = vld [vmem:[#allocation11 + $0x8] sm:$0xff]
          %v1359 = vld [vmem:[#allocation11 + $0x10] sm:$0xff]
          %v1360 = vld [vmem:[#allocation11 + $0x18] sm:$0xff]
          %v1361 = vld [vmem:[#allocation11 + $0x20] sm:$0xff]
          %v1362 = vld [vmem:[#allocation11 + $0x28] sm:$0xff]
          %v1363 = vld [vmem:[#allocation11 + $0x30] sm:$0xff]
          %v1364 = vld [vmem:[#allocation11 + $0x38] sm:$0xff]
          %v1366 = vsel %vm1336, %v1345, 0
          %1368 = vmatprep.subr.mxu0 0.0
          %1369 = vmatpush1.msra.mxu0 %v1357
          %1370 = vmatprep.subr.mxu0 0.0
          %1371 = vmatpush1.msra.mxu0 %v1358
          %1372 = vmatprep.subr.mxu0 0.0
          %1373 = vmatpush1.msra.mxu0 %v1359
          %1374 = vmatprep.subr.mxu0 0.0
          %1375 = vmatpush1.msra.mxu0 %v1360
          %1376 = vmatprep.subr.mxu0 0.0
          %1377 = vmatpush1.msra.mxu0 %v1361
          %1378 = vmatprep.subr.mxu0 0.0
          %1379 = vmatpush1.msra.mxu0 %v1362
          %1380 = vmatprep.subr.mxu0 0.0
          %1381 = vmatpush1.msra.mxu0 %v1363
          %1382 = vmatprep.subr.mxu0 0.0
          %1383 = vmatpush1.msra.mxu0 %v1364
          %1384 = vmatprep.subr.mxu0 0.0
          %1385 = vmatpush1.msra.mxu0 0.0
          %1386 = vmatprep.subr.mxu0 0.0
          %1387 = vmatpush1.msra.mxu0 0.0
          %1388 = vmatprep.subr.mxu0 0.0
          %1389 = vmatpush1.msra.mxu0 0.0
          %1390 = vmatprep.subr.mxu0 0.0
          %1391 = vmatpush1.msra.mxu0 0.0
          %1392 = vmatprep.subr.mxu0 0.0
          %1393 = vmatpush1.msra.mxu0 0.0
          %1394 = vmatprep.subr.mxu0 0.0
          %1395 = vmatpush1.msra.mxu0 0.0
          %1396 = vmatprep.subr.mxu0 0.0
          %1397 = vmatpush1.msra.mxu0 0.0
          %1398 = vmatprep.subr.mxu0 0.0
          %1399 = vmatpush1.msra.mxu0 0.0
          %1400 = vmatprep.subr.mxu0 0.0
          %1401 = vmatpush1.msra.mxu0 0.0
          %1402 = vmatprep.subr.mxu0 0.0
          %1403 = vmatpush1.msra.mxu0 0.0
          %1404 = vmatprep.subr.mxu0 0.0
          %1405 = vmatpush1.msra.mxu0 0.0
          %1406 = vmatprep.subr.mxu0 0.0
          %1407 = vmatpush1.msra.mxu0 0.0
          %1408 = vmatprep.subr.mxu0 0.0
          %1409 = vmatpush1.msra.mxu0 0.0
          %1410 = vmatprep.subr.mxu0 0.0
          %1411 = vmatpush1.msra.mxu0 0.0
          %1412 = vmatprep.subr.mxu0 0.0
          %1413 = vmatpush1.msra.mxu0 0.0
          %1414 = vmatprep.subr.mxu0 0.0
          %1415 = vmatpush1.msra.mxu0 0.0
          %1416 = vmatprep.subr.mxu0 0.0
          %1417 = vmatpush1.msra.mxu0 0.0
          %1418 = vmatprep.subr.mxu0 0.0
          %1419 = vmatpush1.msra.mxu0 0.0
          %1420 = vmatprep.subr.mxu0 0.0
          %1421 = vmatpush1.msra.mxu0 0.0
          %1422 = vmatprep.subr.mxu0 0.0
          %1423 = vmatpush1.msra.mxu0 0.0
          %1424 = vmatprep.subr.mxu0 0.0
          %1425 = vmatpush1.msra.mxu0 0.0
          %1426 = vmatprep.subr.mxu0 0.0
          %1427 = vmatpush1.msra.mxu0 0.0
          %1428 = vmatprep.subr.mxu0 0.0
          %1429 = vmatpush1.msra.mxu0 0.0
          %1430 = vmatprep.subr.mxu0 0.0
          %1431 = vmatpush1.msra.mxu0 0.0
          %1432 = vmatprep.mubr.f32.mxu0 0.0
          %1433 = vmatmul.mubr.f32.gmra.mrb[0].mxu0 %v1366
          %v1434 = vpop.f32.mrb[0].mxu0
          %v1435 = vadd.f32 0.0, %v1434
          %v1436 = vpop.f32.mrb[0].mxu0
          %1437 = vdwg.mxu0
          %v1439 = vsel %vm1336, %v1356, 0
          %1441 = vmatprep.subr.mxu0 0.0
          %1442 = vmatpush1.msra.mxu0 %v1357
          %1443 = vmatprep.subr.mxu0 0.0
          %1444 = vmatpush1.msra.mxu0 %v1358
          %1445 = vmatprep.subr.mxu0 0.0
          %1446 = vmatpush1.msra.mxu0 %v1359
          %1447 = vmatprep.subr.mxu0 0.0
          %1448 = vmatpush1.msra.mxu0 %v1360
          %1449 = vmatprep.subr.mxu0 0.0
          %1450 = vmatpush1.msra.mxu0 %v1361
          %1451 = vmatprep.subr.mxu0 0.0
          %1452 = vmatpush1.msra.mxu0 %v1362
          %1453 = vmatprep.subr.mxu0 0.0
          %1454 = vmatpush1.msra.mxu0 %v1363
          %1455 = vmatprep.subr.mxu0 0.0
          %1456 = vmatpush1.msra.mxu0 %v1364
          %1457 = vmatprep.subr.mxu0 0.0
          %1458 = vmatpush1.msra.mxu0 0.0
          %1459 = vmatprep.subr.mxu0 0.0
          %1460 = vmatpush1.msra.mxu0 0.0
          %1461 = vmatprep.subr.mxu0 0.0
          %1462 = vmatpush1.msra.mxu0 0.0
          %1463 = vmatprep.subr.mxu0 0.0
          %1464 = vmatpush1.msra.mxu0 0.0
          %1465 = vmatprep.subr.mxu0 0.0
          %1466 = vmatpush1.msra.mxu0 0.0
          %1467 = vmatprep.subr.mxu0 0.0
          %1468 = vmatpush1.msra.mxu0 0.0
          %1469 = vmatprep.subr.mxu0 0.0
          %1470 = vmatpush1.msra.mxu0 0.0
          %1471 = vmatprep.subr.mxu0 0.0
          %1472 = vmatpush1.msra.mxu0 0.0
          %1473 = vmatprep.subr.mxu0 0.0
          %1474 = vmatpush1.msra.mxu0 0.0
          %1475 = vmatprep.subr.mxu0 0.0
          %1476 = vmatpush1.msra.mxu0 0.0
          %1477 = vmatprep.subr.mxu0 0.0
          %1478 = vmatpush1.msra.mxu0 0.0
          %1479 = vmatprep.subr.mxu0 0.0
          %1480 = vmatpush1.msra.mxu0 0.0
          %1481 = vmatprep.subr.mxu0 0.0
          %1482 = vmatpush1.msra.mxu0 0.0
          %1483 = vmatprep.subr.mxu0 0.0
          %1484 = vmatpush1.msra.mxu0 0.0
          %1485 = vmatprep.subr.mxu0 0.0
          %1486 = vmatpush1.msra.mxu0 0.0
          %1487 = vmatprep.subr.mxu0 0.0
          %1488 = vmatpush1.msra.mxu0 0.0
          %1489 = vmatprep.subr.mxu0 0.0
          %1490 = vmatpush1.msra.mxu0 0.0
          %1491 = vmatprep.subr.mxu0 0.0
          %1492 = vmatpush1.msra.mxu0 0.0
          %1493 = vmatprep.subr.mxu0 0.0
          %1494 = vmatpush1.msra.mxu0 0.0
          %1495 = vmatprep.subr.mxu0 0.0
          %1496 = vmatpush1.msra.mxu0 0.0
          %1497 = vmatprep.subr.mxu0 0.0
          %1498 = vmatpush1.msra.mxu0 0.0
          %1499 = vmatprep.subr.mxu0 0.0
          %1500 = vmatpush1.msra.mxu0 0.0
          %1501 = vmatprep.subr.mxu0 0.0
          %1502 = vmatpush1.msra.mxu0 0.0
          %1503 = vmatprep.subr.mxu0 0.0
          %1504 = vmatpush1.msra.mxu0 0.0
          %1505 = vmatprep.mubr.f32.mxu0 0.0
          %1506 = vmatmul.mubr.f32.gmra.mrb[0].mxu0 %v1439
          %v1507 = vpop.f32.mrb[0].mxu0
          %v1508 = vadd.f32 0.0, %v1507
          %v1509 = vpop.f32.mrb[0].mxu0
          %1510 = vdwg.mxu0
          %v1511 = vmul.f32 %v1435, %v1435
          %v1512 = vsub.f32 %v1508, %v1511
          %v1513 = vmax.f32 %v1512, 0.0
          %v1514 = vlaneseq
          %v1515 = vshrl.u32 %v1514, 7
          %v1516 = vsub.s32 0, %v1515
          %v1517 = vrot.slane %v1435, %v1516
          %v1518 = vsub.f32 %v1330, %v1517
          %v1519 = vsub.f32 %v1333, %v1517
          %v1520 = vadd.f32 %v1513, 1e-05
          %v1521 = vrsqrt.pop %v1520
          %v1522 = vlaneseq
          %v1523 = vshrl.u32 %v1522, 7
          %v1524 = vsub.s32 0, %v1523
          %v1525 = vrot.slane %v1521, %v1524
          %v1526 = vmul.f32 %v1518, %v1525
          %v1527 = vmul.f32 %v1519, %v1525
          %v1528 = vld [vmem:[#allocation8] sm:$0x1]
          %v1530 = vlaneseq
          %v1531 = vshrl.u32 %v1530, 7
          %v1532 = vsub.s32 0, %v1531
          %v1533 = vrot.slane %v1528, %v1532
          %v1535 = vmul.f32 %v1526, %v1533
          %v1536 = vmul.f32 %v1527, %v1533
          %v1537 = vld [vmem:[#allocation9] sm:$0x1]
          %v1539 = vlaneseq
          %v1540 = vshrl.u32 %v1539, 7
          %v1541 = vsub.s32 0, %v1540
          %v1542 = vrot.slane %v1537, %v1541
          %v1544 = vadd.f32 %v1535, %v1542
          %v1545 = vadd.f32 %v1536, %v1542
          %vm1546 = vcmp.ge.f32.partialorder %v1544, 0.0
          %vm1547 = vcmp.ge.f32.partialorder %v1545, 0.0
          %v1548 = vmul.f32 %v1544, 0.01
          %v1549 = vmul.f32 %v1545, 0.01
          %v1550 = vsel %vm1546, %v1544, %v1548
          %v1551 = vsel %vm1547, %v1545, %v1549
          %v1552 = vrot.slane %v1550, 7
          %v1553 = vrot.slane %v1551, 7
          %v1554 = vlaneseq
          %v1555 = vshrl.u32 %v1554, 7
          %vm1556 = vcmp.lt.s32.totalorder %v1555, 1
          %v1557 = vsel %vm1556, %v1552, %v1553
          %v1558 = vsel %vm1556, %v1553, %v1552
          %v1559 = vld [vmem:[%s8] sm:$0xff]
          %v1560 = vld [vmem:[%s8 + $0x8] sm:$0xff]
          %1562 = vset.pattern.permute.xlu0 0
          %1563 = vperm.xlu0 %1562, %v1559
          %v1564 = vpop.permute.xlu0 %1563
          %1567 = vset.pattern.permute.xlu0 0
          %1568 = vperm.xlu0 %1567, %v1560
          %v1569 = vpop.permute.xlu0 %1568
          %v1571 = vmul.f32 %v1558, %v1564
          %v1572 = vmul.f32 %v1557, %v1569
          %v1573 = vld [vmem:[%s6] sm:$0xf]
          %v1574 = vld [vmem:[%s6 + $0x4] sm:$0xf]
          %v1575 = vld [vmem:[%s6 + $0x8] sm:$0xf]
          %v1576 = vld [vmem:[%s6 + $0xc] sm:$0xf]
          %v1577 = vld [vmem:[%s6 + $0x10] sm:$0xf]
          %v1578 = vld [vmem:[%s6 + $0x14] sm:$0xf]
          %v1579 = vld [vmem:[%s6 + $0x18] sm:$0xf]
          %v1580 = vld [vmem:[%s6 + $0x1c] sm:$0xf]
          %v1581 = vpack.c.bf16 %v1572, %v1571
          %s1582 = scalar_lea.vmem %s6, 32
          %v1583 = vld [vmem:[%s1582] sm:$0xf]
          %v1584 = vld [vmem:[%s1582 + $0x4] sm:$0xf]
          %v1585 = vld [vmem:[%s1582 + $0x8] sm:$0xf]
          %v1586 = vld [vmem:[%s1582 + $0xc] sm:$0xf]
          %v1587 = vld [vmem:[%s1582 + $0x10] sm:$0xf]
          %v1588 = vld [vmem:[%s1582 + $0x14] sm:$0xf]
          %v1589 = vld [vmem:[%s1582 + $0x18] sm:$0xf]
          %v1590 = vld [vmem:[%s1582 + $0x1c] sm:$0xf]
          %v1591 = vpack.c.bf16 %v1551, %v1550
          %v1600 = vunpack.c.l.b16 %v1583
          %v1601 = vunpack.c.l.b16 %v1584
          %v1602 = vunpack.c.l.b16 %v1585
          %v1603 = vunpack.c.l.b16 %v1586
          %v1604 = vunpack.c.l.b16 %v1587
          %v1605 = vunpack.c.l.b16 %v1588
          %v1606 = vunpack.c.l.b16 %v1589
          %v1607 = vunpack.c.l.b16 %v1590
          %v1608 = vpack.c.b16 %v1601, %v1600
          %v1609 = vpack.c.b16 %v1603, %v1602
          %v1610 = vpack.c.b16 %v1605, %v1604
          %v1611 = vpack.c.b16 %v1607, %v1606
          %v1617 = vsel %vm1336, %v1591, 0
          %1619 = vmatprep.subr.bf16.mxu0 0
          %1620 = vmatpush1.bf16.msra.mxu0 %v1608
          %1621 = vmatprep.subr.bf16.mxu0 0
          %1622 = vmatpush1.bf16.msra.mxu0 %v1609
          %1623 = vmatprep.subr.bf16.mxu0 0
          %1624 = vmatpush1.bf16.msra.mxu0 %v1610
          %1625 = vmatprep.subr.bf16.mxu0 0
          %1626 = vmatpush1.bf16.msra.mxu0 %v1611
          %1627 = vmatprep.subr.bf16.mxu0 0
          %1628 = vmatpush1.bf16.msra.mxu0 0
          %1629 = vmatprep.subr.bf16.mxu0 0
          %1630 = vmatpush1.bf16.msra.mxu0 0
          %1631 = vmatprep.subr.bf16.mxu0 0
          %1632 = vmatpush1.bf16.msra.mxu0 0
          %1633 = vmatprep.subr.bf16.mxu0 0
          %1634 = vmatpush1.bf16.msra.mxu0 0
          %1635 = vmatprep.subr.bf16.mxu0 0
          %1636 = vmatpush1.bf16.msra.mxu0 0
          %1637 = vmatprep.subr.bf16.mxu0 0
          %1638 = vmatpush1.bf16.msra.mxu0 0
          %1639 = vmatprep.subr.bf16.mxu0 0
          %1640 = vmatpush1.bf16.msra.mxu0 0
          %1641 = vmatprep.subr.bf16.mxu0 0
          %1642 = vmatpush1.bf16.msra.mxu0 0
          %1643 = vmatprep.subr.bf16.mxu0 0
          %1644 = vmatpush1.bf16.msra.mxu0 0
          %1645 = vmatprep.subr.bf16.mxu0 0
          %1646 = vmatpush1.bf16.msra.mxu0 0
          %1647 = vmatprep.subr.bf16.mxu0 0
          %1648 = vmatpush1.bf16.msra.mxu0 0
          %1649 = vmatprep.subr.bf16.mxu0 0
          %1650 = vmatpush1.bf16.msra.mxu0 0
          %1651 = vmatprep.mubr.bf16.mxu0 0
          %1652 = vmatmul.mubr.bf16.gmra.mrb[0].mxu0 %v1617
          %v1653 = vpop.f32.mrb[0].mxu0
          %v1654 = vadd.f32 0.0, %v1653
          %v1655 = vpop.f32.mrb[0].mxu0
          %v1656 = vpop.f32.mrb[0].mxu0
          %v1657 = vadd.f32 0.0, %v1656
          %v1658 = vpop.f32.mrb[0].mxu0
          %1659 = vdwg.mxu0
          %v1668 = vunpack.c.l.b16 %v1573
          %v1669 = vunpack.c.l.b16 %v1574
          %v1670 = vunpack.c.l.b16 %v1575
          %v1671 = vunpack.c.l.b16 %v1576
          %v1672 = vunpack.c.l.b16 %v1577
          %v1673 = vunpack.c.l.b16 %v1578
          %v1674 = vunpack.c.l.b16 %v1579
          %v1675 = vunpack.c.l.b16 %v1580
          %v1676 = vpack.c.b16 %v1669, %v1668
          %v1677 = vpack.c.b16 %v1671, %v1670
          %v1678 = vpack.c.b16 %v1673, %v1672
          %v1679 = vpack.c.b16 %v1675, %v1674
          %v1685 = vsel %vm1336, %v1581, 0
          %1687 = vmatprep.subr.bf16.mxu0 0
          %1688 = vmatpush1.bf16.msra.mxu0 %v1676
          %1689 = vmatprep.subr.bf16.mxu0 0
          %1690 = vmatpush1.bf16.msra.mxu0 %v1677
          %1691 = vmatprep.subr.bf16.mxu0 0
          %1692 = vmatpush1.bf16.msra.mxu0 %v1678
          %1693 = vmatprep.subr.bf16.mxu0 0
          %1694 = vmatpush1.bf16.msra.mxu0 %v1679
          %1695 = vmatprep.subr.bf16.mxu0 0
          %1696 = vmatpush1.bf16.msra.mxu0 0
          %1697 = vmatprep.subr.bf16.mxu0 0
          %1698 = vmatpush1.bf16.msra.mxu0 0
          %1699 = vmatprep.subr.bf16.mxu0 0
          %1700 = vmatpush1.bf16.msra.mxu0 0
          %1701 = vmatprep.subr.bf16.mxu0 0
          %1702 = vmatpush1.bf16.msra.mxu0 0
          %1703 = vmatprep.subr.bf16.mxu0 0
          %1704 = vmatpush1.bf16.msra.mxu0 0
          %1705 = vmatprep.subr.bf16.mxu0 0
          %1706 = vmatpush1.bf16.msra.mxu0 0
          %1707 = vmatprep.subr.bf16.mxu0 0
          %1708 = vmatpush1.bf16.msra.mxu0 0
          %1709 = vmatprep.subr.bf16.mxu0 0
          %1710 = vmatpush1.bf16.msra.mxu0 0
          %1711 = vmatprep.subr.bf16.mxu0 0
          %1712 = vmatpush1.bf16.msra.mxu0 0
          %1713 = vmatprep.subr.bf16.mxu0 0
          %1714 = vmatpush1.bf16.msra.mxu0 0
          %1715 = vmatprep.subr.bf16.mxu0 0
          %1716 = vmatpush1.bf16.msra.mxu0 0
          %1717 = vmatprep.subr.bf16.mxu0 0
          %1718 = vmatpush1.bf16.msra.mxu0 0
          %1719 = vmatprep.mubr.bf16.mxu0 0
          %1720 = vmatmul.mubr.bf16.gmra.mrb[0].mxu0 %v1685
          %v1721 = vpop.f32.mrb[0].mxu0
          %v1722 = vadd.f32 %v1654, %v1721
          %v1723 = vpop.f32.mrb[0].mxu0
          %v1724 = vpop.f32.mrb[0].mxu0
          %v1725 = vadd.f32 %v1657, %v1724
          %v1726 = vpop.f32.mrb[0].mxu0
          %1727 = vdwg.mxu0
          %v1728 = vrot.slane %v1550, 1
          %v1729 = vrot.slane %v1551, 1
          %vm1730 = vcmp.lt.s32.totalorder %v1555, 7
          %v1731 = vsel %vm1730, %v1728, %v1729
          %v1732 = vsel %vm1730, %v1729, %v1728
          %s1733 = scalar_lea.vmem %s8, 32
          %v1734 = vld [vmem:[%s1733] sm:$0xff]
          %v1735 = vld [vmem:[%s1733 + $0x8] sm:$0xff]
          %1737 = vset.pattern.permute.xlu0 0
          %1738 = vperm.xlu0 %1737, %v1734
          %v1739 = vpop.permute.xlu0 %1738
          %1742 = vset.pattern.permute.xlu0 0
          %1743 = vperm.xlu0 %1742, %v1735
          %v1744 = vpop.permute.xlu0 %1743
          %v1746 = vmul.f32 %v1731, %v1739
          %v1747 = vmul.f32 %v1732, %v1744
          %s1748 = scalar_lea.vmem %s6, 64
          %v1749 = vld [vmem:[%s1748] sm:$0xf]
          %v1750 = vld [vmem:[%s1748 + $0x4] sm:$0xf]
          %v1751 = vld [vmem:[%s1748 + $0x8] sm:$0xf]
          %v1752 = vld [vmem:[%s1748 + $0xc] sm:$0xf]
          %v1753 = vld [vmem:[%s1748 + $0x10] sm:$0xf]
          %v1754 = vld [vmem:[%s1748 + $0x14] sm:$0xf]
          %v1755 = vld [vmem:[%s1748 + $0x18] sm:$0xf]
          %v1756 = vld [vmem:[%s1748 + $0x1c] sm:$0xf]
          %v1757 = vpack.c.bf16 %v1747, %v1746
          %v1766 = vunpack.c.l.b16 %v1749
          %v1767 = vunpack.c.l.b16 %v1750
          %v1768 = vunpack.c.l.b16 %v1751
          %v1769 = vunpack.c.l.b16 %v1752
          %v1770 = vunpack.c.l.b16 %v1753
          %v1771 = vunpack.c.l.b16 %v1754
          %v1772 = vunpack.c.l.b16 %v1755
          %v1773 = vunpack.c.l.b16 %v1756
          %v1774 = vpack.c.b16 %v1767, %v1766
          %v1775 = vpack.c.b16 %v1769, %v1768
          %v1776 = vpack.c.b16 %v1771, %v1770
          %v1777 = vpack.c.b16 %v1773, %v1772
          %v1783 = vsel %vm1336, %v1757, 0
          %1785 = vmatprep.subr.bf16.mxu0 0
          %1786 = vmatpush1.bf16.msra.mxu0 %v1774
          %1787 = vmatprep.subr.bf16.mxu0 0
          %1788 = vmatpush1.bf16.msra.mxu0 %v1775
          %1789 = vmatprep.subr.bf16.mxu0 0
          %1790 = vmatpush1.bf16.msra.mxu0 %v1776
          %1791 = vmatprep.subr.bf16.mxu0 0
          %1792 = vmatpush1.bf16.msra.mxu0 %v1777
          %1793 = vmatprep.subr.bf16.mxu0 0
          %1794 = vmatpush1.bf16.msra.mxu0 0
          %1795 = vmatprep.subr.bf16.mxu0 0
          %1796 = vmatpush1.bf16.msra.mxu0 0
          %1797 = vmatprep.subr.bf16.mxu0 0
          %1798 = vmatpush1.bf16.msra.mxu0 0
          %1799 = vmatprep.subr.bf16.mxu0 0
          %1800 = vmatpush1.bf16.msra.mxu0 0
          %1801 = vmatprep.subr.bf16.mxu0 0
          %1802 = vmatpush1.bf16.msra.mxu0 0
          %1803 = vmatprep.subr.bf16.mxu0 0
          %1804 = vmatpush1.bf16.msra.mxu0 0
          %1805 = vmatprep.subr.bf16.mxu0 0
          %1806 = vmatpush1.bf16.msra.mxu0 0
          %1807 = vmatprep.subr.bf16.mxu0 0
          %1808 = vmatpush1.bf16.msra.mxu0 0
          %1809 = vmatprep.subr.bf16.mxu0 0
          %1810 = vmatpush1.bf16.msra.mxu0 0
          %1811 = vmatprep.subr.bf16.mxu0 0
          %1812 = vmatpush1.bf16.msra.mxu0 0
          %1813 = vmatprep.subr.bf16.mxu0 0
          %1814 = vmatpush1.bf16.msra.mxu0 0
          %1815 = vmatprep.subr.bf16.mxu0 0
          %1816 = vmatpush1.bf16.msra.mxu0 0
          %1817 = vmatprep.mubr.bf16.mxu0 0
          %1818 = vmatmul.mubr.bf16.gmra.mrb[0].mxu0 %v1783
          %v1819 = vpop.f32.mrb[0].mxu0
          %v1820 = vadd.f32 0.0, %v1819
          %v1821 = vpop.f32.mrb[0].mxu0
          %v1822 = vpop.f32.mrb[0].mxu0
          %v1823 = vadd.f32 0.0, %v1822
          %v1824 = vpop.f32.mrb[0].mxu0
          %1825 = vdwg.mxu0
          %v1826 = vadd.f32 %v1722, %v1820
          %v1827 = vadd.f32 %v1725, %v1823
          %v1828 = vld [vmem:[#allocation12] sm:$0x1]
          %v1830 = vlaneseq
          %v1831 = vshrl.u32 %v1830, 7
          %v1832 = vsub.s32 0, %v1831
          %v1833 = vrot.slane %v1828, %v1832
          %v1835 = vadd.f32 %v1826, %v1833
          %v1836 = vadd.f32 %v1827, %v1833
          %1837 = vst.msk [vmem:[#allocation2] sm:$0xff] %vm1336, %v1835
          %1838 = vst.msk [vmem:[#allocation2 + $0x8] sm:$0xff] %vm1336, %v1836
        $region176: #{tpu_custom_call.1} parent=127 // pred_fallthru
          _
        %v1839 = vld [vmem:[#allocation2] sm:$0xff]
        %v1840 = vld [vmem:[#allocation2 + $0x8] sm:$0xff]
        %v1841 = vld [vmem:[%s1025] sm:$0x1]
        %v1842 = vld [vmem:[%s1033] sm:$0x1]
        %vm1843 = vcmask 523264
        %v1844 = vsel %vm1843, %v1839, 0.0
        %1845 = vadd.xlane.f32.xlu0 %v1844
        %v1846 = vpop.xlane.xlu0 %1845
        %v1847 = vsel %vm1843, %v1840, 0.0
        %1848 = vadd.xlane.f32.xlu0 %v1847
        %v1849 = vpop.xlane.xlu0 %1848
        %v1850 = vrcp.pop 64.0
        %v1851 = vmul.f32 %v1846, %v1850
        %v1852 = vmul.f32 %v1849, %v1850
        %v1853 = vsub.f32 %v1839, %v1851
        %v1854 = vsub.f32 %v1840, %v1852
        %v1855 = vmul.f32 %v1853, %v1853
        %v1856 = vmul.f32 %v1854, %v1854
        %v1857 = vsel %vm1843, %v1855, 0.0
        %1858 = vadd.xlane.f32.xlu0 %v1857
        %v1859 = vpop.xlane.xlu0 %1858
        %v1860 = vsel %vm1843, %v1856, 0.0
        %1861 = vadd.xlane.f32.xlu0 %v1860
        %v1862 = vpop.xlane.xlu0 %1861
        %v1863 = vmul.f32 %v1859, %v1850
        %v1864 = vmul.f32 %v1862, %v1850
        %v1865 = vadd.f32 %v1863, 1e-05
        %v1866 = vadd.f32 %v1864, 1e-05
        %v1867 = vrsqrt.pop %v1865
        %v1868 = vrsqrt.pop %v1866
        %v1869 = vmul.f32 %v1853, %v1867
        %v1870 = vmul.f32 %v1854, %v1868
        %v1872 = vlaneseq
        %v1873 = vshrl.u32 %v1872, 7
        %v1874 = vsub.s32 0, %v1873
        %v1875 = vrot.slane %v1841, %v1874
        %v1877 = vmul.f32 %v1869, %v1875
        %v1878 = vmul.f32 %v1870, %v1875
        %v1880 = vlaneseq
        %v1881 = vshrl.u32 %v1880, 7
        %v1882 = vsub.s32 0, %v1881
        %v1883 = vrot.slane %v1842, %v1882
        %v1885 = vadd.f32 %v1877, %v1883
        %v1886 = vadd.f32 %v1878, %v1883
        %v1887 = vpack.c.bf16 %v1886, %v1885
        %v1888 = vld [vmem:[%s1188] sm:$0xff]
        %v1889 = vld [vmem:[%s1188 + $0x8] sm:$0xff]
        %v1890 = vld [vmem:[%s1188 + $0x10] sm:$0xff]
        %v1891 = vld [vmem:[%s1188 + $0x18] sm:$0xff]
        %v1892 = vld [vmem:[%s1188 + $0x20] sm:$0xff]
        %v1893 = vld [vmem:[%s1188 + $0x28] sm:$0xff]
        %v1894 = vld [vmem:[%s1188 + $0x30] sm:$0xff]
        %v1895 = vld [vmem:[%s1188 + $0x38] sm:$0xff]
        %v1904 = vunpack.c.l.b16 %v1888
        %v1905 = vunpack.c.h.b16 %v1888
        %v1906 = vunpack.c.l.b16 %v1889
        %v1907 = vunpack.c.h.b16 %v1889
        %v1908 = vunpack.c.l.b16 %v1890
        %v1909 = vunpack.c.h.b16 %v1890
        %v1910 = vunpack.c.l.b16 %v1891
        %v1911 = vunpack.c.h.b16 %v1891
        %v1912 = vunpack.c.l.b16 %v1892
        %v1913 = vunpack.c.h.b16 %v1892
        %v1914 = vunpack.c.l.b16 %v1893
        %v1915 = vunpack.c.h.b16 %v1893
        %v1916 = vunpack.c.l.b16 %v1894
        %v1917 = vunpack.c.h.b16 %v1894
        %v1918 = vunpack.c.l.b16 %v1895
        %v1919 = vunpack.c.h.b16 %v1895
        %v1920 = vpack.c.b16 %v1906, %v1904
        %v1921 = vpack.c.b16 %v1907, %v1905
        %v1922 = vpack.c.b16 %v1910, %v1908
        %v1923 = vpack.c.b16 %v1911, %v1909
        %v1924 = vpack.c.b16 %v1914, %v1912
        %v1925 = vpack.c.b16 %v1915, %v1913
        %v1926 = vpack.c.b16 %v1918, %v1916
        %v1927 = vpack.c.b16 %v1919, %v1917
        %v1937 = vsel %vm1843, %v1887, 0
        %1939 = vmatprep.subr.bf16.mxu0 %v1921
        %1940 = vmatpush1.bf16.msra.mxu0 %v1920
        %1941 = vmatprep.subr.bf16.mxu0 %v1923
        %1942 = vmatpush1.bf16.msra.mxu0 %v1922
        %1943 = vmatprep.subr.bf16.mxu0 %v1925
        %1944 = vmatpush1.bf16.msra.mxu0 %v1924
        %1945 = vmatprep.subr.bf16.mxu0 %v1927
        %1946 = vmatpush1.bf16.msra.mxu0 %v1926
        %1947 = vmatprep.subr.bf16.mxu0 0
        %1948 = vmatpush1.bf16.msra.mxu0 0
        %1949 = vmatprep.subr.bf16.mxu0 0
        %1950 = vmatpush1.bf16.msra.mxu0 0
        %1951 = vmatprep.subr.bf16.mxu0 0
        %1952 = vmatpush1.bf16.msra.mxu0 0
        %1953 = vmatprep.subr.bf16.mxu0 0
        %1954 = vmatpush1.bf16.msra.mxu0 0
        %1955 = vmatprep.subr.bf16.mxu0 0
        %1956 = vmatpush1.bf16.msra.mxu0 0
        %1957 = vmatprep.subr.bf16.mxu0 0
        %1958 = vmatpush1.bf16.msra.mxu0 0
        %1959 = vmatprep.subr.bf16.mxu0 0
        %1960 = vmatpush1.bf16.msra.mxu0 0
        %1961 = vmatprep.subr.bf16.mxu0 0
        %1962 = vmatpush1.bf16.msra.mxu0 0
        %1963 = vmatprep.subr.bf16.mxu0 0
        %1964 = vmatpush1.bf16.msra.mxu0 0
        %1965 = vmatprep.subr.bf16.mxu0 0
        %1966 = vmatpush1.bf16.msra.mxu0 0
        %1967 = vmatprep.subr.bf16.mxu0 0
        %1968 = vmatpush1.bf16.msra.mxu0 0
        %1969 = vmatprep.subr.bf16.mxu0 0
        %1970 = vmatpush1.bf16.msra.mxu0 0
        %1971 = vmatprep.mubr.bf16.mxu0 0
        %1972 = vmatmul.mubr.bf16.gmra.mrb[0].mxu0 %v1937
        %v1973 = vpop.f32.mrb[0].mxu0
        %v1974 = vadd.f32 0.0, %v1973
        %v1975 = vpop.f32.mrb[0].mxu0
        %v1976 = vadd.f32 0.0, %v1975
        %v1977 = vpop.f32.mrb[0].mxu0
        %v1978 = vadd.f32 0.0, %v1977
        %v1979 = vpop.f32.mrb[0].mxu0
        %v1980 = vadd.f32 0.0, %v1979
        %1981 = vdwg.mxu0
        %v1982 = vpack.c.bf16 %v1978, %v1974
        %v1983 = vpack.c.bf16 %v1980, %v1976
        %1985 = vrot.lane.b32.xlu0 %v1982, 64
        %v1986 = vpop.permute.xlu0 %1985
        %vm1987 = vcmask 130048
        %v1989 = vsel %vm1987, %v1982, 0
        %v1992 = vsel %vm1987, %v1986, 0
        %1994 = vmatprep.subr.bf16.mxu0 0
        %1995 = vmatpush1.bf16.xpose.msra.mxu0 %v1992
        %1996 = vmatprep.subr.bf16.mxu0 0
        %1997 = vmatpush1.bf16.xpose.msra.mxu0 0
        %1998 = vmatprep.subr.bf16.mxu0 0
        %1999 = vmatpush1.bf16.xpose.msra.mxu0 0
        %2000 = vmatprep.subr.bf16.mxu0 0
        %2001 = vmatpush1.bf16.xpose.msra.mxu0 0
        %2002 = vmatprep.subr.bf16.mxu0 0
        %2003 = vmatpush1.bf16.xpose.msra.mxu0 0
        %2004 = vmatprep.subr.bf16.mxu0 0
        %2005 = vmatpush1.bf16.xpose.msra.mxu0 0
        %2006 = vmatprep.subr.bf16.mxu0 0
        %2007 = vmatpush1.bf16.xpose.msra.mxu0 0
        %2008 = vmatprep.subr.bf16.mxu0 0
        %2009 = vmatpush1.bf16.xpose.msra.mxu0 0
        %2010 = vmatprep.subr.bf16.mxu0 0
        %2011 = vmatpush1.bf16.xpose.msra.mxu0 0
        %2012 = vmatprep.subr.bf16.mxu0 0
        %2013 = vmatpush1.bf16.xpose.msra.mxu0 0
        %2014 = vmatprep.subr.bf16.mxu0 0
        %2015 = vmatpush1.bf16.xpose.msra.mxu0 0
        %2016 = vmatprep.subr.bf16.mxu0 0
        %2017 = vmatpush1.bf16.xpose.msra.mxu0 0
        %2018 = vmatprep.subr.bf16.mxu0 0
        %2019 = vmatpush1.bf16.xpose.msra.mxu0 0
        %2020 = vmatprep.subr.bf16.mxu0 0
        %2021 = vmatpush1.bf16.xpose.msra.mxu0 0
        %2022 = vmatprep.subr.bf16.mxu0 0
        %2023 = vmatpush1.bf16.xpose.msra.mxu0 0
        %2024 = vmatprep.subr.bf16.mxu0 0
        %2025 = vmatpush1.bf16.xpose.msra.mxu0 0
        %2026 = vmatprep.mubr.bf16.mxu0 0
        %2027 = vmatmul.mubr.bf16.gmra.mrb[0].mxu0 %v1989
        %v2028 = vpop.f32.mrb[0].mxu0
        %v2029 = vadd.f32 0.0, %v2028
        %v2030 = vpop.f32.mrb[0].mxu0
        %v2031 = vpop.f32.mrb[0].mxu0
        %v2032 = vadd.f32 0.0, %v2031
        %v2033 = vpop.f32.mrb[0].mxu0
        %2034 = vdwg.mxu0
        %v2035 = vmul.f32 %v2029, 0.25
        %v2036 = vmul.f32 %v2032, 0.25
        %v2037 = vsel %vm1987, %v2035, -inf
        %2038 = vmax.xlane.f32.xlu0 %v2037
        %v2039 = vpop.xlane.xlu0 %2038
        %v2040 = vsel %vm1987, %v2036, -inf
        %2041 = vmax.xlane.f32.xlu0 %v2040
        %v2042 = vpop.xlane.xlu0 %2041
        %v2043 = vsub.f32 %v2035, %v2039
        %v2044 = vsub.f32 %v2036, %v2042
        %v2045 = vmul.f32 %v2043, 1.442695
        %v2046 = vpow.pop %v2045
        %v2047 = vmul.f32 %v2044, 1.442695
        %v2048 = vpow.pop %v2047
        %v2049 = vsel %vm1987, %v2046, 0.0
        %2050 = vadd.xlane.f32.xlu0 %v2049
        %v2051 = vpop.xlane.xlu0 %2050
        %v2052 = vsel %vm1987, %v2048, 0.0
        %2053 = vadd.xlane.f32.xlu0 %v2052
        %v2054 = vpop.xlane.xlu0 %2053
        %v2055 = vrcp.pop %v2051
        %v2056 = vrcp.pop %v2054
        %v2057 = vmul.f32 %v2046, %v2055
        %v2058 = vmul.f32 %v2048, %v2056
        %v2059 = vpack.c.bf16 %v2058, %v2057
        %v2061 = vsel %vm1987, %v2059, 0
        %2063 = vmatprep.subr.bf16.mxu0 0
        %2064 = vmatpush1.bf16.msra.mxu0 %v1983
        %2065 = vmatprep.subr.bf16.mxu0 0
        %2066 = vmatpush1.bf16.msra.mxu0 0
        %2067 = vmatprep.subr.bf16.mxu0 0
        %2068 = vmatpush1.bf16.msra.mxu0 0
        %2069 = vmatprep.subr.bf16.mxu0 0
        %2070 = vmatpush1.bf16.msra.mxu0 0
        %2071 = vmatprep.subr.bf16.mxu0 0
        %2072 = vmatpush1.bf16.msra.mxu0 0
        %2073 = vmatprep.subr.bf16.mxu0 0
        %2074 = vmatpush1.bf16.msra.mxu0 0
        %2075 = vmatprep.subr.bf16.mxu0 0
        %2076 = vmatpush1.bf16.msra.mxu0 0
        %2077 = vmatprep.subr.bf16.mxu0 0
        %2078 = vmatpush1.bf16.msra.mxu0 0
        %2079 = vmatprep.subr.bf16.mxu0 0
        %2080 = vmatpush1.bf16.msra.mxu0 0
        %2081 = vmatprep.subr.bf16.mxu0 0
        %2082 = vmatpush1.bf16.msra.mxu0 0
        %2083 = vmatprep.subr.bf16.mxu0 0
        %2084 = vmatpush1.bf16.msra.mxu0 0
        %2085 = vmatprep.subr.bf16.mxu0 0
        %2086 = vmatpush1.bf16.msra.mxu0 0
        %2087 = vmatprep.subr.bf16.mxu0 0
        %2088 = vmatpush1.bf16.msra.mxu0 0
        %2089 = vmatprep.subr.bf16.mxu0 0
        %2090 = vmatpush1.bf16.msra.mxu0 0
        %2091 = vmatprep.subr.bf16.mxu0 0
        %2092 = vmatpush1.bf16.msra.mxu0 0
        %2093 = vmatprep.subr.bf16.mxu0 0
        %2094 = vmatpush1.bf16.msra.mxu0 0
        %2095 = vmatprep.mubr.bf16.mxu0 0
        %2096 = vmatmul.mubr.bf16.gmra.mrb[0].mxu0 %v2061
        %v2097 = vpop.f32.mrb[0].mxu0
        %v2098 = vadd.f32 0.0, %v2097
        %v2099 = vpop.f32.mrb[0].mxu0
        %v2100 = vpop.f32.mrb[0].mxu0
        %v2101 = vadd.f32 0.0, %v2100
        %v2102 = vpop.f32.mrb[0].mxu0
        %2103 = vdwg.mxu0
        %2104 = vrot.lane.b32.xlu0 %v1982, 112
        %v2105 = vpop.permute.xlu0 %2104
        %2106 = vrot.lane.b32.xlu0 %v1982, 48
        %v2107 = vpop.permute.xlu0 %2106
        %v2109 = vsel %vm1987, %v2105, 0
        %v2112 = vsel %vm1987, %v2107, 0
        %2114 = vmatprep.subr.bf16.mxu0 0
        %2115 = vmatpush1.bf16.xpose.msra.mxu0 %v2112
        %2116 = vmatprep.subr.bf16.mxu0 0
        %2117 = vmatpush1.bf16.xpose.msra.mxu0 0
        %2118 = vmatprep.subr.bf16.mxu0 0
        %2119 = vmatpush1.bf16.xpose.msra.mxu0 0
        %2120 = vmatprep.subr.bf16.mxu0 0
        %2121 = vmatpush1.bf16.xpose.msra.mxu0 0
        %2122 = vmatprep.subr.bf16.mxu0 0
        %2123 = vmatpush1.bf16.xpose.msra.mxu0 0
        %2124 = vmatprep.subr.bf16.mxu0 0
        %2125 = vmatpush1.bf16.xpose.msra.mxu0 0
        %2126 = vmatprep.subr.bf16.mxu0 0
        %2127 = vmatpush1.bf16.xpose.msra.mxu0 0
        %2128 = vmatprep.subr.bf16.mxu0 0
        %2129 = vmatpush1.bf16.xpose.msra.mxu0 0
        %2130 = vmatprep.subr.bf16.mxu0 0
        %2131 = vmatpush1.bf16.xpose.msra.mxu0 0
        %2132 = vmatprep.subr.bf16.mxu0 0
        %2133 = vmatpush1.bf16.xpose.msra.mxu0 0
        %2134 = vmatprep.subr.bf16.mxu0 0
        %2135 = vmatpush1.bf16.xpose.msra.mxu0 0
        %2136 = vmatprep.subr.bf16.mxu0 0
        %2137 = vmatpush1.bf16.xpose.msra.mxu0 0
        %2138 = vmatprep.subr.bf16.mxu0 0
        %2139 = vmatpush1.bf16.xpose.msra.mxu0 0
        %2140 = vmatprep.subr.bf16.mxu0 0
        %2141 = vmatpush1.bf16.xpose.msra.mxu0 0
        %2142 = vmatprep.subr.bf16.mxu0 0
        %2143 = vmatpush1.bf16.xpose.msra.mxu0 0
        %2144 = vmatprep.subr.bf16.mxu0 0
        %2145 = vmatpush1.bf16.xpose.msra.mxu0 0
        %2146 = vmatprep.mubr.bf16.mxu0 0
        %2147 = vmatmul.mubr.bf16.gmra.mrb[0].mxu0 %v2109
        %v2148 = vpop.f32.mrb[0].mxu0
        %v2149 = vadd.f32 0.0, %v2148
        %v2150 = vpop.f32.mrb[0].mxu0
        %v2151 = vpop.f32.mrb[0].mxu0
        %v2152 = vadd.f32 0.0, %v2151
        %v2153 = vpop.f32.mrb[0].mxu0
        %2154 = vdwg.mxu0
        %v2155 = vmul.f32 %v2149, 0.25
        %v2156 = vmul.f32 %v2152, 0.25
        %v2157 = vsel %vm1987, %v2155, -inf
        %2158 = vmax.xlane.f32.xlu0 %v2157
        %v2159 = vpop.xlane.xlu0 %2158
        %v2160 = vsel %vm1987, %v2156, -inf
        %2161 = vmax.xlane.f32.xlu0 %v2160
        %v2162 = vpop.xlane.xlu0 %2161
        %v2163 = vsub.f32 %v2155, %v2159
        %v2164 = vsub.f32 %v2156, %v2162
        %v2165 = vmul.f32 %v2163, 1.442695
        %v2166 = vpow.pop %v2165
        %v2167 = vmul.f32 %v2164, 1.442695
        %v2168 = vpow.pop %v2167
        %v2169 = vsel %vm1987, %v2166, 0.0
        %2170 = vadd.xlane.f32.xlu0 %v2169
        %v2171 = vpop.xlane.xlu0 %2170
        %v2172 = vsel %vm1987, %v2168, 0.0
        %2173 = vadd.xlane.f32.xlu0 %v2172
        %v2174 = vpop.xlane.xlu0 %2173
        %v2175 = vrcp.pop %v2171
        %v2176 = vrcp.pop %v2174
        %v2177 = vmul.f32 %v2166, %v2175
        %v2178 = vmul.f32 %v2168, %v2176
        %v2179 = vpack.c.bf16 %v2178, %v2177
        %2181 = vrot.lane.b32.xlu0 %v1983, 112
        %v2182 = vpop.permute.xlu0 %2181
        %v2185 = vsel %vm1987, %v2179, 0
        %2187 = vmatprep.subr.bf16.mxu0 0
        %2188 = vmatpush1.bf16.msra.mxu0 %v2182
        %2189 = vmatprep.subr.bf16.mxu0 0
        %2190 = vmatpush1.bf16.msra.mxu0 0
        %2191 = vmatprep.subr.bf16.mxu0 0
        %2192 = vmatpush1.bf16.msra.mxu0 0
        %2193 = vmatprep.subr.bf16.mxu0 0
        %2194 = vmatpush1.bf16.msra.mxu0 0
        %2195 = vmatprep.subr.bf16.mxu0 0
        %2196 = vmatpush1.bf16.msra.mxu0 0
        %2197 = vmatprep.subr.bf16.mxu0 0
        %2198 = vmatpush1.bf16.msra.mxu0 0
        %2199 = vmatprep.subr.bf16.mxu0 0
        %2200 = vmatpush1.bf16.msra.mxu0 0
        %2201 = vmatprep.subr.bf16.mxu0 0
        %2202 = vmatpush1.bf16.msra.mxu0 0
        %2203 = vmatprep.subr.bf16.mxu0 0
        %2204 = vmatpush1.bf16.msra.mxu0 0
        %2205 = vmatprep.subr.bf16.mxu0 0
        %2206 = vmatpush1.bf16.msra.mxu0 0
        %2207 = vmatprep.subr.bf16.mxu0 0
        %2208 = vmatpush1.bf16.msra.mxu0 0
        %2209 = vmatprep.subr.bf16.mxu0 0
        %2210 = vmatpush1.bf16.msra.mxu0 0
        %2211 = vmatprep.subr.bf16.mxu0 0
        %2212 = vmatpush1.bf16.msra.mxu0 0
        %2213 = vmatprep.subr.bf16.mxu0 0
        %2214 = vmatpush1.bf16.msra.mxu0 0
        %2215 = vmatprep.subr.bf16.mxu0 0
        %2216 = vmatpush1.bf16.msra.mxu0 0
        %2217 = vmatprep.subr.bf16.mxu0 0
        %2218 = vmatpush1.bf16.msra.mxu0 0
        %2219 = vmatprep.mubr.bf16.mxu0 0
        %2220 = vmatmul.mubr.bf16.gmra.mrb[0].mxu0 %v2185
        %v2221 = vpop.f32.mrb[0].mxu0
        %v2222 = vadd.f32 0.0, %v2221
        %v2223 = vpop.f32.mrb[0].mxu0
        %v2224 = vpop.f32.mrb[0].mxu0
        %v2225 = vadd.f32 0.0, %v2224
        %v2226 = vpop.f32.mrb[0].mxu0
        %2227 = vdwg.mxu0
        %2228 = vrot.lane.b32.xlu0 %v1982, 96
        %v2229 = vpop.permute.xlu0 %2228
        %2230 = vrot.lane.b32.xlu0 %v1982, 32
        %v2231 = vpop.permute.xlu0 %2230
        %v2233 = vsel %vm1987, %v2229, 0
        %v2236 = vsel %vm1987, %v2231, 0
        %2238 = vmatprep.subr.bf16.mxu0 0
        %2239 = vmatpush1.bf16.xpose.msra.mxu0 %v2236
        %2240 = vmatprep.subr.bf16.mxu0 0
        %2241 = vmatpush1.bf16.xpose.msra.mxu0 0
        %2242 = vmatprep.subr.bf16.mxu0 0
        %2243 = vmatpush1.bf16.xpose.msra.mxu0 0
        %2244 = vmatprep.subr.bf16.mxu0 0
        %2245 = vmatpush1.bf16.xpose.msra.mxu0 0
        %2246 = vmatprep.subr.bf16.mxu0 0
        %2247 = vmatpush1.bf16.xpose.msra.mxu0 0
        %2248 = vmatprep.subr.bf16.mxu0 0
        %2249 = vmatpush1.bf16.xpose.msra.mxu0 0
        %2250 = vmatprep.subr.bf16.mxu0 0
        %2251 = vmatpush1.bf16.xpose.msra.mxu0 0
        %2252 = vmatprep.subr.bf16.mxu0 0
        %2253 = vmatpush1.bf16.xpose.msra.mxu0 0
        %2254 = vmatprep.subr.bf16.mxu0 0
        %2255 = vmatpush1.bf16.xpose.msra.mxu0 0
        %2256 = vmatprep.subr.bf16.mxu0 0
        %2257 = vmatpush1.bf16.xpose.msra.mxu0 0
        %2258 = vmatprep.subr.bf16.mxu0 0
        %2259 = vmatpush1.bf16.xpose.msra.mxu0 0
        %2260 = vmatprep.subr.bf16.mxu0 0
        %2261 = vmatpush1.bf16.xpose.msra.mxu0 0
        %2262 = vmatprep.subr.bf16.mxu0 0
        %2263 = vmatpush1.bf16.xpose.msra.mxu0 0
        %2264 = vmatprep.subr.bf16.mxu0 0
        %2265 = vmatpush1.bf16.xpose.msra.mxu0 0
        %2266 = vmatprep.subr.bf16.mxu0 0
        %2267 = vmatpush1.bf16.xpose.msra.mxu0 0
        %2268 = vmatprep.subr.bf16.mxu0 0
        %2269 = vmatpush1.bf16.xpose.msra.mxu0 0
        %2270 = vmatprep.mubr.bf16.mxu0 0
        %2271 = vmatmul.mubr.bf16.gmra.mrb[0].mxu0 %v2233
        %v2272 = vpop.f32.mrb[0].mxu0
        %v2273 = vadd.f32 0.0, %v2272
        %v2274 = vpop.f32.mrb[0].mxu0
        %v2275 = vpop.f32.mrb[0].mxu0
        %v2276 = vadd.f32 0.0, %v2275
        %v2277 = vpop.f32.mrb[0].mxu0
        %2278 = vdwg.mxu0
        %v2279 = vmul.f32 %v2273, 0.25
        %v2280 = vmul.f32 %v2276, 0.25
        %v2281 = vsel %vm1987, %v2279, -inf
        %2282 = vmax.xlane.f32.xlu0 %v2281
        %v2283 = vpop.xlane.xlu0 %2282
        %v2284 = vsel %vm1987, %v2280, -inf
        %2285 = vmax.xlane.f32.xlu0 %v2284
        %v2286 = vpop.xlane.xlu0 %2285
        %v2287 = vsub.f32 %v2279, %v2283
        %v2288 = vsub.f32 %v2280, %v2286
        %v2289 = vmul.f32 %v2287, 1.442695
        %v2290 = vpow.pop %v2289
        %v2291 = vmul.f32 %v2288, 1.442695
        %v2292 = vpow.pop %v2291
        %v2293 = vsel %vm1987, %v2290, 0.0
        %2294 = vadd.xlane.f32.xlu0 %v2293
        %v2295 = vpop.xlane.xlu0 %2294
        %v2296 = vsel %vm1987, %v2292, 0.0
        %2297 = vadd.xlane.f32.xlu0 %v2296
        %v2298 = vpop.xlane.xlu0 %2297
        %v2299 = vrcp.pop %v2295
        %v2300 = vrcp.pop %v2298
        %v2301 = vmul.f32 %v2290, %v2299
        %v2302 = vmul.f32 %v2292, %v2300
        %v2303 = vpack.c.bf16 %v2302, %v2301
        %2304 = vrot.lane.b32.xlu0 %v1983, 96
        %v2305 = vpop.permute.xlu0 %2304
        %v2308 = vsel %vm1987, %v2303, 0
        %2310 = vmatprep.subr.bf16.mxu0 0
        %2311 = vmatpush1.bf16.msra.mxu0 %v2305
        %2312 = vmatprep.subr.bf16.mxu0 0
        %2313 = vmatpush1.bf16.msra.mxu0 0
        %2314 = vmatprep.subr.bf16.mxu0 0
        %2315 = vmatpush1.bf16.msra.mxu0 0
        %2316 = vmatprep.subr.bf16.mxu0 0
        %2317 = vmatpush1.bf16.msra.mxu0 0
        %2318 = vmatprep.subr.bf16.mxu0 0
        %2319 = vmatpush1.bf16.msra.mxu0 0
        %2320 = vmatprep.subr.bf16.mxu0 0
        %2321 = vmatpush1.bf16.msra.mxu0 0
        %2322 = vmatprep.subr.bf16.mxu0 0
        %2323 = vmatpush1.bf16.msra.mxu0 0
        %2324 = vmatprep.subr.bf16.mxu0 0
        %2325 = vmatpush1.bf16.msra.mxu0 0
        %2326 = vmatprep.subr.bf16.mxu0 0
        %2327 = vmatpush1.bf16.msra.mxu0 0
        %2328 = vmatprep.subr.bf16.mxu0 0
        %2329 = vmatpush1.bf16.msra.mxu0 0
        %2330 = vmatprep.subr.bf16.mxu0 0
        %2331 = vmatpush1.bf16.msra.mxu0 0
        %2332 = vmatprep.subr.bf16.mxu0 0
        %2333 = vmatpush1.bf16.msra.mxu0 0
        %2334 = vmatprep.subr.bf16.mxu0 0
        %2335 = vmatpush1.bf16.msra.mxu0 0
        %2336 = vmatprep.subr.bf16.mxu0 0
        %2337 = vmatpush1.bf16.msra.mxu0 0
        %2338 = vmatprep.subr.bf16.mxu0 0
        %2339 = vmatpush1.bf16.msra.mxu0 0
        %2340 = vmatprep.subr.bf16.mxu0 0
        %2341 = vmatpush1.bf16.msra.mxu0 0
        %2342 = vmatprep.mubr.bf16.mxu0 0
        %2343 = vmatmul.mubr.bf16.gmra.mrb[0].mxu0 %v2308
        %v2344 = vpop.f32.mrb[0].mxu0
        %v2345 = vadd.f32 0.0, %v2344
        %v2346 = vpop.f32.mrb[0].mxu0
        %v2347 = vpop.f32.mrb[0].mxu0
        %v2348 = vadd.f32 0.0, %v2347
        %v2349 = vpop.f32.mrb[0].mxu0
        %2350 = vdwg.mxu0
        %2351 = vrot.lane.b32.xlu0 %v1982, 80
        %v2352 = vpop.permute.xlu0 %2351
        %2353 = vrot.lane.b32.xlu0 %v1982, 16
        %v2354 = vpop.permute.xlu0 %2353
        %v2356 = vsel %vm1987, %v2352, 0
        %v2359 = vsel %vm1987, %v2354, 0
        %2361 = vmatprep.subr.bf16.mxu0 0
        %2362 = vmatpush1.bf16.xpose.msra.mxu0 %v2359
        %2363 = vmatprep.subr.bf16.mxu0 0
        %2364 = vmatpush1.bf16.xpose.msra.mxu0 0
        %2365 = vmatprep.subr.bf16.mxu0 0
        %2366 = vmatpush1.bf16.xpose.msra.mxu0 0
        %2367 = vmatprep.subr.bf16.mxu0 0
        %2368 = vmatpush1.bf16.xpose.msra.mxu0 0
        %2369 = vmatprep.subr.bf16.mxu0 0
        %2370 = vmatpush1.bf16.xpose.msra.mxu0 0
        %2371 = vmatprep.subr.bf16.mxu0 0
        %2372 = vmatpush1.bf16.xpose.msra.mxu0 0
        %2373 = vmatprep.subr.bf16.mxu0 0
        %2374 = vmatpush1.bf16.xpose.msra.mxu0 0
        %2375 = vmatprep.subr.bf16.mxu0 0
        %2376 = vmatpush1.bf16.xpose.msra.mxu0 0
        %2377 = vmatprep.subr.bf16.mxu0 0
        %2378 = vmatpush1.bf16.xpose.msra.mxu0 0
        %2379 = vmatprep.subr.bf16.mxu0 0
        %2380 = vmatpush1.bf16.xpose.msra.mxu0 0
        %2381 = vmatprep.subr.bf16.mxu0 0
        %2382 = vmatpush1.bf16.xpose.msra.mxu0 0
        %2383 = vmatprep.subr.bf16.mxu0 0
        %2384 = vmatpush1.bf16.xpose.msra.mxu0 0
        %2385 = vmatprep.subr.bf16.mxu0 0
        %2386 = vmatpush1.bf16.xpose.msra.mxu0 0
        %2387 = vmatprep.subr.bf16.mxu0 0
        %2388 = vmatpush1.bf16.xpose.msra.mxu0 0
        %2389 = vmatprep.subr.bf16.mxu0 0
        %2390 = vmatpush1.bf16.xpose.msra.mxu0 0
        %2391 = vmatprep.subr.bf16.mxu0 0
        %2392 = vmatpush1.bf16.xpose.msra.mxu0 0
        %2393 = vmatprep.mubr.bf16.mxu0 0
        %2394 = vmatmul.mubr.bf16.gmra.mrb[0].mxu0 %v2356
        %v2395 = vpop.f32.mrb[0].mxu0
        %v2396 = vadd.f32 0.0, %v2395
        %v2397 = vpop.f32.mrb[0].mxu0
        %v2398 = vpop.f32.mrb[0].mxu0
        %v2399 = vadd.f32 0.0, %v2398
        %v2400 = vpop.f32.mrb[0].mxu0
        %2401 = vdwg.mxu0
        %v2402 = vmul.f32 %v2396, 0.25
        %v2403 = vmul.f32 %v2399, 0.25
        %v2404 = vsel %vm1987, %v2402, -inf
        %2405 = vmax.xlane.f32.xlu0 %v2404
        %v2406 = vpop.xlane.xlu0 %2405
        %v2407 = vsel %vm1987, %v2403, -inf
        %2408 = vmax.xlane.f32.xlu0 %v2407
        %v2409 = vpop.xlane.xlu0 %2408
        %v2410 = vsub.f32 %v2402, %v2406
        %v2411 = vsub.f32 %v2403, %v2409
        %v2412 = vmul.f32 %v2410, 1.442695
        %v2413 = vpow.pop %v2412
        %v2414 = vmul.f32 %v2411, 1.442695
        %v2415 = vpow.pop %v2414
        %v2416 = vsel %vm1987, %v2413, 0.0
        %2417 = vadd.xlane.f32.xlu0 %v2416
        %v2418 = vpop.xlane.xlu0 %2417
        %v2419 = vsel %vm1987, %v2415, 0.0
        %2420 = vadd.xlane.f32.xlu0 %v2419
        %v2421 = vpop.xlane.xlu0 %2420
        %v2422 = vrcp.pop %v2418
        %v2423 = vrcp.pop %v2421
        %v2424 = vmul.f32 %v2413, %v2422
        %v2425 = vmul.f32 %v2415, %v2423
        %v2426 = vpack.c.bf16 %v2425, %v2424
        %2427 = vrot.lane.b32.xlu0 %v1983, 80
        %v2428 = vpop.permute.xlu0 %2427
        %v2431 = vsel %vm1987, %v2426, 0
        %2433 = vmatprep.subr.bf16.mxu0 0
        %2434 = vmatpush1.bf16.msra.mxu0 %v2428
        %2435 = vmatprep.subr.bf16.mxu0 0
        %2436 = vmatpush1.bf16.msra.mxu0 0
        %2437 = vmatprep.subr.bf16.mxu0 0
        %2438 = vmatpush1.bf16.msra.mxu0 0
        %2439 = vmatprep.subr.bf16.mxu0 0
        %2440 = vmatpush1.bf16.msra.mxu0 0
        %2441 = vmatprep.subr.bf16.mxu0 0
        %2442 = vmatpush1.bf16.msra.mxu0 0
        %2443 = vmatprep.subr.bf16.mxu0 0
        %2444 = vmatpush1.bf16.msra.mxu0 0
        %2445 = vmatprep.subr.bf16.mxu0 0
        %2446 = vmatpush1.bf16.msra.mxu0 0
        %2447 = vmatprep.subr.bf16.mxu0 0
        %2448 = vmatpush1.bf16.msra.mxu0 0
        %2449 = vmatprep.subr.bf16.mxu0 0
        %2450 = vmatpush1.bf16.msra.mxu0 0
        %2451 = vmatprep.subr.bf16.mxu0 0
        %2452 = vmatpush1.bf16.msra.mxu0 0
        %2453 = vmatprep.subr.bf16.mxu0 0
        %2454 = vmatpush1.bf16.msra.mxu0 0
        %2455 = vmatprep.subr.bf16.mxu0 0
        %2456 = vmatpush1.bf16.msra.mxu0 0
        %2457 = vmatprep.subr.bf16.mxu0 0
        %2458 = vmatpush1.bf16.msra.mxu0 0
        %2459 = vmatprep.subr.bf16.mxu0 0
        %2460 = vmatpush1.bf16.msra.mxu0 0
        %2461 = vmatprep.subr.bf16.mxu0 0
        %2462 = vmatpush1.bf16.msra.mxu0 0
        %2463 = vmatprep.subr.bf16.mxu0 0
        %2464 = vmatpush1.bf16.msra.mxu0 0
        %2465 = vmatprep.mubr.bf16.mxu0 0
        %2466 = vmatmul.mubr.bf16.gmra.mrb[0].mxu0 %v2431
        %v2467 = vpop.f32.mrb[0].mxu0
        %v2468 = vadd.f32 0.0, %v2467
        %v2469 = vpop.f32.mrb[0].mxu0
        %v2470 = vpop.f32.mrb[0].mxu0
        %v2471 = vadd.f32 0.0, %v2470
        %v2472 = vpop.f32.mrb[0].mxu0
        %2473 = vdwg.mxu0
        %2476 = vrot.lane.b32.xlu0 %v2222, 16
        %v2477 = vpop.permute.xlu0 %2476
        %2478 = vrot.lane.b32.xlu0 %v2225, 16
        %v2479 = vpop.permute.xlu0 %2478
        %2484 = vrot.lane.b32.xlu0 %v2345, 32
        %v2485 = vpop.permute.xlu0 %2484
        %2486 = vrot.lane.b32.xlu0 %v2348, 32
        %v2487 = vpop.permute.xlu0 %2486
        %2492 = vrot.lane.b32.xlu0 %v2468, 48
        %v2493 = vpop.permute.xlu0 %2492
        %2494 = vrot.lane.b32.xlu0 %v2471, 48
        %v2495 = vpop.permute.xlu0 %2494
        %v2498 = vsel %vm1987, %v2098, %v2477
        %v2499 = vsel %vm1987, %v2101, %v2479
        %vm2500 = vcmask 261120
        %v2501 = vsel %vm2500, %v2498, %v2485
        %v2502 = vsel %vm2500, %v2499, %v2487
        %vm2503 = vcmask 392192
        %v2504 = vsel %vm2503, %v2501, %v2493
        %v2505 = vsel %vm2503, %v2502, %v2495
        %v2506 = vpack.c.bf16 %v2505, %v2504
        %v2507 = vld [vmem:[%s1042] sm:$0xf]
        %v2508 = vld [vmem:[%s1042 + $0x4] sm:$0xf]
        %v2509 = vld [vmem:[%s1042 + $0x8] sm:$0xf]
        %v2510 = vld [vmem:[%s1042 + $0xc] sm:$0xf]
        %v2511 = vld [vmem:[%s1042 + $0x10] sm:$0xf]
        %v2512 = vld [vmem:[%s1042 + $0x14] sm:$0xf]
        %v2513 = vld [vmem:[%s1042 + $0x18] sm:$0xf]
        %v2514 = vld [vmem:[%s1042 + $0x1c] sm:$0xf]
        %v2523 = vunpack.c.l.b16 %v2507
        %v2524 = vunpack.c.l.b16 %v2508
        %v2525 = vunpack.c.l.b16 %v2509
        %v2526 = vunpack.c.l.b16 %v2510
        %v2527 = vunpack.c.l.b16 %v2511
        %v2528 = vunpack.c.l.b16 %v2512
        %v2529 = vunpack.c.l.b16 %v2513
        %v2530 = vunpack.c.l.b16 %v2514
        %v2531 = vpack.c.b16 %v2524, %v2523
        %v2532 = vpack.c.b16 %v2526, %v2525
        %v2533 = vpack.c.b16 %v2528, %v2527
        %v2534 = vpack.c.b16 %v2530, %v2529
        %v2540 = vsel %vm1843, %v2506, 0
        %2542 = vmatprep.subr.bf16.mxu0 0
        %2543 = vmatpush1.bf16.msra.mxu0 %v2531
        %2544 = vmatprep.subr.bf16.mxu0 0
        %2545 = vmatpush1.bf16.msra.mxu0 %v2532
        %2546 = vmatprep.subr.bf16.mxu0 0
        %2547 = vmatpush1.bf16.msra.mxu0 %v2533
        %2548 = vmatprep.subr.bf16.mxu0 0
        %2549 = vmatpush1.bf16.msra.mxu0 %v2534
        %2550 = vmatprep.subr.bf16.mxu0 0
        %2551 = vmatpush1.bf16.msra.mxu0 0
        %2552 = vmatprep.subr.bf16.mxu0 0
        %2553 = vmatpush1.bf16.msra.mxu0 0
        %2554 = vmatprep.subr.bf16.mxu0 0
        %2555 = vmatpush1.bf16.msra.mxu0 0
        %2556 = vmatprep.subr.bf16.mxu0 0
        %2557 = vmatpush1.bf16.msra.mxu0 0
        %2558 = vmatprep.subr.bf16.mxu0 0
        %2559 = vmatpush1.bf16.msra.mxu0 0
        %2560 = vmatprep.subr.bf16.mxu0 0
        %2561 = vmatpush1.bf16.msra.mxu0 0
        %2562 = vmatprep.subr.bf16.mxu0 0
        %2563 = vmatpush1.bf16.msra.mxu0 0
        %2564 = vmatprep.subr.bf16.mxu0 0
        %2565 = vmatpush1.bf16.msra.mxu0 0
        %2566 = vmatprep.subr.bf16.mxu0 0
        %2567 = vmatpush1.bf16.msra.mxu0 0
        %2568 = vmatprep.subr.bf16.mxu0 0
        %2569 = vmatpush1.bf16.msra.mxu0 0
        %2570 = vmatprep.subr.bf16.mxu0 0
        %2571 = vmatpush1.bf16.msra.mxu0 0
        %2572 = vmatprep.subr.bf16.mxu0 0
        %2573 = vmatpush1.bf16.msra.mxu0 0
        %2574 = vmatprep.mubr.bf16.mxu0 0
        %2575 = vmatmul.mubr.bf16.gmra.mrb[0].mxu0 %v2540
        %v2576 = vpop.f32.mrb[0].mxu0
        %v2577 = vadd.f32 0.0, %v2576
        %v2578 = vpop.f32.mrb[0].mxu0
        %v2579 = vpop.f32.mrb[0].mxu0
        %v2580 = vadd.f32 0.0, %v2579
        %v2581 = vpop.f32.mrb[0].mxu0
        %2582 = vdwg.mxu0
        %v2583 = vadd.f32 %v1839, %v2577
        %v2584 = vadd.f32 %v1840, %v2580
        %v2585 = vld [vmem:[%s1050] sm:$0x1]
        %v2587 = vlaneseq
        %v2588 = vshrl.u32 %v2587, 7
        %v2589 = vsub.s32 0, %v2588
        %v2590 = vrot.slane %v2585, %v2589
        %v2592 = vadd.f32 %v2583, %v2590
        %v2593 = vadd.f32 %v2584, %v2590
        %v2594 = vld [vmem:[%s1191] sm:$0x1]
        %v2595 = vld [vmem:[%s1194] sm:$0x1]
        %v2596 = vsel %vm1843, %v2592, 0.0
        %2597 = vadd.xlane.f32.xlu0 %v2596
        %v2598 = vpop.xlane.xlu0 %2597
        %v2599 = vsel %vm1843, %v2593, 0.0
        %2600 = vadd.xlane.f32.xlu0 %v2599
        %v2601 = vpop.xlane.xlu0 %2600
        %v2602 = vmul.f32 %v2598, %v1850
        %v2603 = vmul.f32 %v2601, %v1850
        %v2604 = vsub.f32 %v2592, %v2602
        %v2605 = vsub.f32 %v2593, %v2603
        %v2606 = vmul.f32 %v2604, %v2604
        %v2607 = vmul.f32 %v2605, %v2605
        %v2608 = vsel %vm1843, %v2606, 0.0
        %2609 = vadd.xlane.f32.xlu0 %v2608
        %v2610 = vpop.xlane.xlu0 %2609
        %v2611 = vsel %vm1843, %v2607, 0.0
        %2612 = vadd.xlane.f32.xlu0 %v2611
        %v2613 = vpop.xlane.xlu0 %2612
        %v2614 = vmul.f32 %v2610, %v1850
        %v2615 = vmul.f32 %v2613, %v1850
        %v2616 = vadd.f32 %v2614, 1e-05
        %v2617 = vadd.f32 %v2615, 1e-05
        %v2618 = vrsqrt.pop %v2616
        %v2619 = vrsqrt.pop %v2617
        %v2620 = vmul.f32 %v2604, %v2618
        %v2621 = vmul.f32 %v2605, %v2619
        %v2623 = vlaneseq
        %v2624 = vshrl.u32 %v2623, 7
        %v2625 = vsub.s32 0, %v2624
        %v2626 = vrot.slane %v2594, %v2625
        %v2628 = vmul.f32 %v2620, %v2626
        %v2629 = vmul.f32 %v2621, %v2626
        %v2631 = vlaneseq
        %v2632 = vshrl.u32 %v2631, 7
        %v2633 = vsub.s32 0, %v2632
        %v2634 = vrot.slane %v2595, %v2633
        %v2636 = vadd.f32 %v2628, %v2634
        %v2637 = vadd.f32 %v2629, %v2634
        %v2638 = vpack.c.bf16 %v2637, %v2636
        %v2639 = vld [vmem:[%s1199] sm:$0xff]
        %v2640 = vld [vmem:[%s1199 + $0x8] sm:$0xff]
        %v2641 = vld [vmem:[%s1199 + $0x10] sm:$0xff]
        %v2642 = vld [vmem:[%s1199 + $0x18] sm:$0xff]
        %v2643 = vld [vmem:[%s1199 + $0x20] sm:$0xff]
        %v2644 = vld [vmem:[%s1199 + $0x28] sm:$0xff]
        %v2645 = vld [vmem:[%s1199 + $0x30] sm:$0xff]
        %v2646 = vld [vmem:[%s1199 + $0x38] sm:$0xff]
        %v2647 = vld [vmem:[%s1203] sm:$0x3]
        %v2649 = vlaneseq
        %v2650 = vshrl.u32 %v2649, 7
        %v2651 = vsub.s32 0, %v2650
        %v2652 = vrot.slane %v2647, %v2651
        %v2653 = vlaneseq
        %v2654 = vshrl.u32 %v2653, 7
        %v2655 = vsub.s32 1, %v2654
        %v2656 = vrot.slane %v2647, %v2655
        %v2667 = vunpack.c.l.b16 %v2639
        %v2668 = vunpack.c.h.b16 %v2639
        %v2669 = vunpack.c.l.b16 %v2640
        %v2670 = vunpack.c.h.b16 %v2640
        %v2671 = vunpack.c.l.b16 %v2641
        %v2672 = vunpack.c.h.b16 %v2641
        %v2673 = vunpack.c.l.b16 %v2642
        %v2674 = vunpack.c.h.b16 %v2642
        %v2675 = vunpack.c.l.b16 %v2643
        %v2676 = vunpack.c.h.b16 %v2643
        %v2677 = vunpack.c.l.b16 %v2644
        %v2678 = vunpack.c.h.b16 %v2644
        %v2679 = vunpack.c.l.b16 %v2645
        %v2680 = vunpack.c.h.b16 %v2645
        %v2681 = vunpack.c.l.b16 %v2646
        %v2682 = vunpack.c.h.b16 %v2646
        %v2683 = vpack.c.b16 %v2669, %v2667
        %v2684 = vpack.c.b16 %v2670, %v2668
        %v2685 = vpack.c.b16 %v2673, %v2671
        %v2686 = vpack.c.b16 %v2674, %v2672
        %v2687 = vpack.c.b16 %v2677, %v2675
        %v2688 = vpack.c.b16 %v2678, %v2676
        %v2689 = vpack.c.b16 %v2681, %v2679
        %v2690 = vpack.c.b16 %v2682, %v2680
        %v2700 = vsel %vm1843, %v2638, 0
        %2702 = vmatprep.subr.bf16.mxu0 %v2684
        %2703 = vmatpush1.bf16.msra.mxu0 %v2683
        %2704 = vmatprep.subr.bf16.mxu0 %v2686
        %2705 = vmatpush1.bf16.msra.mxu0 %v2685
        %2706 = vmatprep.subr.bf16.mxu0 %v2688
        %2707 = vmatpush1.bf16.msra.mxu0 %v2687
        %2708 = vmatprep.subr.bf16.mxu0 %v2690
        %2709 = vmatpush1.bf16.msra.mxu0 %v2689
        %2710 = vmatprep.subr.bf16.mxu0 0
        %2711 = vmatpush1.bf16.msra.mxu0 0
        %2712 = vmatprep.subr.bf16.mxu0 0
        %2713 = vmatpush1.bf16.msra.mxu0 0
        %2714 = vmatprep.subr.bf16.mxu0 0
        %2715 = vmatpush1.bf16.msra.mxu0 0
        %2716 = vmatprep.subr.bf16.mxu0 0
        %2717 = vmatpush1.bf16.msra.mxu0 0
        %2718 = vmatprep.subr.bf16.mxu0 0
        %2719 = vmatpush1.bf16.msra.mxu0 0
        %2720 = vmatprep.subr.bf16.mxu0 0
        %2721 = vmatpush1.bf16.msra.mxu0 0
        %2722 = vmatprep.subr.bf16.mxu0 0
        %2723 = vmatpush1.bf16.msra.mxu0 0
        %2724 = vmatprep.subr.bf16.mxu0 0
        %2725 = vmatpush1.bf16.msra.mxu0 0
        %2726 = vmatprep.subr.bf16.mxu0 0
        %2727 = vmatpush1.bf16.msra.mxu0 0
        %2728 = vmatprep.subr.bf16.mxu0 0
        %2729 = vmatpush1.bf16.msra.mxu0 0
        %2730 = vmatprep.subr.bf16.mxu0 0
        %2731 = vmatpush1.bf16.msra.mxu0 0
        %2732 = vmatprep.subr.bf16.mxu0 0
        %2733 = vmatpush1.bf16.msra.mxu0 0
        %2734 = vmatprep.mubr.bf16.mxu0 0
        %2735 = vmatmul.mubr.bf16.gmra.mrb[0].mxu0 %v2700
        %v2736 = vpop.f32.mrb[0].mxu0
        %v2737 = vadd.f32 %v2652, %v2736
        %v2738 = vpop.f32.mrb[0].mxu0
        %v2739 = vadd.f32 %v2656, %v2738
        %v2740 = vpop.f32.mrb[0].mxu0
        %v2741 = vadd.f32 %v2652, %v2740
        %v2742 = vpop.f32.mrb[0].mxu0
        %v2743 = vadd.f32 %v2656, %v2742
        %2744 = vdwg.mxu0
        %v2745 = vxor.u32 %v2739, 2147483648
        %v2746 = vxor.u32 %v2743, 2147483648
        %v2747 = vmul.f32 %v2745, 1.442695
        %v2748 = vpow.pop %v2747
        %v2749 = vmul.f32 %v2746, 1.442695
        %v2750 = vpow.pop %v2749
        %v2751 = vadd.f32 %v2748, 1.0
        %v2752 = vadd.f32 %v2750, 1.0
        %v2753 = vrcp.pop %v2751
        %v2754 = vmul.f32 1.0, %v2753
        %v2755 = vrcp.pop %v2752
        %v2756 = vmul.f32 1.0, %v2755
        %v2757 = vmul.f32 %v2737, %v2754
        %v2758 = vmul.f32 %v2741, %v2756
        %v2759 = vrot.slane %v2757, 1
        %v2760 = vrot.slane %v2758, 1
        %v2761 = vlaneseq
        %v2762 = vshrl.u32 %v2761, 7
        %vm2763 = vcmp.lt.s32.totalorder %v2762, 7
        %v2764 = vsel %vm2763, %v2759, %v2760
        %v2765 = vsel %vm2763, %v2760, %v2759
        %v2766 = vld [vmem:[%s1059] sm:$0xff]
        %v2767 = vld [vmem:[%s1059 + $0x8] sm:$0xff]
        %v2768 = vmul.f32 %v2764, %v2766
        %v2769 = vmul.f32 %v2765, %v2767
        %v2770 = vadd.f32 %v2768, 0.0
        %v2771 = vadd.f32 %v2769, 0.0
        %v2772 = vrot.slane %v2757, 2
        %v2773 = vrot.slane %v2758, 2
        %vm2774 = vcmp.lt.s32.totalorder %v2762, 6
        %v2775 = vsel %vm2774, %v2772, %v2773
        %v2776 = vsel %vm2774, %v2773, %v2772
        %s2777 = scalar_lea.vmem %s1059, 16 [#allocation18]
        %v2778 = vld [vmem:[%s2777] sm:$0xff]
        %v2779 = vld [vmem:[%s2777 + $0x8] sm:$0xff]
        %v2780 = vmul.f32 %v2775, %v2778
        %v2781 = vmul.f32 %v2776, %v2779
        %v2782 = vadd.f32 %v2770, %v2780
        %v2783 = vadd.f32 %v2771, %v2781
        %v2784 = vrot.slane %v2757, 3
        %v2785 = vrot.slane %v2758, 3
        %vm2786 = vcmp.lt.s32.totalorder %v2762, 5
        %v2787 = vsel %vm2786, %v2784, %v2785
        %v2788 = vsel %vm2786, %v2785, %v2784
        %s2789 = scalar_lea.vmem %s1059, 32 [#allocation18]
        %v2790 = vld [vmem:[%s2789] sm:$0xff]
        %v2791 = vld [vmem:[%s2789 + $0x8] sm:$0xff]
        %v2792 = vmul.f32 %v2787, %v2790
        %v2793 = vmul.f32 %v2788, %v2791
        %v2794 = vadd.f32 %v2782, %v2792
        %v2795 = vadd.f32 %v2783, %v2793
        %v2796 = vrot.slane %v2757, 4
        %v2797 = vrot.slane %v2758, 4
        %vm2798 = vcmp.lt.s32.totalorder %v2762, 4
        %v2799 = vsel %vm2798, %v2796, %v2797
        %v2800 = vsel %vm2798, %v2797, %v2796
        %s2801 = scalar_lea.vmem %s1059, 48 [#allocation18]
        %v2802 = vld [vmem:[%s2801] sm:$0xff]
        %v2803 = vld [vmem:[%s2801 + $0x8] sm:$0xff]
        %v2804 = vmul.f32 %v2799, %v2802
        %v2805 = vmul.f32 %v2800, %v2803
        %v2806 = vadd.f32 %v2794, %v2804
        %v2807 = vadd.f32 %v2795, %v2805
        %v2808 = vrot.slane %v2757, 5
        %v2809 = vrot.slane %v2758, 5
        %vm2810 = vcmp.lt.s32.totalorder %v2762, 3
        %v2811 = vsel %vm2810, %v2808, %v2809
        %v2812 = vsel %vm2810, %v2809, %v2808
        %s2813 = scalar_lea.vmem %s1059, 64 [#allocation18]
        %v2814 = vld [vmem:[%s2813] sm:$0xff]
        %v2815 = vld [vmem:[%s2813 + $0x8] sm:$0xff]
        %v2816 = vmul.f32 %v2811, %v2814
        %v2817 = vmul.f32 %v2812, %v2815
        %v2818 = vadd.f32 %v2806, %v2816
        %v2819 = vadd.f32 %v2807, %v2817
        %v2820 = vrot.slane %v2757, 6
        %v2821 = vrot.slane %v2758, 6
        %vm2822 = vcmp.lt.s32.totalorder %v2762, 2
        %v2823 = vsel %vm2822, %v2820, %v2821
        %v2824 = vsel %vm2822, %v2821, %v2820
        %s2825 = scalar_lea.vmem %s1059, 80 [#allocation18]
        %v2826 = vld [vmem:[%s2825] sm:$0xff]
        %v2827 = vld [vmem:[%s2825 + $0x8] sm:$0xff]
        %v2828 = vmul.f32 %v2823, %v2826
        %v2829 = vmul.f32 %v2824, %v2827
        %v2830 = vadd.f32 %v2818, %v2828
        %v2831 = vadd.f32 %v2819, %v2829
        %v2832 = vrot.slane %v2757, 7
        %v2833 = vrot.slane %v2758, 7
        %vm2834 = vcmp.lt.s32.totalorder %v2762, 1
        %v2835 = vsel %vm2834, %v2832, %v2833
        %v2836 = vsel %vm2834, %v2833, %v2832
        %s2837 = scalar_lea.vmem %s1059, 96 [#allocation18]
        %v2838 = vld [vmem:[%s2837] sm:$0xff]
        %v2839 = vld [vmem:[%s2837 + $0x8] sm:$0xff]
        %v2840 = vmul.f32 %v2835, %v2838
        %v2841 = vmul.f32 %v2836, %v2839
        %v2842 = vadd.f32 %v2830, %v2840
        %v2843 = vadd.f32 %v2831, %v2841
        %s2844 = scalar_lea.vmem %s1059, 112 [#allocation18]
        %v2845 = vld [vmem:[%s2844] sm:$0xff]
        %v2846 = vld [vmem:[%s2844 + $0x8] sm:$0xff]
        %v2847 = vmul.f32 %v2758, %v2845
        %v2848 = vmul.f32 %v2757, %v2846
        %v2849 = vadd.f32 %v2842, %v2847
        %v2850 = vadd.f32 %v2843, %v2848
        %s2851 = scalar_lea.vmem %s1059, 128 [#allocation18]
        %v2852 = vld [vmem:[%s2851] sm:$0xff]
        %v2853 = vld [vmem:[%s2851 + $0x8] sm:$0xff]
        %v2854 = vmul.f32 %v2765, %v2852
        %v2855 = vmul.f32 %v2764, %v2853
        %v2856 = vadd.f32 %v2849, %v2854
        %v2857 = vadd.f32 %v2850, %v2855
        %s2858 = scalar_lea.vmem %s1059, 144 [#allocation18]
        %v2859 = vld [vmem:[%s2858] sm:$0xff]
        %v2860 = vld [vmem:[%s2858 + $0x8] sm:$0xff]
        %v2861 = vmul.f32 %v2776, %v2859
        %v2862 = vmul.f32 %v2775, %v2860
        %v2863 = vadd.f32 %v2856, %v2861
        %v2864 = vadd.f32 %v2857, %v2862
        %s2865 = scalar_lea.vmem %s1059, 160 [#allocation18]
        %v2866 = vld [vmem:[%s2865] sm:$0xff]
        %v2867 = vld [vmem:[%s2865 + $0x8] sm:$0xff]
        %v2868 = vmul.f32 %v2788, %v2866
        %v2869 = vmul.f32 %v2787, %v2867
        %v2870 = vadd.f32 %v2863, %v2868
        %v2871 = vadd.f32 %v2864, %v2869
        %s2872 = scalar_lea.vmem %s1059, 176 [#allocation18]
        %v2873 = vld [vmem:[%s2872] sm:$0xff]
        %v2874 = vld [vmem:[%s2872 + $0x8] sm:$0xff]
        %v2875 = vmul.f32 %v2800, %v2873
        %v2876 = vmul.f32 %v2799, %v2874
        %v2877 = vadd.f32 %v2870, %v2875
        %v2878 = vadd.f32 %v2871, %v2876
        %s2879 = scalar_lea.vmem %s1059, 192 [#allocation18]
        %v2880 = vld [vmem:[%s2879] sm:$0xff]
        %v2881 = vld [vmem:[%s2879 + $0x8] sm:$0xff]
        %v2882 = vmul.f32 %v2812, %v2880
        %v2883 = vmul.f32 %v2811, %v2881
        %v2884 = vadd.f32 %v2877, %v2882
        %v2885 = vadd.f32 %v2878, %v2883
        %s2886 = scalar_lea.vmem %s1059, 208 [#allocation18]
        %v2887 = vld [vmem:[%s2886] sm:$0xff]
        %v2888 = vld [vmem:[%s2886 + $0x8] sm:$0xff]
        %v2889 = vmul.f32 %v2824, %v2887
        %v2890 = vmul.f32 %v2823, %v2888
        %v2891 = vadd.f32 %v2884, %v2889
        %v2892 = vadd.f32 %v2885, %v2890
        %s2893 = scalar_lea.vmem %s1059, 224 [#allocation18]
        %v2894 = vld [vmem:[%s2893] sm:$0xff]
        %v2895 = vld [vmem:[%s2893 + $0x8] sm:$0xff]
        %v2896 = vmul.f32 %v2836, %v2894
        %v2897 = vmul.f32 %v2835, %v2895
        %v2898 = vadd.f32 %v2891, %v2896
        %v2899 = vadd.f32 %v2892, %v2897
        %s2900 = scalar_lea.vmem %s1059, 240 [#allocation18]
        %v2901 = vld [vmem:[%s2900] sm:$0xff]
        %v2902 = vld [vmem:[%s2900 + $0x8] sm:$0xff]
        %v2903 = vmul.f32 %v2757, %v2901
        %v2904 = vmul.f32 %v2758, %v2902
        %v2905 = vadd.f32 %v2898, %v2903
        %v2906 = vadd.f32 %v2899, %v2904
        %s2907 = scalar_lea.vmem %s1059, 256 [#allocation18]
        %v2908 = vld [vmem:[%s2907] sm:$0xff]
        %v2909 = vld [vmem:[%s2907 + $0x8] sm:$0xff]
        %v2910 = vmul.f32 %v2764, %v2908
        %v2911 = vmul.f32 %v2765, %v2909
        %v2912 = vadd.f32 %v2905, %v2910
        %v2913 = vadd.f32 %v2906, %v2911
        %s2914 = scalar_lea.vmem %s1059, 272 [#allocation18]
        %v2915 = vld [vmem:[%s2914] sm:$0xff]
        %v2916 = vld [vmem:[%s2914 + $0x8] sm:$0xff]
        %v2917 = vmul.f32 %v2775, %v2915
        %v2918 = vmul.f32 %v2776, %v2916
        %v2919 = vadd.f32 %v2912, %v2917
        %v2920 = vadd.f32 %v2913, %v2918
        %s2921 = scalar_lea.vmem %s1059, 288 [#allocation18]
        %v2922 = vld [vmem:[%s2921] sm:$0xff]
        %v2923 = vld [vmem:[%s2921 + $0x8] sm:$0xff]
        %v2924 = vmul.f32 %v2787, %v2922
        %v2925 = vmul.f32 %v2788, %v2923
        %v2926 = vadd.f32 %v2919, %v2924
        %v2927 = vadd.f32 %v2920, %v2925
        %s2928 = scalar_lea.vmem %s1059, 304 [#allocation18]
        %v2929 = vld [vmem:[%s2928] sm:$0xff]
        %v2930 = vld [vmem:[%s2928 + $0x8] sm:$0xff]
        %v2931 = vmul.f32 %v2799, %v2929
        %v2932 = vmul.f32 %v2800, %v2930
        %v2933 = vadd.f32 %v2926, %v2931
        %v2934 = vadd.f32 %v2927, %v2932
        %s2935 = scalar_lea.vmem %s1059, 320 [#allocation18]
        %v2936 = vld [vmem:[%s2935] sm:$0xff]
        %v2937 = vld [vmem:[%s2935 + $0x8] sm:$0xff]
        %v2938 = vmul.f32 %v2811, %v2936
        %v2939 = vmul.f32 %v2812, %v2937
        %v2940 = vadd.f32 %v2933, %v2938
        %v2941 = vadd.f32 %v2934, %v2939
        %s2942 = scalar_lea.vmem %s1059, 336 [#allocation18]
        %v2943 = vld [vmem:[%s2942] sm:$0xff]
        %v2944 = vld [vmem:[%s2942 + $0x8] sm:$0xff]
        %v2945 = vmul.f32 %v2823, %v2943
        %v2946 = vmul.f32 %v2824, %v2944
        %v2947 = vadd.f32 %v2940, %v2945
        %v2948 = vadd.f32 %v2941, %v2946
        %s2949 = scalar_lea.vmem %s1059, 352 [#allocation18]
        %v2950 = vld [vmem:[%s2949] sm:$0xff]
        %v2951 = vld [vmem:[%s2949 + $0x8] sm:$0xff]
        %v2952 = vmul.f32 %v2835, %v2950
        %v2953 = vmul.f32 %v2836, %v2951
        %v2954 = vadd.f32 %v2947, %v2952
        %v2955 = vadd.f32 %v2948, %v2953
        %s2956 = scalar_lea.vmem %s1059, 368 [#allocation18]
        %v2957 = vld [vmem:[%s2956] sm:$0xff]
        %v2958 = vld [vmem:[%s2956 + $0x8] sm:$0xff]
        %v2959 = vmul.f32 %v2758, %v2957
        %v2960 = vmul.f32 %v2757, %v2958
        %v2961 = vadd.f32 %v2954, %v2959
        %v2962 = vadd.f32 %v2955, %v2960
        %s2963 = scalar_lea.vmem %s1059, 384 [#allocation18]
        %v2964 = vld [vmem:[%s2963] sm:$0xff]
        %v2965 = vld [vmem:[%s2963 + $0x8] sm:$0xff]
        %v2966 = vmul.f32 %v2765, %v2964
        %v2967 = vmul.f32 %v2764, %v2965
        %v2968 = vadd.f32 %v2961, %v2966
        %v2969 = vadd.f32 %v2962, %v2967
        %s2970 = scalar_lea.vmem %s1059, 400 [#allocation18]
        %v2971 = vld [vmem:[%s2970] sm:$0xff]
        %v2972 = vld [vmem:[%s2970 + $0x8] sm:$0xff]
        %v2973 = vmul.f32 %v2776, %v2971
        %v2974 = vmul.f32 %v2775, %v2972
        %v2975 = vadd.f32 %v2968, %v2973
        %v2976 = vadd.f32 %v2969, %v2974
        %s2977 = scalar_lea.vmem %s1059, 416 [#allocation18]
        %v2978 = vld [vmem:[%s2977] sm:$0xff]
        %v2979 = vld [vmem:[%s2977 + $0x8] sm:$0xff]
        %v2980 = vmul.f32 %v2788, %v2978
        %v2981 = vmul.f32 %v2787, %v2979
        %v2982 = vadd.f32 %v2975, %v2980
        %v2983 = vadd.f32 %v2976, %v2981
        %s2984 = scalar_lea.vmem %s1059, 432 [#allocation18]
        %v2985 = vld [vmem:[%s2984] sm:$0xff]
        %v2986 = vld [vmem:[%s2984 + $0x8] sm:$0xff]
        %v2987 = vmul.f32 %v2800, %v2985
        %v2988 = vmul.f32 %v2799, %v2986
        %v2989 = vadd.f32 %v2982, %v2987
        %v2990 = vadd.f32 %v2983, %v2988
        %s2991 = scalar_lea.vmem %s1059, 448 [#allocation18]
        %v2992 = vld [vmem:[%s2991] sm:$0xff]
        %v2993 = vld [vmem:[%s2991 + $0x8] sm:$0xff]
        %v2994 = vmul.f32 %v2812, %v2992
        %v2995 = vmul.f32 %v2811, %v2993
        %v2996 = vadd.f32 %v2989, %v2994
        %v2997 = vadd.f32 %v2990, %v2995
        %s2998 = scalar_lea.vmem %s1059, 464 [#allocation18]
        %v2999 = vld [vmem:[%s2998] sm:$0xff]
        %v3000 = vld [vmem:[%s2998 + $0x8] sm:$0xff]
        %v3001 = vmul.f32 %v2824, %v2999
        %v3002 = vmul.f32 %v2823, %v3000
        %v3003 = vadd.f32 %v2996, %v3001
        %v3004 = vadd.f32 %v2997, %v3002
        %s3005 = scalar_lea.vmem %s1059, 480 [#allocation18]
        %v3006 = vld [vmem:[%s3005] sm:$0xff]
        %v3007 = vld [vmem:[%s3005 + $0x8] sm:$0xff]
        %v3008 = vmul.f32 %v2836, %v3006
        %v3009 = vmul.f32 %v2835, %v3007
        %v3010 = vadd.f32 %v3003, %v3008
        %v3011 = vadd.f32 %v3004, %v3009
        %v3012 = vld [vmem:[%s1206] sm:$0x1]
        %v3014 = vlaneseq
        %v3015 = vshrl.u32 %v3014, 7
        %v3016 = vsub.s32 0, %v3015
        %v3017 = vrot.slane %v3012, %v3016
        %v3019 = vadd.f32 %v3010, %v3017
        %v3020 = vadd.f32 %v3011, %v3017
        %v3021 = vxor.u32 %v3019, 2147483648
        %v3022 = vxor.u32 %v3020, 2147483648
        %v3023 = vmul.f32 %v3021, 1.442695
        %v3024 = vpow.pop %v3023
        %v3025 = vmul.f32 %v3022, 1.442695
        %v3026 = vpow.pop %v3025
        %v3027 = vadd.f32 %v3024, 1.0
        %v3028 = vadd.f32 %v3026, 1.0
        %v3029 = vrcp.pop %v3027
        %v3030 = vmul.f32 1.0, %v3029
        %v3031 = vrcp.pop %v3028
        %v3032 = vmul.f32 1.0, %v3031
        %v3033 = vmul.f32 %v3019, %v3030
        %v3034 = vmul.f32 %v3020, %v3032
        %v3035 = vpack.c.bf16 %v3034, %v3033
        %v3036 = vld [vmem:[%s1211] sm:$0xf]
        %v3037 = vld [vmem:[%s1211 + $0x4] sm:$0xf]
        %v3038 = vld [vmem:[%s1211 + $0x8] sm:$0xf]
        %v3039 = vld [vmem:[%s1211 + $0xc] sm:$0xf]
        %v3040 = vld [vmem:[%s1211 + $0x10] sm:$0xf]
        %v3041 = vld [vmem:[%s1211 + $0x14] sm:$0xf]
        %v3042 = vld [vmem:[%s1211 + $0x18] sm:$0xf]
        %v3043 = vld [vmem:[%s1211 + $0x1c] sm:$0xf]
        %v3044 = vld [vmem:[%s1211 + $0x20] sm:$0xf]
        %v3045 = vld [vmem:[%s1211 + $0x24] sm:$0xf]
        %v3046 = vld [vmem:[%s1211 + $0x28] sm:$0xf]
        %v3047 = vld [vmem:[%s1211 + $0x2c] sm:$0xf]
        %v3048 = vld [vmem:[%s1211 + $0x30] sm:$0xf]
        %v3049 = vld [vmem:[%s1211 + $0x34] sm:$0xf]
        %v3050 = vld [vmem:[%s1211 + $0x38] sm:$0xf]
        %v3051 = vld [vmem:[%s1211 + $0x3c] sm:$0xf]
        %v3068 = vunpack.c.l.b16 %v3036
        %v3069 = vunpack.c.l.b16 %v3037
        %v3070 = vunpack.c.l.b16 %v3038
        %v3071 = vunpack.c.l.b16 %v3039
        %v3072 = vunpack.c.l.b16 %v3040
        %v3073 = vunpack.c.l.b16 %v3041
        %v3074 = vunpack.c.l.b16 %v3042
        %v3075 = vunpack.c.l.b16 %v3043
        %v3076 = vunpack.c.l.b16 %v3044
        %v3077 = vunpack.c.l.b16 %v3045
        %v3078 = vunpack.c.l.b16 %v3046
        %v3079 = vunpack.c.l.b16 %v3047
        %v3080 = vunpack.c.l.b16 %v3048
        %v3081 = vunpack.c.l.b16 %v3049
        %v3082 = vunpack.c.l.b16 %v3050
        %v3083 = vunpack.c.l.b16 %v3051
        %v3084 = vpack.c.b16 %v3069, %v3068
        %v3085 = vpack.c.b16 %v3071, %v3070
        %v3086 = vpack.c.b16 %v3073, %v3072
        %v3087 = vpack.c.b16 %v3075, %v3074
        %v3088 = vpack.c.b16 %v3077, %v3076
        %v3089 = vpack.c.b16 %v3079, %v3078
        %v3090 = vpack.c.b16 %v3081, %v3080
        %v3091 = vpack.c.b16 %v3083, %v3082
        %3100 = vmatprep.subr.bf16.mxu0 0
        %3101 = vmatpush1.bf16.msra.mxu0 %v3084
        %3102 = vmatprep.subr.bf16.mxu0 0
        %3103 = vmatpush1.bf16.msra.mxu0 %v3085
        %3104 = vmatprep.subr.bf16.mxu0 0
        %3105 = vmatpush1.bf16.msra.mxu0 %v3086
        %3106 = vmatprep.subr.bf16.mxu0 0
        %3107 = vmatpush1.bf16.msra.mxu0 %v3087
        %3108 = vmatprep.subr.bf16.mxu0 0
        %3109 = vmatpush1.bf16.msra.mxu0 %v3088
        %3110 = vmatprep.subr.bf16.mxu0 0
        %3111 = vmatpush1.bf16.msra.mxu0 %v3089
        %3112 = vmatprep.subr.bf16.mxu0 0
        %3113 = vmatpush1.bf16.msra.mxu0 %v3090
        %3114 = vmatprep.subr.bf16.mxu0 0
        %3115 = vmatpush1.bf16.msra.mxu0 %v3091
        %3116 = vmatprep.subr.bf16.mxu0 0
        %3117 = vmatpush1.bf16.msra.mxu0 0
        %3118 = vmatprep.subr.bf16.mxu0 0
        %3119 = vmatpush1.bf16.msra.mxu0 0
        %3120 = vmatprep.subr.bf16.mxu0 0
        %3121 = vmatpush1.bf16.msra.mxu0 0
        %3122 = vmatprep.subr.bf16.mxu0 0
        %3123 = vmatpush1.bf16.msra.mxu0 0
        %3124 = vmatprep.subr.bf16.mxu0 0
        %3125 = vmatpush1.bf16.msra.mxu0 0
        %3126 = vmatprep.subr.bf16.mxu0 0
        %3127 = vmatpush1.bf16.msra.mxu0 0
        %3128 = vmatprep.subr.bf16.mxu0 0
        %3129 = vmatpush1.bf16.msra.mxu0 0
        %3130 = vmatprep.subr.bf16.mxu0 0
        %3131 = vmatpush1.bf16.msra.mxu0 0
        %3132 = vmatprep.mubr.bf16.mxu0 0
        %3133 = vmatmul.mubr.bf16.gmra.mrb[0].mxu0 %v3035
        %v3134 = vpop.f32.mrb[0].mxu0
        %v3135 = vadd.f32 0.0, %v3134
        %v3136 = vpop.f32.mrb[0].mxu0
        %v3137 = vpop.f32.mrb[0].mxu0
        %v3138 = vadd.f32 0.0, %v3137
        %v3139 = vpop.f32.mrb[0].mxu0
        %3140 = vdwg.mxu0
        %v3141 = vadd.f32 %v2592, %v3135
        %v3142 = vadd.f32 %v2593, %v3138
        %v3143 = vld [vmem:[%s1214] sm:$0x1]
        %v3145 = vlaneseq
        %v3146 = vshrl.u32 %v3145, 7
        %v3147 = vsub.s32 0, %v3146
        %v3148 = vrot.slane %v3143, %v3147
        %v3150 = vadd.f32 %v3141, %v3148
        %v3151 = vadd.f32 %v3142, %v3148
        %3152 = vst.msk [vmem:[#allocation2] sm:$0xff] %vm1843, %v3150
        %3153 = vst.msk [vmem:[#allocation2 + $0x8] sm:$0xff] %vm1843, %v3151
        %p3154 = scmp.eq.s32.totalorder %s52, 1
        // Predicated region
        $region177: #{tpu_custom_call.1} parent=127 // pred_check
          %p3155 = pneg %p3154
        $region178: #{tpu_custom_call.1} parent=127 // pred_check_branch
          %3157 = sbr.rel (%p3155) target = $region180
        $region179: #{tpu_custom_call.1} parent=127 // pred_region
          %v3158 = vld [vmem:[%s22] sm:$0x1]
          %v3159 = vld [vmem:[%s23] sm:$0x1]
          %v3160 = vsel %vm1843, %v3150, 0.0
          %3161 = vadd.xlane.f32.xlu0 %v3160
          %v3162 = vpop.xlane.xlu0 %3161
          %v3163 = vsel %vm1843, %v3151, 0.0
          %3164 = vadd.xlane.f32.xlu0 %v3163
          %v3165 = vpop.xlane.xlu0 %3164
          %v3166 = vmul.f32 %v3162, %v1850
          %v3167 = vmul.f32 %v3165, %v1850
          %v3168 = vsub.f32 %v3150, %v3166
          %v3169 = vsub.f32 %v3151, %v3167
          %v3170 = vmul.f32 %v3168, %v3168
          %v3171 = vmul.f32 %v3169, %v3169
          %v3172 = vsel %vm1843, %v3170, 0.0
          %3173 = vadd.xlane.f32.xlu0 %v3172
          %v3174 = vpop.xlane.xlu0 %3173
          %v3175 = vsel %vm1843, %v3171, 0.0
          %3176 = vadd.xlane.f32.xlu0 %v3175
          %v3177 = vpop.xlane.xlu0 %3176
          %v3178 = vmul.f32 %v3174, %v1850
          %v3179 = vmul.f32 %v3177, %v1850
          %v3180 = vadd.f32 %v3178, 1e-05
          %v3181 = vadd.f32 %v3179, 1e-05
          %v3182 = vrsqrt.pop %v3180
          %v3183 = vrsqrt.pop %v3181
          %v3184 = vmul.f32 %v3168, %v3182
          %v3185 = vmul.f32 %v3169, %v3183
          %v3187 = vlaneseq
          %v3188 = vshrl.u32 %v3187, 7
          %v3189 = vsub.s32 0, %v3188
          %v3190 = vrot.slane %v3158, %v3189
          %v3192 = vmul.f32 %v3184, %v3190
          %v3193 = vmul.f32 %v3185, %v3190
          %v3195 = vlaneseq
          %v3196 = vshrl.u32 %v3195, 7
          %v3197 = vsub.s32 0, %v3196
          %v3198 = vrot.slane %v3159, %v3197
          %v3200 = vadd.f32 %v3192, %v3198
          %v3201 = vadd.f32 %v3193, %v3198
          %v3202 = vld [vmem:[%s24] sm:$0xf]
          %v3203 = vld [vmem:[%s24 + $0x4] sm:$0xf]
          %v3204 = vld [vmem:[%s24 + $0x8] sm:$0xf]
          %v3205 = vld [vmem:[%s24 + $0xc] sm:$0xf]
          %v3206 = vld [vmem:[%s24 + $0x10] sm:$0xf]
          %v3207 = vld [vmem:[%s24 + $0x14] sm:$0xf]
          %v3208 = vld [vmem:[%s24 + $0x18] sm:$0xf]
          %v3209 = vld [vmem:[%s24 + $0x1c] sm:$0xf]
          %v3210 = vpack.c.bf16 %v3201, %v3200
          %v3211 = vld [vmem:[%s25] sm:$0x1]
          %v3213 = vlaneseq
          %v3214 = vshrl.u32 %v3213, 7
          %v3215 = vsub.s32 0, %v3214
          %v3216 = vrot.slane %v3211, %v3215
          %v3226 = vunpack.c.l.b16 %v3202
          %v3227 = vunpack.c.l.b16 %v3203
          %v3228 = vunpack.c.l.b16 %v3204
          %v3229 = vunpack.c.l.b16 %v3205
          %v3230 = vunpack.c.l.b16 %v3206
          %v3231 = vunpack.c.l.b16 %v3207
          %v3232 = vunpack.c.l.b16 %v3208
          %v3233 = vunpack.c.l.b16 %v3209
          %v3234 = vpack.c.b16 %v3227, %v3226
          %v3235 = vpack.c.b16 %v3229, %v3228
          %v3236 = vpack.c.b16 %v3231, %v3230
          %v3237 = vpack.c.b16 %v3233, %v3232
          %v3243 = vsel %vm1843, %v3210, 0
          %3245 = vmatprep.subr.bf16.mxu0 0
          %3246 = vmatpush1.bf16.msra.mxu0 %v3234
          %3247 = vmatprep.subr.bf16.mxu0 0
          %3248 = vmatpush1.bf16.msra.mxu0 %v3235
          %3249 = vmatprep.subr.bf16.mxu0 0
          %3250 = vmatpush1.bf16.msra.mxu0 %v3236
          %3251 = vmatprep.subr.bf16.mxu0 0
          %3252 = vmatpush1.bf16.msra.mxu0 %v3237
          %3253 = vmatprep.subr.bf16.mxu0 0
          %3254 = vmatpush1.bf16.msra.mxu0 0
          %3255 = vmatprep.subr.bf16.mxu0 0
          %3256 = vmatpush1.bf16.msra.mxu0 0
          %3257 = vmatprep.subr.bf16.mxu0 0
          %3258 = vmatpush1.bf16.msra.mxu0 0
          %3259 = vmatprep.subr.bf16.mxu0 0
          %3260 = vmatpush1.bf16.msra.mxu0 0
          %3261 = vmatprep.subr.bf16.mxu0 0
          %3262 = vmatpush1.bf16.msra.mxu0 0
          %3263 = vmatprep.subr.bf16.mxu0 0
          %3264 = vmatpush1.bf16.msra.mxu0 0
          %3265 = vmatprep.subr.bf16.mxu0 0
          %3266 = vmatpush1.bf16.msra.mxu0 0
          %3267 = vmatprep.subr.bf16.mxu0 0
          %3268 = vmatpush1.bf16.msra.mxu0 0
          %3269 = vmatprep.subr.bf16.mxu0 0
          %3270 = vmatpush1.bf16.msra.mxu0 0
          %3271 = vmatprep.subr.bf16.mxu0 0
          %3272 = vmatpush1.bf16.msra.mxu0 0
          %3273 = vmatprep.subr.bf16.mxu0 0
          %3274 = vmatpush1.bf16.msra.mxu0 0
          %3275 = vmatprep.subr.bf16.mxu0 0
          %3276 = vmatpush1.bf16.msra.mxu0 0
          %3277 = vmatprep.mubr.bf16.mxu0 0
          %3278 = vmatmul.mubr.bf16.gmra.mrb[0].mxu0 %v3243
          %v3279 = vpop.f32.mrb[0].mxu0
          %v3280 = vadd.f32 %v3216, %v3279
          %v3281 = vpop.f32.mrb[0].mxu0
          %v3282 = vpop.f32.mrb[0].mxu0
          %v3283 = vadd.f32 %v3216, %v3282
          %v3284 = vpop.f32.mrb[0].mxu0
          %3285 = vdwg.mxu0
          %v3286 = vxor.u32 %v3280, 2147483648
          %v3287 = vxor.u32 %v3283, 2147483648
          %v3288 = vmul.f32 %v3286, 1.442695
          %v3289 = vpow.pop %v3288
          %v3290 = vmul.f32 %v3287, 1.442695
          %v3291 = vpow.pop %v3290
          %v3292 = vadd.f32 %v3289, 1.0
          %v3293 = vadd.f32 %v3291, 1.0
          %v3294 = vrcp.pop %v3292
          %v3295 = vmul.f32 1.0, %v3294
          %v3296 = vrcp.pop %v3293
          %v3297 = vmul.f32 1.0, %v3296
          %v3298 = vld [vmem:[%s26] sm:$0x1]
          %3299 = vmax.xlane.f32.xlu0 %v3295
          %v3300 = vpop.xlane.xlu0 %3299
          %3301 = vmax.xlane.f32.xlu0 %v3297
          %v3302 = vpop.xlane.xlu0 %3301
          %v3303 = vlaneseq
          %v3304 = vand.u32 %v3303, 127
          %vm3305 = vcmp.eq.f32.partialorder %v3295, %v3300
          %vm3306 = vcmp.eq.f32.partialorder %v3297, %v3302
          %v3307 = vsel %vm3305, %v3304, 128
          %v3308 = vsel %vm3306, %v3304, 128
          %v3309 = vand.u32 %v3307, 65535
          %v3310 = vshra.s32 %v3307, 16
          %v3311 = vcvt.s32.f32 %v3309
          %v3312 = vcvt.s32.f32 %v3310
          %3313 = vmin.xlane.f32.xlu0 %v3312
          %v3314 = vpop.xlane.xlu0 %3313
          %vm3315 = vcmp.eq.f32.partialorder %v3312, %v3314
          %v3316 = vsel %vm3315, %v3311, inf
          %3317 = vmin.xlane.f32.xlu0 %v3316
          %v3318 = vpop.xlane.xlu0 %3317
          %v3319 = vcvt.f32.s32 %v3318
          %v3320 = vcvt.f32.s32 %v3314
          %v3321 = vshll.u32 %v3320, 16
          %v3322 = vadd.s32 %v3321, %v3319
          %v3323 = vand.u32 %v3308, 65535
          %v3324 = vshra.s32 %v3308, 16
          %v3325 = vcvt.s32.f32 %v3323
          %v3326 = vcvt.s32.f32 %v3324
          %3327 = vmin.xlane.f32.xlu0 %v3326
          %v3328 = vpop.xlane.xlu0 %3327
          %vm3329 = vcmp.eq.f32.partialorder %v3326, %v3328
          %v3330 = vsel %vm3329, %v3325, inf
          %3331 = vmin.xlane.f32.xlu0 %v3330
          %v3332 = vpop.xlane.xlu0 %3331
          %v3333 = vcvt.f32.s32 %v3332
          %v3334 = vcvt.f32.s32 %v3328
          %v3335 = vshll.u32 %v3334, 16
          %v3336 = vadd.s32 %v3335, %v3333
          %v3337 = vsub.s32 %v3322, 4
          %v3338 = vsub.s32 %v3336, 4
          %vm3339 = vcmp.ge.s32.totalorder %v3304, %v3337
          %vm3340 = vcmp.ge.s32.totalorder %v3304, %v3338
          %v3341 = vadd.s32 %v3322, 4
          %v3342 = vadd.s32 %v3336, 4
          %vm3343 = vcmp.le.s32.totalorder %v3304, %v3341
          %vm3344 = vcmp.le.s32.totalorder %v3304, %v3342
          %vm3345 = vmand %vm3339, %vm3343
          %vm3346 = vmand %vm3340, %vm3344
          %v3347 = vsel %vm3345, 1, 0
          %v3348 = vsel %vm3346, 1, 0
          %v3349 = vcvt.s32.f32 %v3347
          %v3350 = vcvt.s32.f32 %v3348
          %vm3351 = vcmp.eq.s32.totalorder %v3304, 0
          %v3352 = vsel %vm3351, 1, 0
          %v3353 = vcvt.s32.f32 %v3352
          %v3354 = vsub.s32 4, %v3322
          %v3355 = vsub.s32 4, %v3336
          %vm3356 = vcmp.gt.s32.totalorder %v3354, 0
          %v3357 = vsel %vm3356, %v3354, 0
          %vm3358 = vcmp.gt.s32.totalorder %v3355, 0
          %v3359 = vsel %vm3358, %v3355, 0
          %v3360 = vcvt.s32.f32 %v3357
          %v3361 = vcvt.s32.f32 %v3359
          %v3362 = vmul.f32 %v3353, %v3360
          %v3363 = vmul.f32 %v3353, %v3361
          %v3364 = vadd.f32 %v3349, %v3362
          %v3365 = vadd.f32 %v3350, %v3363
          %vm3366 = vcmp.eq.s32.totalorder %v3304, 127
          %v3367 = vsel %vm3366, 1, 0
          %v3368 = vcvt.s32.f32 %v3367
          %v3369 = vsub.s32 %v3322, 123
          %v3370 = vsub.s32 %v3336, 123
          %vm3371 = vcmp.gt.s32.totalorder %v3369, 0
          %v3372 = vsel %vm3371, %v3369, 0
          %vm3373 = vcmp.gt.s32.totalorder %v3370, 0
          %v3374 = vsel %vm3373, %v3370, 0
          %v3375 = vcvt.s32.f32 %v3372
          %v3376 = vcvt.s32.f32 %v3374
          %v3377 = vmul.f32 %v3368, %v3375
          %v3378 = vmul.f32 %v3368, %v3376
          %v3379 = vadd.f32 %v3364, %v3377
          %v3380 = vadd.f32 %v3365, %v3378
          %v3382 = vlaneseq
          %v3383 = vshrl.u32 %v3382, 7
          %v3384 = vsub.s32 0, %v3383
          %v3385 = vrot.slane %v3298, %v3384
          %v3387 = vmul.f32 %v3385, %v3379
          %v3388 = vmul.f32 %v3385, %v3380
          %v3389 = vmul.f32 %v3387, %v3295
          %v3390 = vmul.f32 %v3388, %v3297
          %3391 = vadd.xlane.f32.xlu0 %v3389
          %v3392 = vpop.xlane.xlu0 %3391
          %3393 = vadd.xlane.f32.xlu0 %v3390
          %v3394 = vpop.xlane.xlu0 %3393
          %v3395 = vmul.f32 %v3379, %v3295
          %v3396 = vmul.f32 %v3380, %v3297
          %3397 = vadd.xlane.f32.xlu0 %v3395
          %v3398 = vpop.xlane.xlu0 %3397
          %3399 = vadd.xlane.f32.xlu0 %v3396
          %v3400 = vpop.xlane.xlu0 %3399
          %v3401 = vrcp.pop %v3398
          %v3402 = vmul.f32 %v3392, %v3401
          %v3403 = vrcp.pop %v3400
          %v3404 = vmul.f32 %v3394, %v3403
          %vm3405 = vcmp.gt.f32.partialorder %v3300, 0.006
          %vm3406 = vcmp.gt.f32.partialorder %v3302, 0.006
          %v3407 = vsel %vm3405, %v3402, -inf
          %v3408 = vsel %vm3406, %v3404, -inf
          %v3409 = vmul.f32 %v3407, 0.0005776227
          %v3410 = vmul.f32 %v3408, 0.0005776227
          %v3411 = vmul.f32 %v3409, 1.442695
          %v3412 = vpow.pop %v3411
          %v3413 = vmul.f32 %v3410, 1.442695
          %v3414 = vpow.pop %v3413
          %v3415 = vmul.f32 %v3412, 10.0
          %v3416 = vmul.f32 %v3414, 10.0
          %3417 = vst [vmem:[%s1182] sm:$0xff] %v3415
          %3418 = vst [vmem:[%s1182 + $0x8] sm:$0xff] %v3416
        $region180: #{tpu_custom_call.1} parent=127 // pred_fallthru
          _
        %s3419 = sand.u32 %s704, 1
        %s3420 = scalar_lea.sflag [#allocation5], %s3419
        %s3421 = sand.u32 %s704, 1
        %s3422 = smul.addr %s3421, 16
        %s3423 = scalar_lea.vmem [#allocation19], %s3422
        // Predicated region
        $region181: #{tpu_custom_call.1} parent=127 // pred_check
          %p3424 = pneg %p714
        $region182: #{tpu_custom_call.1} parent=127 // pred_check_branch
          %3426 = sbr.rel (%p3424) target = $region184
        $region183: #{tpu_custom_call.1} parent=127 // pred_region
          %s3427 = smul.u32 2, %s51
          %s3429 = ssub.s32 256, 256
          %3430 = vsyncadd %s3420, %s3429
          %s3431 = smul.addr %s3427, 128
          %s3432 = scalar_lea.hbm %s27, %s3431
          %s3433 = sshll.u32 %s3423, 4
          %s3434 = int_to_ptr.vmem [resolvable:$true] %s3433
          %3439 = dma.vmem_to_hbm [thread:$0]  %s3434, 256, %s3432, %s3420, 128, 128, 8
        $region184: #{tpu_custom_call.1} parent=127 // pred_fallthru
          _
      $region128: #{tpu_custom_call.1} parent=5 // pred_fallthru
        _
      %p3440 = scmp.le.s32.totalorder 2, %s42
      // Predicated region
      $region185: #{tpu_custom_call.1} parent=5 // pred_check
        %p3441 = pneg %p3440
      $region186: #{tpu_custom_call.1} parent=5 // pred_check_branch
        %3443 = sbr.rel (%p3441) target = $region188
      $region187: #{tpu_custom_call.1} parent=5 // pred_region
        %s3444 = ssub.s32 %s42, 2
        // Predicated region
        $region189: #{tpu_custom_call.1} parent=187 // pred_check
          %p3445 = pneg %p720
        $region190: #{tpu_custom_call.1} parent=187 // pred_check_branch
          %3447 = sbr.rel (%p3445) target = $region192
        $region191: #{tpu_custom_call.1} parent=187 // pred_region
          %s3448 = sand.u32 %s705, 1
          %s3449 = scalar_lea.sflag [#allocation5], %s3448
          %s3450 = sand.u32 %s705, 1
          %s3451 = smul.addr %s3450, 16
          %s3452 = scalar_lea.vmem [#allocation19], %s3451
          %3453 = dma.done %s3449, 256
        $region192: #{tpu_custom_call.1} parent=187 // pred_fallthru
          _
      $region188: #{tpu_custom_call.1} parent=5 // pred_fallthru
        _
    $region6: #{tpu_custom_call.1} parent=1 // loop_footer
      %s46 = sadd.s32 1, %s42
    $region7: #{tpu_custom_call.1} parent=1 // loop_footer_branch
      %41 = sbr.rel target = $region3
    $region8: #{tpu_custom_call.1} parent=1 // loop_exit
      _
    %3454 = vsyncpa [#allocation4], 1
    %s3455 = scalar_lea.sflag [#allocation4], 1
    %3456 = vsyncpa %s3455, 1
    %3457 = vsyncpa [#allocation7], 1
    %3458 = vsyncpa [#allocation10], 1
    %3459 = vsyncpa [#allocation13], 1
    %3460 = vsyncpa [#allocation5], 1
    %s3461 = scalar_lea.sflag [#allocation5], 1
    %3462 = vsyncpa %s3461, 1

</llo_original>
